<compile_context>
chip_gen: v6e
topology: v6e:2x2x1
jax: 0.10.0
libtpu: 0.0.40
codegen_flags: <defaults>
</compile_context>

<pallas_src>
import math
import jax
import jax.numpy as jnp
from jax.experimental import pallas as pl
from jax.experimental.pallas import tpu as pltpu

# ---- small synthetic BERT config (bert-base-cased shrunk) ----
VOCAB = 64
MAX_POS = 16
TYPE_VOCAB = 2
HIDDEN = 32
N_HEADS = 4
HEAD_DIM = HIDDEN // N_HEADS
INTERMEDIATE = 64
N_LAYERS = 2
OUTPUT_DIM = 1
PAD_TOKEN_ID = 0
LN_EPS = 1e-12


def _layernorm(x, gamma, beta, eps=LN_EPS):
    mu = jnp.mean(x, axis=-1, keepdims=True)
    var = jnp.mean((x - mu) ** 2, axis=-1, keepdims=True)
    return (x - mu) * jax.lax.rsqrt(var + eps) * gamma + beta


# ---------------- fused Pallas kernel ----------------

def fused_bert_kernel(emb_ref, mask_ref, eg_ref, eb_ref,
                      wqkv_ref, bqkv_ref, wo_ref, bo_ref,
                      ln1_g_ref, ln1_b_ref, w1_ref, b1_ref,
                      w2_ref, b2_ref, ln2_g_ref, ln2_b_ref,
                      pool_w_ref, pool_b_ref, cls_w_ref, cls_b_ref,
                      out_ref):
    B, S, H = emb_ref.shape

    # --- embedding LayerNorm
    x = _layernorm(emb_ref[...].reshape(B * S, H), eg_ref[...], eb_ref[...])

    # additive attention mask, (B, 1, S); broadcasts inside the score add
    mask = mask_ref[...].reshape(B, 1, S)
    scale = 1.0 / math.sqrt(HEAD_DIM)

    # --- encoder layers, statically unrolled (all weights already in VMEM)
    for l in range(N_LAYERS):
        x_bf = x.astype(jnp.bfloat16)            # one cast per layer

        # fused QKV projection: (B*S, H) @ (H, 3H), bf16 operands, f32 acc
        qkv = jnp.dot(x_bf, wqkv_ref[l],
                      preferred_element_type=jnp.float32) + bqkv_ref[l]
        q = (qkv[:, 0 * H:1 * H] * scale).astype(jnp.bfloat16).reshape(B, S, H)
        k = qkv[:, 1 * H:2 * H].astype(jnp.bfloat16).reshape(B, S, H)
        v = qkv[:, 2 * H:3 * H].astype(jnp.bfloat16).reshape(B, S, H)

        # TODO(synk): per-head loop retained — Mosaic's dot_general lowering is
        # only guaranteed for a single leading batch dim, so the head-batched
        # 'bqhd,bkhd->bhqk' contraction (or the (0,2,1,3) transpose needed to
        # fold heads into the batch dim) is not a safe lowering target here.
        # Operands are bf16 now, so the MXU cost is already the bf16 path.
        ctx_heads = []
        for h in range(N_HEADS):
            sl = slice(h * HEAD_DIM, (h + 1) * HEAD_DIM)
            qh, kh, vh = q[:, :, sl], k[:, :, sl], v[:, :, sl]    # (B, S, hd) bf16
            s = jnp.einsum('bqd,bkd->bqk', qh, kh,
                           preferred_element_type=jnp.float32)
            s = s + mask                                          # broadcast add
            m = jnp.max(s, axis=-1, keepdims=True)
            p = jnp.exp(s - m)
            p = p * pl.reciprocal(jnp.sum(p, axis=-1, keepdims=True), approx=True)
            ctx_heads.append(
                jnp.einsum('bqk,bkd->bqd', p.astype(jnp.bfloat16), vh,
                           preferred_element_type=jnp.float32))
        ctx = jnp.concatenate(ctx_heads, axis=-1).reshape(B * S, H)

        # attention output projection + residual + LayerNorm
        attn_out = jnp.dot(ctx.astype(jnp.bfloat16), wo_ref[l],
                           preferred_element_type=jnp.float32) + bo_ref[l]
        h1 = _layernorm(x + attn_out, ln1_g_ref[l], ln1_b_ref[l])

        # feed-forward
        ffn = jnp.dot(h1.astype(jnp.bfloat16), w1_ref[l],
                      preferred_element_type=jnp.float32) + b1_ref[l]
        # TODO(synk): HF BERT uses exact erf-gelu; tanh approximation used here (EUP).
        ffn = jax.nn.gelu(ffn, approximate=True)
        ffn = jnp.dot(ffn.astype(jnp.bfloat16), w2_ref[l],
                      preferred_element_type=jnp.float32) + b2_ref[l]
        x = _layernorm(h1 + ffn, ln2_g_ref[l], ln2_b_ref[l])

    # --- pooler ([CLS] token) + dropout(identity at inference) + classifier
    cls_tok = x.reshape(B, S, H)[:, 0, :]                          # (B, H)
    pooled = jnp.tanh(
        jnp.dot(cls_tok.astype(jnp.bfloat16), pool_w_ref[...],
                preferred_element_type=jnp.float32) + pool_b_ref[...])
    # classifier (H -> 1) as a VPU lane reduction (no 1-lane-wide MXU matmul).
    # TODO(synk): output stays (B, 1) (masked vst); pad to 128 lanes if OUTPUT_DIM grows.
    out_ref[...] = (jnp.sum(pooled * cls_w_ref[...], axis=-1, keepdims=True)
                    + cls_b_ref[...])


# ---------------- wrapper ----------------

def bert_classifier_forward(params, input_ids):
    B, S = input_ids.shape
    # forward(): attention_mask = input_ids != pad_token_id
    attn_mask = input_ids != PAD_TOKEN_ID
    add_mask = jnp.where(attn_mask, 0.0, -1e30).astype(jnp.float32)   # (B, S)

    # embeddings (gather glue); LayerNorm happens inside the fused kernel
    emb = (params['word_emb'][input_ids]
           + params['pos_emb'][:S][None, :, :]
           + params['type_emb'][0][None, None, :]).astype(jnp.float32)

    def full(shape):
        nd = len(shape)
        return pl.BlockSpec(shape, lambda i, nd=nd: (0,) * nd)

    # Single grid step: everything (incl. stacked per-layer weights) is a full
    # VMEM block; layers are unrolled inside the kernel.
    # TODO(synk): at real BERT-base scale, reintroduce a layer grid axis (stream
    # weights) and a 'parallel' B*S tile axis (v7x dual-TC, VMEM budget).
    grid_spec = pltpu.PrefetchScalarGridSpec(
        num_scalar_prefetch=0,
        grid=(1,),
        in_specs=[
            full((B, S, HIDDEN)),                        # emb
            full((B, S)),                                # additive attention mask
            full((1, HIDDEN)),                           # emb_ln_g
            full((1, HIDDEN)),                           # emb_ln_b
            full((N_LAYERS, HIDDEN, 3 * HIDDEN)),        # wqkv (bf16)
            full((N_LAYERS, 1, 3 * HIDDEN)),             # bqkv
            full((N_LAYERS, HIDDEN, HIDDEN)),            # wo (bf16)
            full((N_LAYERS, 1, HIDDEN)),                 # bo
            full((N_LAYERS, 1, HIDDEN)),                 # ln1_g
            full((N_LAYERS, 1, HIDDEN)),                 # ln1_b
            full((N_LAYERS, HIDDEN, INTERMEDIATE)),      # w1 (bf16)
            full((N_LAYERS, 1, INTERMEDIATE)),           # b1
            full((N_LAYERS, INTERMEDIATE, HIDDEN)),      # w2 (bf16)
            full((N_LAYERS, 1, HIDDEN)),                 # b2
            full((N_LAYERS, 1, HIDDEN)),                 # ln2_g
            full((N_LAYERS, 1, HIDDEN)),                 # ln2_b
            full((HIDDEN, HIDDEN)),                      # pool_w (bf16)
            full((1, HIDDEN)),                           # pool_b
            full((1, HIDDEN)),                           # cls_w (row vector)
            full((1, OUTPUT_DIM)),                       # cls_b
        ],
        out_specs=full((B, OUTPUT_DIM)),
    )

    logits = pl.pallas_call(
        fused_bert_kernel,
        out_shape=jax.ShapeDtypeStruct((B, OUTPUT_DIM), jnp.float32),
        grid_spec=grid_spec,
        compiler_params=pltpu.CompilerParams(
            dimension_semantics=("arbitrary",)),
    )(emb, add_mask,
      params['emb_ln_g'], params['emb_ln_b'],
      params['wqkv'], params['bqkv'], params['wo'], params['bo'],
      params['ln1_g'], params['ln1_b'], params['w1'], params['b1'],
      params['w2'], params['b2'], params['ln2_g'], params['ln2_b'],
      params['pool_w'], params['pool_b'], params['cls_w'], params['cls_b'])
    return logits


def init_params(key):
    keys = iter(jax.random.split(key, 8 + 16 * N_LAYERS))

    def nrm(shape, dtype=jnp.float32):
        return (0.02 * jax.random.normal(next(keys), shape)).astype(dtype)

    def zeros(shape):
        return jnp.zeros(shape, jnp.float32)

    def ones(shape):
        return jnp.ones(shape, jnp.float32)

    params = {
        'word_emb': nrm((VOCAB, HIDDEN)),
        'pos_emb': nrm((MAX_POS, HIDDEN)),
        'type_emb': nrm((TYPE_VOCAB, HIDDEN)),
        'emb_ln_g': ones((1, HIDDEN)),
        'emb_ln_b': zeros((1, HIDDEN)),
        'pool_w': nrm((HIDDEN, HIDDEN), jnp.bfloat16),
        'pool_b': zeros((1, HIDDEN)),
        'cls_w': nrm((1, HIDDEN)),            # nn.Linear(H, 1) weight (1, H)
        'cls_b': zeros((1, OUTPUT_DIM)),
    }

    wqkv, bqkv, wo, bo = [], [], [], []
    l1g, l1b, w1, b1, w2, b2, l2g, l2b = [], [], [], [], [], [], [], []
    for _ in range(N_LAYERS):
        wq = nrm((HIDDEN, HIDDEN))
        wk = nrm((HIDDEN, HIDDEN))
        wv = nrm((HIDDEN, HIDDEN))
        wqkv.append(jnp.concatenate([wq, wk, wv], axis=1).astype(jnp.bfloat16))
        bqkv.append(zeros((1, 3 * HIDDEN)))
        wo.append(nrm((HIDDEN, HIDDEN), jnp.bfloat16))
        bo.append(zeros((1, HIDDEN)))
        l1g.append(ones((1, HIDDEN)))
        l1b.append(zeros((1, HIDDEN)))
        w1.append(nrm((HIDDEN, INTERMEDIATE), jnp.bfloat16))
        b1.append(zeros((1, INTERMEDIATE)))
        w2.append(nrm((INTERMEDIATE, HIDDEN), jnp.bfloat16))
        b2.append(zeros((1, HIDDEN)))
        l2g.append(ones((1, HIDDEN)))
        l2b.append(zeros((1, HIDDEN)))

    params.update(
        wqkv=jnp.stack(wqkv), bqkv=jnp.stack(bqkv),
        wo=jnp.stack(wo), bo=jnp.stack(bo),
        ln1_g=jnp.stack(l1g), ln1_b=jnp.stack(l1b),
        w1=jnp.stack(w1), b1=jnp.stack(b1),
        w2=jnp.stack(w2), b2=jnp.stack(b2),
        ln2_g=jnp.stack(l2g), ln2_b=jnp.stack(l2b),
    )
    return params


if __name__ == "__main__":
    key = jax.random.PRNGKey(0)
    pkey, ikey = jax.random.split(key)
    params = init_params(pkey)

    B, S = 2, 8
    input_ids = jax.random.randint(ikey, (B, S), 0, VOCAB, dtype=jnp.int32)
    input_ids = input_ids.at[:, 0].set(1)               # non-pad "[CLS]"-ish token
    input_ids = input_ids.at[:, -2:].set(PAD_TOKEN_ID)  # padding -> exercises mask

    out = bert_classifier_forward(params, input_ids)
    out = jax.block_until_ready(out)
    assert out.shape == (B, OUTPUT_DIM)
    assert bool(jnp.all(jnp.isfinite(out)))
    print("KERNEL_OK")
</pallas_src>

<mosaic_0001>
module attributes {stable_mosaic.version = 11 : i64} {
  func.func @fused_bert_kernel(%arg0: i32, %arg1: memref<2x8x32xf32, #tpu.memory_space<vmem>>, %arg2: memref<2x8xf32, #tpu.memory_space<vmem>>, %arg3: memref<1x32xf32, #tpu.memory_space<vmem>>, %arg4: memref<1x32xf32, #tpu.memory_space<vmem>>, %arg5: memref<2x32x96xbf16, #tpu.memory_space<vmem>>, %arg6: memref<2x1x96xf32, #tpu.memory_space<vmem>>, %arg7: memref<2x32x32xbf16, #tpu.memory_space<vmem>>, %arg8: memref<2x1x32xf32, #tpu.memory_space<vmem>>, %arg9: memref<2x1x32xf32, #tpu.memory_space<vmem>>, %arg10: memref<2x1x32xf32, #tpu.memory_space<vmem>>, %arg11: memref<2x32x64xbf16, #tpu.memory_space<vmem>>, %arg12: memref<2x1x64xf32, #tpu.memory_space<vmem>>, %arg13: memref<2x64x32xbf16, #tpu.memory_space<vmem>>, %arg14: memref<2x1x32xf32, #tpu.memory_space<vmem>>, %arg15: memref<2x1x32xf32, #tpu.memory_space<vmem>>, %arg16: memref<2x1x32xf32, #tpu.memory_space<vmem>>, %arg17: memref<32x32xbf16, #tpu.memory_space<vmem>>, %arg18: memref<1x32xf32, #tpu.memory_space<vmem>>, %arg19: memref<1x32xf32, #tpu.memory_space<vmem>>, %arg20: memref<1x1xf32, #tpu.memory_space<vmem>>, %arg21: memref<2x1xf32, #tpu.memory_space<vmem>>) attributes {dimension_semantics = [#tpu.dimension_semantics<arbitrary>], iteration_bounds = array<i64: 1>, scalar_prefetch = 0 : i64, scratch_operands = 0 : i64, tpu.core_type = #tpu.core_type<tc>, window_params = [{pipeline_mode = #tpu.pipeline_mode<synchronous>, transform_indices = @transform_0, window_bounds = array<i64: 2, 8, 32>}, {pipeline_mode = #tpu.pipeline_mode<synchronous>, transform_indices = @transform_1, window_bounds = array<i64: 2, 8>}, {pipeline_mode = #tpu.pipeline_mode<synchronous>, transform_indices = @transform_2, window_bounds = array<i64: 1, 32>}, {pipeline_mode = #tpu.pipeline_mode<synchronous>, transform_indices = @transform_3, window_bounds = array<i64: 1, 32>}, {pipeline_mode = #tpu.pipeline_mode<synchronous>, transform_indices = @transform_4, window_bounds = array<i64: 2, 32, 96>}, {pipeline_mode = #tpu.pipeline_mode<synchronous>, transform_indices = @transform_5, window_bounds = array<i64: 2, 1, 96>}, {pipeline_mode = #tpu.pipeline_mode<synchronous>, transform_indices = @transform_6, window_bounds = array<i64: 2, 32, 32>}, {pipeline_mode = #tpu.pipeline_mode<synchronous>, transform_indices = @transform_7, window_bounds = array<i64: 2, 1, 32>}, {pipeline_mode = #tpu.pipeline_mode<synchronous>, transform_indices = @transform_8, window_bounds = array<i64: 2, 1, 32>}, {pipeline_mode = #tpu.pipeline_mode<synchronous>, transform_indices = @transform_9, window_bounds = array<i64: 2, 1, 32>}, {pipeline_mode = #tpu.pipeline_mode<synchronous>, transform_indices = @transform_10, window_bounds = array<i64: 2, 32, 64>}, {pipeline_mode = #tpu.pipeline_mode<synchronous>, transform_indices = @transform_11, window_bounds = array<i64: 2, 1, 64>}, {pipeline_mode = #tpu.pipeline_mode<synchronous>, transform_indices = @transform_12, window_bounds = array<i64: 2, 64, 32>}, {pipeline_mode = #tpu.pipeline_mode<synchronous>, transform_indices = @transform_13, window_bounds = array<i64: 2, 1, 32>}, {pipeline_mode = #tpu.pipeline_mode<synchronous>, transform_indices = @transform_14, window_bounds = array<i64: 2, 1, 32>}, {pipeline_mode = #tpu.pipeline_mode<synchronous>, transform_indices = @transform_15, window_bounds = array<i64: 2, 1, 32>}, {pipeline_mode = #tpu.pipeline_mode<synchronous>, transform_indices = @transform_16, window_bounds = array<i64: 32, 32>}, {pipeline_mode = #tpu.pipeline_mode<synchronous>, transform_indices = @transform_17, window_bounds = array<i64: 1, 32>}, {pipeline_mode = #tpu.pipeline_mode<synchronous>, transform_indices = @transform_18, window_bounds = array<i64: 1, 32>}, {pipeline_mode = #tpu.pipeline_mode<synchronous>, transform_indices = @transform_19, window_bounds = array<i64: 1, 1>}, {pipeline_mode = #tpu.pipeline_mode<synchronous>, transform_indices = @transform_20, window_bounds = array<i64: 2, 1>}]} {
    %c0 = arith.constant 0 : index
    %c0_0 = arith.constant 0 : index
    %c0_1 = arith.constant 0 : index
    %0 = vector.load %arg1[%c0, %c0_0, %c0_1] : memref<2x8x32xf32, #tpu.memory_space<vmem>>, vector<2x8x32xf32>
    %1 = vector.shape_cast %0 : vector<2x8x32xf32> to vector<16x32xf32>
    %c0_2 = arith.constant 0 : index
    %c0_3 = arith.constant 0 : index
    %2 = vector.load %arg3[%c0_2, %c0_3] : memref<1x32xf32, #tpu.memory_space<vmem>>, vector<1x32xf32>
    %c0_4 = arith.constant 0 : index
    %c0_5 = arith.constant 0 : index
    %3 = vector.load %arg4[%c0_4, %c0_5] : memref<1x32xf32, #tpu.memory_space<vmem>>, vector<1x32xf32>
    %cst = arith.constant dense<0.000000e+00> : vector<16xf32>
    %4 = vector.multi_reduction <add>, %1, %cst [1] : vector<16x32xf32> to vector<16xf32>
    %5 = vector.shape_cast %4 : vector<16xf32> to vector<16x1xf32>
    %cst_6 = arith.constant 3.200000e+01 : f32
    %6 = vector.broadcast %cst_6 : f32 to vector<16x1xf32>
    %7 = arith.divf %5, %6 : vector<16x1xf32>
    %8 = vector.broadcast %7 : vector<16x1xf32> to vector<16x32xf32>
    %9 = arith.subf %1, %8 : vector<16x32xf32>
    %10 = arith.mulf %9, %9 : vector<16x32xf32>
    %cst_7 = arith.constant dense<0.000000e+00> : vector<16xf32>
    %11 = vector.multi_reduction <add>, %10, %cst_7 [1] : vector<16x32xf32> to vector<16xf32>
    %12 = vector.shape_cast %11 : vector<16xf32> to vector<16x1xf32>
    %cst_8 = arith.constant 3.200000e+01 : f32
    %13 = vector.broadcast %cst_8 : f32 to vector<16x1xf32>
    %14 = arith.divf %12, %13 : vector<16x1xf32>
    %15 = vector.broadcast %7 : vector<16x1xf32> to vector<16x32xf32>
    %16 = arith.subf %1, %15 : vector<16x32xf32>
    %cst_9 = arith.constant 9.99999996E-13 : f32
    %17 = vector.broadcast %cst_9 : f32 to vector<16x1xf32>
    %18 = arith.addf %14, %17 : vector<16x1xf32>
    %19 = math.rsqrt %18 : vector<16x1xf32>
    %20 = vector.broadcast %19 : vector<16x1xf32> to vector<16x32xf32>
    %21 = arith.mulf %16, %20 : vector<16x32xf32>
    %22 = vector.broadcast %2 : vector<1x32xf32> to vector<16x32xf32>
    %23 = arith.mulf %21, %22 : vector<16x32xf32>
    %24 = vector.broadcast %3 : vector<1x32xf32> to vector<16x32xf32>
    %25 = arith.addf %23, %24 : vector<16x32xf32>
    %c0_10 = arith.constant 0 : index
    %c0_11 = arith.constant 0 : index
    %26 = vector.load %arg2[%c0_10, %c0_11] : memref<2x8xf32, #tpu.memory_space<vmem>>, vector<2x8xf32>
    %27 = vector.shape_cast %26 : vector<2x8xf32> to vector<2x1x8xf32>
    %28 = arith.truncf %25 : vector<16x32xf32> to vector<16x32xbf16>
    %c0_12 = arith.constant 0 : index
    %c0_13 = arith.constant 0 : index
    %c0_14 = arith.constant 0 : index
    %29 = vector.load %arg5[%c0_12, %c0_13, %c0_14] : memref<2x32x96xbf16, #tpu.memory_space<vmem>>, vector<1x32x96xbf16>
    %30 = vector.shape_cast %29 : vector<1x32x96xbf16> to vector<32x96xbf16>
    %cst_15 = arith.constant dense<0.000000e+00> : vector<16x96xf32>
    %31 = tpu.matmul %28, %30, %cst_15 {dimension_numbers = #tpu.dot_dimension_numbers<[1], [0], [0], [1], [0, 0, 1, 1], [], []>} : vector<16x32xbf16>, vector<32x96xbf16>, vector<16x96xf32> -> vector<16x96xf32>
    %c0_16 = arith.constant 0 : index
    %c0_17 = arith.constant 0 : index
    %c0_18 = arith.constant 0 : index
    %32 = vector.load %arg6[%c0_16, %c0_17, %c0_18] : memref<2x1x96xf32, #tpu.memory_space<vmem>>, vector<1x1x96xf32>
    %33 = vector.shape_cast %32 : vector<1x1x96xf32> to vector<1x96xf32>
    %34 = vector.broadcast %33 : vector<1x96xf32> to vector<16x96xf32>
    %35 = arith.addf %31, %34 : vector<16x96xf32>
    %36 = vector.extract_strided_slice %35 {offsets = [0, 0], sizes = [16, 32], strides = [1, 1]} : vector<16x96xf32> to vector<16x32xf32>
    %cst_19 = arith.constant 0.353553385 : f32
    %37 = vector.broadcast %cst_19 : f32 to vector<16x32xf32>
    %38 = arith.mulf %36, %37 : vector<16x32xf32>
    %39 = arith.truncf %38 : vector<16x32xf32> to vector<16x32xbf16>
    %40 = vector.shape_cast %39 : vector<16x32xbf16> to vector<2x8x32xbf16>
    %41 = vector.extract_strided_slice %35 {offsets = [0, 32], sizes = [16, 32], strides = [1, 1]} : vector<16x96xf32> to vector<16x32xf32>
    %42 = arith.truncf %41 : vector<16x32xf32> to vector<16x32xbf16>
    %43 = vector.shape_cast %42 : vector<16x32xbf16> to vector<2x8x32xbf16>
    %44 = vector.extract_strided_slice %35 {offsets = [0, 64], sizes = [16, 32], strides = [1, 1]} : vector<16x96xf32> to vector<16x32xf32>
    %45 = arith.truncf %44 : vector<16x32xf32> to vector<16x32xbf16>
    %46 = vector.shape_cast %45 : vector<16x32xbf16> to vector<2x8x32xbf16>
    %47 = vector.extract_strided_slice %40 {offsets = [0, 0, 0], sizes = [2, 8, 8], strides = [1, 1, 1]} : vector<2x8x32xbf16> to vector<2x8x8xbf16>
    %48 = vector.extract_strided_slice %43 {offsets = [0, 0, 0], sizes = [2, 8, 8], strides = [1, 1, 1]} : vector<2x8x32xbf16> to vector<2x8x8xbf16>
    %49 = vector.extract_strided_slice %46 {offsets = [0, 0, 0], sizes = [2, 8, 8], strides = [1, 1, 1]} : vector<2x8x32xbf16> to vector<2x8x8xbf16>
    "tpu.trace_start"() <{level = 10 : i32, message = "bqd,bkd->bqk"}> : () -> ()
    %cst_20 = arith.constant dense<0.000000e+00> : vector<2x8x8xf32>
    %50 = tpu.matmul %47, %48, %cst_20 {dimension_numbers = #tpu.dot_dimension_numbers<[2], [2], [1], [1], [0, 0, 0, 1, 1, 1], [0], [0]>} : vector<2x8x8xbf16>, vector<2x8x8xbf16>, vector<2x8x8xf32> -> vector<2x8x8xf32>
    "tpu.trace_stop"() : () -> ()
    %51 = vector.broadcast %27 : vector<2x1x8xf32> to vector<2x8x8xf32>
    %52 = arith.addf %50, %51 : vector<2x8x8xf32>
    %cst_21 = arith.constant dense<0xFF800000> : vector<2x8xf32>
    %53 = vector.multi_reduction <maximumf>, %52, %cst_21 [2] : vector<2x8x8xf32> to vector<2x8xf32>
    %54 = vector.shape_cast %53 : vector<2x8xf32> to vector<2x8x1xf32>
    %55 = vector.broadcast %54 : vector<2x8x1xf32> to vector<2x8x8xf32>
    %56 = arith.subf %52, %55 : vector<2x8x8xf32>
    %57 = math.exp %56 : vector<2x8x8xf32>
    %cst_22 = arith.constant dense<0.000000e+00> : vector<2x8xf32>
    %58 = vector.multi_reduction <add>, %57, %cst_22 [2] : vector<2x8x8xf32> to vector<2x8xf32>
    %59 = vector.shape_cast %58 : vector<2x8xf32> to vector<2x8x1xf32>
    %60 = tpu.reciprocal %59 {approx = true} : vector<2x8x1xf32> -> vector<2x8x1xf32>
    %61 = vector.broadcast %60 : vector<2x8x1xf32> to vector<2x8x8xf32>
    %62 = arith.mulf %57, %61 : vector<2x8x8xf32>
    %63 = arith.truncf %62 : vector<2x8x8xf32> to vector<2x8x8xbf16>
    "tpu.trace_start"() <{level = 10 : i32, message = "bqk,bkd->bqd"}> : () -> ()
    %cst_23 = arith.constant dense<0.000000e+00> : vector<2x8x8xf32>
    %64 = tpu.matmul %63, %49, %cst_23 {dimension_numbers = #tpu.dot_dimension_numbers<[2], [1], [1], [2], [0, 0, 0, 1, 1, 2], [0], [0]>} : vector<2x8x8xbf16>, vector<2x8x8xbf16>, vector<2x8x8xf32> -> vector<2x8x8xf32>
    "tpu.trace_stop"() : () -> ()
    %65 = vector.extract_strided_slice %40 {offsets = [0, 0, 8], sizes = [2, 8, 8], strides = [1, 1, 1]} : vector<2x8x32xbf16> to vector<2x8x8xbf16>
    %66 = vector.extract_strided_slice %43 {offsets = [0, 0, 8], sizes = [2, 8, 8], strides = [1, 1, 1]} : vector<2x8x32xbf16> to vector<2x8x8xbf16>
    %67 = vector.extract_strided_slice %46 {offsets = [0, 0, 8], sizes = [2, 8, 8], strides = [1, 1, 1]} : vector<2x8x32xbf16> to vector<2x8x8xbf16>
    "tpu.trace_start"() <{level = 10 : i32, message = "bqd,bkd->bqk"}> : () -> ()
    %cst_24 = arith.constant dense<0.000000e+00> : vector<2x8x8xf32>
    %68 = tpu.matmul %65, %66, %cst_24 {dimension_numbers = #tpu.dot_dimension_numbers<[2], [2], [1], [1], [0, 0, 0, 1, 1, 1], [0], [0]>} : vector<2x8x8xbf16>, vector<2x8x8xbf16>, vector<2x8x8xf32> -> vector<2x8x8xf32>
    "tpu.trace_stop"() : () -> ()
    %69 = vector.broadcast %27 : vector<2x1x8xf32> to vector<2x8x8xf32>
    %70 = arith.addf %68, %69 : vector<2x8x8xf32>
    %cst_25 = arith.constant dense<0xFF800000> : vector<2x8xf32>
    %71 = vector.multi_reduction <maximumf>, %70, %cst_25 [2] : vector<2x8x8xf32> to vector<2x8xf32>
    %72 = vector.shape_cast %71 : vector<2x8xf32> to vector<2x8x1xf32>
    %73 = vector.broadcast %72 : vector<2x8x1xf32> to vector<2x8x8xf32>
    %74 = arith.subf %70, %73 : vector<2x8x8xf32>
    %75 = math.exp %74 : vector<2x8x8xf32>
    %cst_26 = arith.constant dense<0.000000e+00> : vector<2x8xf32>
    %76 = vector.multi_reduction <add>, %75, %cst_26 [2] : vector<2x8x8xf32> to vector<2x8xf32>
    %77 = vector.shape_cast %76 : vector<2x8xf32> to vector<2x8x1xf32>
    %78 = tpu.reciprocal %77 {approx = true} : vector<2x8x1xf32> -> vector<2x8x1xf32>
    %79 = vector.broadcast %78 : vector<2x8x1xf32> to vector<2x8x8xf32>
    %80 = arith.mulf %75, %79 : vector<2x8x8xf32>
    %81 = arith.truncf %80 : vector<2x8x8xf32> to vector<2x8x8xbf16>
    "tpu.trace_start"() <{level = 10 : i32, message = "bqk,bkd->bqd"}> : () -> ()
    %cst_27 = arith.constant dense<0.000000e+00> : vector<2x8x8xf32>
    %82 = tpu.matmul %81, %67, %cst_27 {dimension_numbers = #tpu.dot_dimension_numbers<[2], [1], [1], [2], [0, 0, 0, 1, 1, 2], [0], [0]>} : vector<2x8x8xbf16>, vector<2x8x8xbf16>, vector<2x8x8xf32> -> vector<2x8x8xf32>
    "tpu.trace_stop"() : () -> ()
    %83 = vector.extract_strided_slice %40 {offsets = [0, 0, 16], sizes = [2, 8, 8], strides = [1, 1, 1]} : vector<2x8x32xbf16> to vector<2x8x8xbf16>
    %84 = vector.extract_strided_slice %43 {offsets = [0, 0, 16], sizes = [2, 8, 8], strides = [1, 1, 1]} : vector<2x8x32xbf16> to vector<2x8x8xbf16>
    %85 = vector.extract_strided_slice %46 {offsets = [0, 0, 16], sizes = [2, 8, 8], strides = [1, 1, 1]} : vector<2x8x32xbf16> to vector<2x8x8xbf16>
    "tpu.trace_start"() <{level = 10 : i32, message = "bqd,bkd->bqk"}> : () -> ()
    %cst_28 = arith.constant dense<0.000000e+00> : vector<2x8x8xf32>
    %86 = tpu.matmul %83, %84, %cst_28 {dimension_numbers = #tpu.dot_dimension_numbers<[2], [2], [1], [1], [0, 0, 0, 1, 1, 1], [0], [0]>} : vector<2x8x8xbf16>, vector<2x8x8xbf16>, vector<2x8x8xf32> -> vector<2x8x8xf32>
    "tpu.trace_stop"() : () -> ()
    %87 = vector.broadcast %27 : vector<2x1x8xf32> to vector<2x8x8xf32>
    %88 = arith.addf %86, %87 : vector<2x8x8xf32>
    %cst_29 = arith.constant dense<0xFF800000> : vector<2x8xf32>
    %89 = vector.multi_reduction <maximumf>, %88, %cst_29 [2] : vector<2x8x8xf32> to vector<2x8xf32>
    %90 = vector.shape_cast %89 : vector<2x8xf32> to vector<2x8x1xf32>
    %91 = vector.broadcast %90 : vector<2x8x1xf32> to vector<2x8x8xf32>
    %92 = arith.subf %88, %91 : vector<2x8x8xf32>
    %93 = math.exp %92 : vector<2x8x8xf32>
    %cst_30 = arith.constant dense<0.000000e+00> : vector<2x8xf32>
    %94 = vector.multi_reduction <add>, %93, %cst_30 [2] : vector<2x8x8xf32> to vector<2x8xf32>
    %95 = vector.shape_cast %94 : vector<2x8xf32> to vector<2x8x1xf32>
    %96 = tpu.reciprocal %95 {approx = true} : vector<2x8x1xf32> -> vector<2x8x1xf32>
    %97 = vector.broadcast %96 : vector<2x8x1xf32> to vector<2x8x8xf32>
    %98 = arith.mulf %93, %97 : vector<2x8x8xf32>
    %99 = arith.truncf %98 : vector<2x8x8xf32> to vector<2x8x8xbf16>
    "tpu.trace_start"() <{level = 10 : i32, message = "bqk,bkd->bqd"}> : () -> ()
    %cst_31 = arith.constant dense<0.000000e+00> : vector<2x8x8xf32>
    %100 = tpu.matmul %99, %85, %cst_31 {dimension_numbers = #tpu.dot_dimension_numbers<[2], [1], [1], [2], [0, 0, 0, 1, 1, 2], [0], [0]>} : vector<2x8x8xbf16>, vector<2x8x8xbf16>, vector<2x8x8xf32> -> vector<2x8x8xf32>
    "tpu.trace_stop"() : () -> ()
    %101 = vector.extract_strided_slice %40 {offsets = [0, 0, 24], sizes = [2, 8, 8], strides = [1, 1, 1]} : vector<2x8x32xbf16> to vector<2x8x8xbf16>
    %102 = vector.extract_strided_slice %43 {offsets = [0, 0, 24], sizes = [2, 8, 8], strides = [1, 1, 1]} : vector<2x8x32xbf16> to vector<2x8x8xbf16>
    %103 = vector.extract_strided_slice %46 {offsets = [0, 0, 24], sizes = [2, 8, 8], strides = [1, 1, 1]} : vector<2x8x32xbf16> to vector<2x8x8xbf16>
    "tpu.trace_start"() <{level = 10 : i32, message = "bqd,bkd->bqk"}> : () -> ()
    %cst_32 = arith.constant dense<0.000000e+00> : vector<2x8x8xf32>
    %104 = tpu.matmul %101, %102, %cst_32 {dimension_numbers = #tpu.dot_dimension_numbers<[2], [2], [1], [1], [0, 0, 0, 1, 1, 1], [0], [0]>} : vector<2x8x8xbf16>, vector<2x8x8xbf16>, vector<2x8x8xf32> -> vector<2x8x8xf32>
    "tpu.trace_stop"() : () -> ()
    %105 = vector.broadcast %27 : vector<2x1x8xf32> to vector<2x8x8xf32>
    %106 = arith.addf %104, %105 : vector<2x8x8xf32>
    %cst_33 = arith.constant dense<0xFF800000> : vector<2x8xf32>
    %107 = vector.multi_reduction <maximumf>, %106, %cst_33 [2] : vector<2x8x8xf32> to vector<2x8xf32>
    %108 = vector.shape_cast %107 : vector<2x8xf32> to vector<2x8x1xf32>
    %109 = vector.broadcast %108 : vector<2x8x1xf32> to vector<2x8x8xf32>
    %110 = arith.subf %106, %109 : vector<2x8x8xf32>
    %111 = math.exp %110 : vector<2x8x8xf32>
    %cst_34 = arith.constant dense<0.000000e+00> : vector<2x8xf32>
    %112 = vector.multi_reduction <add>, %111, %cst_34 [2] : vector<2x8x8xf32> to vector<2x8xf32>
    %113 = vector.shape_cast %112 : vector<2x8xf32> to vector<2x8x1xf32>
    %114 = tpu.reciprocal %113 {approx = true} : vector<2x8x1xf32> -> vector<2x8x1xf32>
    %115 = vector.broadcast %114 : vector<2x8x1xf32> to vector<2x8x8xf32>
    %116 = arith.mulf %111, %115 : vector<2x8x8xf32>
    %117 = arith.truncf %116 : vector<2x8x8xf32> to vector<2x8x8xbf16>
    "tpu.trace_start"() <{level = 10 : i32, message = "bqk,bkd->bqd"}> : () -> ()
    %cst_35 = arith.constant dense<0.000000e+00> : vector<2x8x8xf32>
    %118 = tpu.matmul %117, %103, %cst_35 {dimension_numbers = #tpu.dot_dimension_numbers<[2], [1], [1], [2], [0, 0, 0, 1, 1, 2], [0], [0]>} : vector<2x8x8xbf16>, vector<2x8x8xbf16>, vector<2x8x8xf32> -> vector<2x8x8xf32>
    "tpu.trace_stop"() : () -> ()
    %119 = tpu.concatenate %64, %82, %100, %118 in 2 : vector<2x8x8xf32>, vector<2x8x8xf32>, vector<2x8x8xf32>, vector<2x8x8xf32> -> vector<2x8x32xf32>
    %120 = vector.shape_cast %119 : vector<2x8x32xf32> to vector<16x32xf32>
    %121 = arith.truncf %120 : vector<16x32xf32> to vector<16x32xbf16>
    %c0_36 = arith.constant 0 : index
    %c0_37 = arith.constant 0 : index
    %c0_38 = arith.constant 0 : index
    %122 = vector.load %arg7[%c0_36, %c0_37, %c0_38] : memref<2x32x32xbf16, #tpu.memory_space<vmem>>, vector<1x32x32xbf16>
    %123 = vector.shape_cast %122 : vector<1x32x32xbf16> to vector<32x32xbf16>
    %cst_39 = arith.constant dense<0.000000e+00> : vector<16x32xf32>
    %124 = tpu.matmul %121, %123, %cst_39 {dimension_numbers = #tpu.dot_dimension_numbers<[1], [0], [0], [1], [0, 0, 1, 1], [], []>} : vector<16x32xbf16>, vector<32x32xbf16>, vector<16x32xf32> -> vector<16x32xf32>
    %c0_40 = arith.constant 0 : index
    %c0_41 = arith.constant 0 : index
    %c0_42 = arith.constant 0 : index
    %125 = vector.load %arg8[%c0_40, %c0_41, %c0_42] : memref<2x1x32xf32, #tpu.memory_space<vmem>>, vector<1x1x32xf32>
    %126 = vector.shape_cast %125 : vector<1x1x32xf32> to vector<1x32xf32>
    %127 = vector.broadcast %126 : vector<1x32xf32> to vector<16x32xf32>
    %128 = arith.addf %124, %127 : vector<16x32xf32>
    %129 = arith.addf %25, %128 : vector<16x32xf32>
    %c0_43 = arith.constant 0 : index
    %c0_44 = arith.constant 0 : index
    %c0_45 = arith.constant 0 : index
    %130 = vector.load %arg9[%c0_43, %c0_44, %c0_45] : memref<2x1x32xf32, #tpu.memory_space<vmem>>, vector<1x1x32xf32>
    %131 = vector.shape_cast %130 : vector<1x1x32xf32> to vector<1x32xf32>
    %c0_46 = arith.constant 0 : index
    %c0_47 = arith.constant 0 : index
    %c0_48 = arith.constant 0 : index
    %132 = vector.load %arg10[%c0_46, %c0_47, %c0_48] : memref<2x1x32xf32, #tpu.memory_space<vmem>>, vector<1x1x32xf32>
    %133 = vector.shape_cast %132 : vector<1x1x32xf32> to vector<1x32xf32>
    %cst_49 = arith.constant dense<0.000000e+00> : vector<16xf32>
    %134 = vector.multi_reduction <add>, %129, %cst_49 [1] : vector<16x32xf32> to vector<16xf32>
    %135 = vector.shape_cast %134 : vector<16xf32> to vector<16x1xf32>
    %cst_50 = arith.constant 3.200000e+01 : f32
    %136 = vector.broadcast %cst_50 : f32 to vector<16x1xf32>
    %137 = arith.divf %135, %136 : vector<16x1xf32>
    %138 = vector.broadcast %137 : vector<16x1xf32> to vector<16x32xf32>
    %139 = arith.subf %129, %138 : vector<16x32xf32>
    %140 = arith.mulf %139, %139 : vector<16x32xf32>
    %cst_51 = arith.constant dense<0.000000e+00> : vector<16xf32>
    %141 = vector.multi_reduction <add>, %140, %cst_51 [1] : vector<16x32xf32> to vector<16xf32>
    %142 = vector.shape_cast %141 : vector<16xf32> to vector<16x1xf32>
    %cst_52 = arith.constant 3.200000e+01 : f32
    %143 = vector.broadcast %cst_52 : f32 to vector<16x1xf32>
    %144 = arith.divf %142, %143 : vector<16x1xf32>
    %145 = vector.broadcast %137 : vector<16x1xf32> to vector<16x32xf32>
    %146 = arith.subf %129, %145 : vector<16x32xf32>
    %cst_53 = arith.constant 9.99999996E-13 : f32
    %147 = vector.broadcast %cst_53 : f32 to vector<16x1xf32>
    %148 = arith.addf %144, %147 : vector<16x1xf32>
    %149 = math.rsqrt %148 : vector<16x1xf32>
    %150 = vector.broadcast %149 : vector<16x1xf32> to vector<16x32xf32>
    %151 = arith.mulf %146, %150 : vector<16x32xf32>
    %152 = vector.broadcast %131 : vector<1x32xf32> to vector<16x32xf32>
    %153 = arith.mulf %151, %152 : vector<16x32xf32>
    %154 = vector.broadcast %133 : vector<1x32xf32> to vector<16x32xf32>
    %155 = arith.addf %153, %154 : vector<16x32xf32>
    %156 = arith.truncf %155 : vector<16x32xf32> to vector<16x32xbf16>
    %c0_54 = arith.constant 0 : index
    %c0_55 = arith.constant 0 : index
    %c0_56 = arith.constant 0 : index
    %157 = vector.load %arg11[%c0_54, %c0_55, %c0_56] : memref<2x32x64xbf16, #tpu.memory_space<vmem>>, vector<1x32x64xbf16>
    %158 = vector.shape_cast %157 : vector<1x32x64xbf16> to vector<32x64xbf16>
    %cst_57 = arith.constant dense<0.000000e+00> : vector<16x64xf32>
    %159 = tpu.matmul %156, %158, %cst_57 {dimension_numbers = #tpu.dot_dimension_numbers<[1], [0], [0], [1], [0, 0, 1, 1], [], []>} : vector<16x32xbf16>, vector<32x64xbf16>, vector<16x64xf32> -> vector<16x64xf32>
    %c0_58 = arith.constant 0 : index
    %c0_59 = arith.constant 0 : index
    %c0_60 = arith.constant 0 : index
    %160 = vector.load %arg12[%c0_58, %c0_59, %c0_60] : memref<2x1x64xf32, #tpu.memory_space<vmem>>, vector<1x1x64xf32>
    %161 = vector.shape_cast %160 : vector<1x1x64xf32> to vector<1x64xf32>
    %162 = vector.broadcast %161 : vector<1x64xf32> to vector<16x64xf32>
    %163 = arith.addf %159, %162 : vector<16x64xf32>
    %164 = arith.mulf %163, %163 : vector<16x64xf32>
    %165 = arith.mulf %163, %164 : vector<16x64xf32>
    %cst_61 = arith.constant 4.471500e-02 : f32
    %166 = vector.broadcast %cst_61 : f32 to vector<16x64xf32>
    %167 = arith.mulf %166, %165 : vector<16x64xf32>
    %168 = arith.addf %163, %167 : vector<16x64xf32>
    %cst_62 = arith.constant 0.797884583 : f32
    %169 = vector.broadcast %cst_62 : f32 to vector<16x64xf32>
    %170 = arith.mulf %169, %168 : vector<16x64xf32>
    %171 = math.tanh %170 : vector<16x64xf32>
    %cst_63 = arith.constant 1.000000e+00 : f32
    %172 = vector.broadcast %cst_63 : f32 to vector<16x64xf32>
    %173 = arith.addf %172, %171 : vector<16x64xf32>
    %cst_64 = arith.constant 5.000000e-01 : f32
    %174 = vector.broadcast %cst_64 : f32 to vector<16x64xf32>
    %175 = arith.mulf %174, %173 : vector<16x64xf32>
    %176 = arith.mulf %163, %175 : vector<16x64xf32>
    %177 = arith.truncf %176 : vector<16x64xf32> to vector<16x64xbf16>
    %c0_65 = arith.constant 0 : index
    %c0_66 = arith.constant 0 : index
    %c0_67 = arith.constant 0 : index
    %178 = vector.load %arg13[%c0_65, %c0_66, %c0_67] : memref<2x64x32xbf16, #tpu.memory_space<vmem>>, vector<1x64x32xbf16>
    %179 = vector.shape_cast %178 : vector<1x64x32xbf16> to vector<64x32xbf16>
    %cst_68 = arith.constant dense<0.000000e+00> : vector<16x32xf32>
    %180 = tpu.matmul %177, %179, %cst_68 {dimension_numbers = #tpu.dot_dimension_numbers<[1], [0], [0], [1], [0, 0, 1, 1], [], []>} : vector<16x64xbf16>, vector<64x32xbf16>, vector<16x32xf32> -> vector<16x32xf32>
    %c0_69 = arith.constant 0 : index
    %c0_70 = arith.constant 0 : index
    %c0_71 = arith.constant 0 : index
    %181 = vector.load %arg14[%c0_69, %c0_70, %c0_71] : memref<2x1x32xf32, #tpu.memory_space<vmem>>, vector<1x1x32xf32>
    %182 = vector.shape_cast %181 : vector<1x1x32xf32> to vector<1x32xf32>
    %183 = vector.broadcast %182 : vector<1x32xf32> to vector<16x32xf32>
    %184 = arith.addf %180, %183 : vector<16x32xf32>
    %185 = arith.addf %155, %184 : vector<16x32xf32>
    %c0_72 = arith.constant 0 : index
    %c0_73 = arith.constant 0 : index
    %c0_74 = arith.constant 0 : index
    %186 = vector.load %arg15[%c0_72, %c0_73, %c0_74] : memref<2x1x32xf32, #tpu.memory_space<vmem>>, vector<1x1x32xf32>
    %187 = vector.shape_cast %186 : vector<1x1x32xf32> to vector<1x32xf32>
    %c0_75 = arith.constant 0 : index
    %c0_76 = arith.constant 0 : index
    %c0_77 = arith.constant 0 : index
    %188 = vector.load %arg16[%c0_75, %c0_76, %c0_77] : memref<2x1x32xf32, #tpu.memory_space<vmem>>, vector<1x1x32xf32>
    %189 = vector.shape_cast %188 : vector<1x1x32xf32> to vector<1x32xf32>
    %cst_78 = arith.constant dense<0.000000e+00> : vector<16xf32>
    %190 = vector.multi_reduction <add>, %185, %cst_78 [1] : vector<16x32xf32> to vector<16xf32>
    %191 = vector.shape_cast %190 : vector<16xf32> to vector<16x1xf32>
    %cst_79 = arith.constant 3.200000e+01 : f32
    %192 = vector.broadcast %cst_79 : f32 to vector<16x1xf32>
    %193 = arith.divf %191, %192 : vector<16x1xf32>
    %194 = vector.broadcast %193 : vector<16x1xf32> to vector<16x32xf32>
    %195 = arith.subf %185, %194 : vector<16x32xf32>
    %196 = arith.mulf %195, %195 : vector<16x32xf32>
    %cst_80 = arith.constant dense<0.000000e+00> : vector<16xf32>
    %197 = vector.multi_reduction <add>, %196, %cst_80 [1] : vector<16x32xf32> to vector<16xf32>
    %198 = vector.shape_cast %197 : vector<16xf32> to vector<16x1xf32>
    %cst_81 = arith.constant 3.200000e+01 : f32
    %199 = vector.broadcast %cst_81 : f32 to vector<16x1xf32>
    %200 = arith.divf %198, %199 : vector<16x1xf32>
    %201 = vector.broadcast %193 : vector<16x1xf32> to vector<16x32xf32>
    %202 = arith.subf %185, %201 : vector<16x32xf32>
    %cst_82 = arith.constant 9.99999996E-13 : f32
    %203 = vector.broadcast %cst_82 : f32 to vector<16x1xf32>
    %204 = arith.addf %200, %203 : vector<16x1xf32>
    %205 = math.rsqrt %204 : vector<16x1xf32>
    %206 = vector.broadcast %205 : vector<16x1xf32> to vector<16x32xf32>
    %207 = arith.mulf %202, %206 : vector<16x32xf32>
    %208 = vector.broadcast %187 : vector<1x32xf32> to vector<16x32xf32>
    %209 = arith.mulf %207, %208 : vector<16x32xf32>
    %210 = vector.broadcast %189 : vector<1x32xf32> to vector<16x32xf32>
    %211 = arith.addf %209, %210 : vector<16x32xf32>
    %212 = arith.truncf %211 : vector<16x32xf32> to vector<16x32xbf16>
    %c1 = arith.constant 1 : index
    %c0_83 = arith.constant 0 : index
    %c0_84 = arith.constant 0 : index
    %213 = vector.load %arg5[%c1, %c0_83, %c0_84] : memref<2x32x96xbf16, #tpu.memory_space<vmem>>, vector<1x32x96xbf16>
    %214 = vector.shape_cast %213 : vector<1x32x96xbf16> to vector<32x96xbf16>
    %cst_85 = arith.constant dense<0.000000e+00> : vector<16x96xf32>
    %215 = tpu.matmul %212, %214, %cst_85 {dimension_numbers = #tpu.dot_dimension_numbers<[1], [0], [0], [1], [0, 0, 1, 1], [], []>} : vector<16x32xbf16>, vector<32x96xbf16>, vector<16x96xf32> -> vector<16x96xf32>
    %c1_86 = arith.constant 1 : index
    %c0_87 = arith.constant 0 : index
    %c0_88 = arith.constant 0 : index
    %216 = vector.load %arg6[%c1_86, %c0_87, %c0_88] : memref<2x1x96xf32, #tpu.memory_space<vmem>>, vector<1x1x96xf32>
    %217 = vector.shape_cast %216 : vector<1x1x96xf32> to vector<1x96xf32>
    %218 = vector.broadcast %217 : vector<1x96xf32> to vector<16x96xf32>
    %219 = arith.addf %215, %218 : vector<16x96xf32>
    %220 = vector.extract_strided_slice %219 {offsets = [0, 0], sizes = [16, 32], strides = [1, 1]} : vector<16x96xf32> to vector<16x32xf32>
    %cst_89 = arith.constant 0.353553385 : f32
    %221 = vector.broadcast %cst_89 : f32 to vector<16x32xf32>
    %222 = arith.mulf %220, %221 : vector<16x32xf32>
    %223 = arith.truncf %222 : vector<16x32xf32> to vector<16x32xbf16>
    %224 = vector.shape_cast %223 : vector<16x32xbf16> to vector<2x8x32xbf16>
    %225 = vector.extract_strided_slice %219 {offsets = [0, 32], sizes = [16, 32], strides = [1, 1]} : vector<16x96xf32> to vector<16x32xf32>
    %226 = arith.truncf %225 : vector<16x32xf32> to vector<16x32xbf16>
    %227 = vector.shape_cast %226 : vector<16x32xbf16> to vector<2x8x32xbf16>
    %228 = vector.extract_strided_slice %219 {offsets = [0, 64], sizes = [16, 32], strides = [1, 1]} : vector<16x96xf32> to vector<16x32xf32>
    %229 = arith.truncf %228 : vector<16x32xf32> to vector<16x32xbf16>
    %230 = vector.shape_cast %229 : vector<16x32xbf16> to vector<2x8x32xbf16>
    %231 = vector.extract_strided_slice %224 {offsets = [0, 0, 0], sizes = [2, 8, 8], strides = [1, 1, 1]} : vector<2x8x32xbf16> to vector<2x8x8xbf16>
    %232 = vector.extract_strided_slice %227 {offsets = [0, 0, 0], sizes = [2, 8, 8], strides = [1, 1, 1]} : vector<2x8x32xbf16> to vector<2x8x8xbf16>
    %233 = vector.extract_strided_slice %230 {offsets = [0, 0, 0], sizes = [2, 8, 8], strides = [1, 1, 1]} : vector<2x8x32xbf16> to vector<2x8x8xbf16>
    "tpu.trace_start"() <{level = 10 : i32, message = "bqd,bkd->bqk"}> : () -> ()
    %cst_90 = arith.constant dense<0.000000e+00> : vector<2x8x8xf32>
    %234 = tpu.matmul %231, %232, %cst_90 {dimension_numbers = #tpu.dot_dimension_numbers<[2], [2], [1], [1], [0, 0, 0, 1, 1, 1], [0], [0]>} : vector<2x8x8xbf16>, vector<2x8x8xbf16>, vector<2x8x8xf32> -> vector<2x8x8xf32>
    "tpu.trace_stop"() : () -> ()
    %235 = vector.broadcast %27 : vector<2x1x8xf32> to vector<2x8x8xf32>
    %236 = arith.addf %234, %235 : vector<2x8x8xf32>
    %cst_91 = arith.constant dense<0xFF800000> : vector<2x8xf32>
    %237 = vector.multi_reduction <maximumf>, %236, %cst_91 [2] : vector<2x8x8xf32> to vector<2x8xf32>
    %238 = vector.shape_cast %237 : vector<2x8xf32> to vector<2x8x1xf32>
    %239 = vector.broadcast %238 : vector<2x8x1xf32> to vector<2x8x8xf32>
    %240 = arith.subf %236, %239 : vector<2x8x8xf32>
    %241 = math.exp %240 : vector<2x8x8xf32>
    %cst_92 = arith.constant dense<0.000000e+00> : vector<2x8xf32>
    %242 = vector.multi_reduction <add>, %241, %cst_92 [2] : vector<2x8x8xf32> to vector<2x8xf32>
    %243 = vector.shape_cast %242 : vector<2x8xf32> to vector<2x8x1xf32>
    %244 = tpu.reciprocal %243 {approx = true} : vector<2x8x1xf32> -> vector<2x8x1xf32>
    %245 = vector.broadcast %244 : vector<2x8x1xf32> to vector<2x8x8xf32>
    %246 = arith.mulf %241, %245 : vector<2x8x8xf32>
    %247 = arith.truncf %246 : vector<2x8x8xf32> to vector<2x8x8xbf16>
    "tpu.trace_start"() <{level = 10 : i32, message = "bqk,bkd->bqd"}> : () -> ()
    %cst_93 = arith.constant dense<0.000000e+00> : vector<2x8x8xf32>
    %248 = tpu.matmul %247, %233, %cst_93 {dimension_numbers = #tpu.dot_dimension_numbers<[2], [1], [1], [2], [0, 0, 0, 1, 1, 2], [0], [0]>} : vector<2x8x8xbf16>, vector<2x8x8xbf16>, vector<2x8x8xf32> -> vector<2x8x8xf32>
    "tpu.trace_stop"() : () -> ()
    %249 = vector.extract_strided_slice %224 {offsets = [0, 0, 8], sizes = [2, 8, 8], strides = [1, 1, 1]} : vector<2x8x32xbf16> to vector<2x8x8xbf16>
    %250 = vector.extract_strided_slice %227 {offsets = [0, 0, 8], sizes = [2, 8, 8], strides = [1, 1, 1]} : vector<2x8x32xbf16> to vector<2x8x8xbf16>
    %251 = vector.extract_strided_slice %230 {offsets = [0, 0, 8], sizes = [2, 8, 8], strides = [1, 1, 1]} : vector<2x8x32xbf16> to vector<2x8x8xbf16>
    "tpu.trace_start"() <{level = 10 : i32, message = "bqd,bkd->bqk"}> : () -> ()
    %cst_94 = arith.constant dense<0.000000e+00> : vector<2x8x8xf32>
    %252 = tpu.matmul %249, %250, %cst_94 {dimension_numbers = #tpu.dot_dimension_numbers<[2], [2], [1], [1], [0, 0, 0, 1, 1, 1], [0], [0]>} : vector<2x8x8xbf16>, vector<2x8x8xbf16>, vector<2x8x8xf32> -> vector<2x8x8xf32>
    "tpu.trace_stop"() : () -> ()
    %253 = vector.broadcast %27 : vector<2x1x8xf32> to vector<2x8x8xf32>
    %254 = arith.addf %252, %253 : vector<2x8x8xf32>
    %cst_95 = arith.constant dense<0xFF800000> : vector<2x8xf32>
    %255 = vector.multi_reduction <maximumf>, %254, %cst_95 [2] : vector<2x8x8xf32> to vector<2x8xf32>
    %256 = vector.shape_cast %255 : vector<2x8xf32> to vector<2x8x1xf32>
    %257 = vector.broadcast %256 : vector<2x8x1xf32> to vector<2x8x8xf32>
    %258 = arith.subf %254, %257 : vector<2x8x8xf32>
    %259 = math.exp %258 : vector<2x8x8xf32>
    %cst_96 = arith.constant dense<0.000000e+00> : vector<2x8xf32>
    %260 = vector.multi_reduction <add>, %259, %cst_96 [2] : vector<2x8x8xf32> to vector<2x8xf32>
    %261 = vector.shape_cast %260 : vector<2x8xf32> to vector<2x8x1xf32>
    %262 = tpu.reciprocal %261 {approx = true} : vector<2x8x1xf32> -> vector<2x8x1xf32>
    %263 = vector.broadcast %262 : vector<2x8x1xf32> to vector<2x8x8xf32>
    %264 = arith.mulf %259, %263 : vector<2x8x8xf32>
    %265 = arith.truncf %264 : vector<2x8x8xf32> to vector<2x8x8xbf16>
    "tpu.trace_start"() <{level = 10 : i32, message = "bqk,bkd->bqd"}> : () -> ()
    %cst_97 = arith.constant dense<0.000000e+00> : vector<2x8x8xf32>
    %266 = tpu.matmul %265, %251, %cst_97 {dimension_numbers = #tpu.dot_dimension_numbers<[2], [1], [1], [2], [0, 0, 0, 1, 1, 2], [0], [0]>} : vector<2x8x8xbf16>, vector<2x8x8xbf16>, vector<2x8x8xf32> -> vector<2x8x8xf32>
    "tpu.trace_stop"() : () -> ()
    %267 = vector.extract_strided_slice %224 {offsets = [0, 0, 16], sizes = [2, 8, 8], strides = [1, 1, 1]} : vector<2x8x32xbf16> to vector<2x8x8xbf16>
    %268 = vector.extract_strided_slice %227 {offsets = [0, 0, 16], sizes = [2, 8, 8], strides = [1, 1, 1]} : vector<2x8x32xbf16> to vector<2x8x8xbf16>
    %269 = vector.extract_strided_slice %230 {offsets = [0, 0, 16], sizes = [2, 8, 8], strides = [1, 1, 1]} : vector<2x8x32xbf16> to vector<2x8x8xbf16>
    "tpu.trace_start"() <{level = 10 : i32, message = "bqd,bkd->bqk"}> : () -> ()
    %cst_98 = arith.constant dense<0.000000e+00> : vector<2x8x8xf32>
    %270 = tpu.matmul %267, %268, %cst_98 {dimension_numbers = #tpu.dot_dimension_numbers<[2], [2], [1], [1], [0, 0, 0, 1, 1, 1], [0], [0]>} : vector<2x8x8xbf16>, vector<2x8x8xbf16>, vector<2x8x8xf32> -> vector<2x8x8xf32>
    "tpu.trace_stop"() : () -> ()
    %271 = vector.broadcast %27 : vector<2x1x8xf32> to vector<2x8x8xf32>
    %272 = arith.addf %270, %271 : vector<2x8x8xf32>
    %cst_99 = arith.constant dense<0xFF800000> : vector<2x8xf32>
    %273 = vector.multi_reduction <maximumf>, %272, %cst_99 [2] : vector<2x8x8xf32> to vector<2x8xf32>
    %274 = vector.shape_cast %273 : vector<2x8xf32> to vector<2x8x1xf32>
    %275 = vector.broadcast %274 : vector<2x8x1xf32> to vector<2x8x8xf32>
    %276 = arith.subf %272, %275 : vector<2x8x8xf32>
    %277 = math.exp %276 : vector<2x8x8xf32>
    %cst_100 = arith.constant dense<0.000000e+00> : vector<2x8xf32>
    %278 = vector.multi_reduction <add>, %277, %cst_100 [2] : vector<2x8x8xf32> to vector<2x8xf32>
    %279 = vector.shape_cast %278 : vector<2x8xf32> to vector<2x8x1xf32>
    %280 = tpu.reciprocal %279 {approx = true} : vector<2x8x1xf32> -> vector<2x8x1xf32>
    %281 = vector.broadcast %280 : vector<2x8x1xf32> to vector<2x8x8xf32>
    %282 = arith.mulf %277, %281 : vector<2x8x8xf32>
    %283 = arith.truncf %282 : vector<2x8x8xf32> to vector<2x8x8xbf16>
    "tpu.trace_start"() <{level = 10 : i32, message = "bqk,bkd->bqd"}> : () -> ()
    %cst_101 = arith.constant dense<0.000000e+00> : vector<2x8x8xf32>
    %284 = tpu.matmul %283, %269, %cst_101 {dimension_numbers = #tpu.dot_dimension_numbers<[2], [1], [1], [2], [0, 0, 0, 1, 1, 2], [0], [0]>} : vector<2x8x8xbf16>, vector<2x8x8xbf16>, vector<2x8x8xf32> -> vector<2x8x8xf32>
    "tpu.trace_stop"() : () -> ()
    %285 = vector.extract_strided_slice %224 {offsets = [0, 0, 24], sizes = [2, 8, 8], strides = [1, 1, 1]} : vector<2x8x32xbf16> to vector<2x8x8xbf16>
    %286 = vector.extract_strided_slice %227 {offsets = [0, 0, 24], sizes = [2, 8, 8], strides = [1, 1, 1]} : vector<2x8x32xbf16> to vector<2x8x8xbf16>
    %287 = vector.extract_strided_slice %230 {offsets = [0, 0, 24], sizes = [2, 8, 8], strides = [1, 1, 1]} : vector<2x8x32xbf16> to vector<2x8x8xbf16>
    "tpu.trace_start"() <{level = 10 : i32, message = "bqd,bkd->bqk"}> : () -> ()
    %cst_102 = arith.constant dense<0.000000e+00> : vector<2x8x8xf32>
    %288 = tpu.matmul %285, %286, %cst_102 {dimension_numbers = #tpu.dot_dimension_numbers<[2], [2], [1], [1], [0, 0, 0, 1, 1, 1], [0], [0]>} : vector<2x8x8xbf16>, vector<2x8x8xbf16>, vector<2x8x8xf32> -> vector<2x8x8xf32>
    "tpu.trace_stop"() : () -> ()
    %289 = vector.broadcast %27 : vector<2x1x8xf32> to vector<2x8x8xf32>
    %290 = arith.addf %288, %289 : vector<2x8x8xf32>
    %cst_103 = arith.constant dense<0xFF800000> : vector<2x8xf32>
    %291 = vector.multi_reduction <maximumf>, %290, %cst_103 [2] : vector<2x8x8xf32> to vector<2x8xf32>
    %292 = vector.shape_cast %291 : vector<2x8xf32> to vector<2x8x1xf32>
    %293 = vector.broadcast %292 : vector<2x8x1xf32> to vector<2x8x8xf32>
    %294 = arith.subf %290, %293 : vector<2x8x8xf32>
    %295 = math.exp %294 : vector<2x8x8xf32>
    %cst_104 = arith.constant dense<0.000000e+00> : vector<2x8xf32>
    %296 = vector.multi_reduction <add>, %295, %cst_104 [2] : vector<2x8x8xf32> to vector<2x8xf32>
    %297 = vector.shape_cast %296 : vector<2x8xf32> to vector<2x8x1xf32>
    %298 = tpu.reciprocal %297 {approx = true} : vector<2x8x1xf32> -> vector<2x8x1xf32>
    %299 = vector.broadcast %298 : vector<2x8x1xf32> to vector<2x8x8xf32>
    %300 = arith.mulf %295, %299 : vector<2x8x8xf32>
    %301 = arith.truncf %300 : vector<2x8x8xf32> to vector<2x8x8xbf16>
    "tpu.trace_start"() <{level = 10 : i32, message = "bqk,bkd->bqd"}> : () -> ()
    %cst_105 = arith.constant dense<0.000000e+00> : vector<2x8x8xf32>
    %302 = tpu.matmul %301, %287, %cst_105 {dimension_numbers = #tpu.dot_dimension_numbers<[2], [1], [1], [2], [0, 0, 0, 1, 1, 2], [0], [0]>} : vector<2x8x8xbf16>, vector<2x8x8xbf16>, vector<2x8x8xf32> -> vector<2x8x8xf32>
    "tpu.trace_stop"() : () -> ()
    %303 = tpu.concatenate %248, %266, %284, %302 in 2 : vector<2x8x8xf32>, vector<2x8x8xf32>, vector<2x8x8xf32>, vector<2x8x8xf32> -> vector<2x8x32xf32>
    %304 = vector.shape_cast %303 : vector<2x8x32xf32> to vector<16x32xf32>
    %305 = arith.truncf %304 : vector<16x32xf32> to vector<16x32xbf16>
    %c1_106 = arith.constant 1 : index
    %c0_107 = arith.constant 0 : index
    %c0_108 = arith.constant 0 : index
    %306 = vector.load %arg7[%c1_106, %c0_107, %c0_108] : memref<2x32x32xbf16, #tpu.memory_space<vmem>>, vector<1x32x32xbf16>
    %307 = vector.shape_cast %306 : vector<1x32x32xbf16> to vector<32x32xbf16>
    %cst_109 = arith.constant dense<0.000000e+00> : vector<16x32xf32>
    %308 = tpu.matmul %305, %307, %cst_109 {dimension_numbers = #tpu.dot_dimension_numbers<[1], [0], [0], [1], [0, 0, 1, 1], [], []>} : vector<16x32xbf16>, vector<32x32xbf16>, vector<16x32xf32> -> vector<16x32xf32>
    %c1_110 = arith.constant 1 : index
    %c0_111 = arith.constant 0 : index
    %c0_112 = arith.constant 0 : index
    %309 = vector.load %arg8[%c1_110, %c0_111, %c0_112] : memref<2x1x32xf32, #tpu.memory_space<vmem>>, vector<1x1x32xf32>
    %310 = vector.shape_cast %309 : vector<1x1x32xf32> to vector<1x32xf32>
    %311 = vector.broadcast %310 : vector<1x32xf32> to vector<16x32xf32>
    %312 = arith.addf %308, %311 : vector<16x32xf32>
    %313 = arith.addf %211, %312 : vector<16x32xf32>
    %c1_113 = arith.constant 1 : index
    %c0_114 = arith.constant 0 : index
    %c0_115 = arith.constant 0 : index
    %314 = vector.load %arg9[%c1_113, %c0_114, %c0_115] : memref<2x1x32xf32, #tpu.memory_space<vmem>>, vector<1x1x32xf32>
    %315 = vector.shape_cast %314 : vector<1x1x32xf32> to vector<1x32xf32>
    %c1_116 = arith.constant 1 : index
    %c0_117 = arith.constant 0 : index
    %c0_118 = arith.constant 0 : index
    %316 = vector.load %arg10[%c1_116, %c0_117, %c0_118] : memref<2x1x32xf32, #tpu.memory_space<vmem>>, vector<1x1x32xf32>
    %317 = vector.shape_cast %316 : vector<1x1x32xf32> to vector<1x32xf32>
    %cst_119 = arith.constant dense<0.000000e+00> : vector<16xf32>
    %318 = vector.multi_reduction <add>, %313, %cst_119 [1] : vector<16x32xf32> to vector<16xf32>
    %319 = vector.shape_cast %318 : vector<16xf32> to vector<16x1xf32>
    %cst_120 = arith.constant 3.200000e+01 : f32
    %320 = vector.broadcast %cst_120 : f32 to vector<16x1xf32>
    %321 = arith.divf %319, %320 : vector<16x1xf32>
    %322 = vector.broadcast %321 : vector<16x1xf32> to vector<16x32xf32>
    %323 = arith.subf %313, %322 : vector<16x32xf32>
    %324 = arith.mulf %323, %323 : vector<16x32xf32>
    %cst_121 = arith.constant dense<0.000000e+00> : vector<16xf32>
    %325 = vector.multi_reduction <add>, %324, %cst_121 [1] : vector<16x32xf32> to vector<16xf32>
    %326 = vector.shape_cast %325 : vector<16xf32> to vector<16x1xf32>
    %cst_122 = arith.constant 3.200000e+01 : f32
    %327 = vector.broadcast %cst_122 : f32 to vector<16x1xf32>
    %328 = arith.divf %326, %327 : vector<16x1xf32>
    %329 = vector.broadcast %321 : vector<16x1xf32> to vector<16x32xf32>
    %330 = arith.subf %313, %329 : vector<16x32xf32>
    %cst_123 = arith.constant 9.99999996E-13 : f32
    %331 = vector.broadcast %cst_123 : f32 to vector<16x1xf32>
    %332 = arith.addf %328, %331 : vector<16x1xf32>
    %333 = math.rsqrt %332 : vector<16x1xf32>
    %334 = vector.broadcast %333 : vector<16x1xf32> to vector<16x32xf32>
    %335 = arith.mulf %330, %334 : vector<16x32xf32>
    %336 = vector.broadcast %315 : vector<1x32xf32> to vector<16x32xf32>
    %337 = arith.mulf %335, %336 : vector<16x32xf32>
    %338 = vector.broadcast %317 : vector<1x32xf32> to vector<16x32xf32>
    %339 = arith.addf %337, %338 : vector<16x32xf32>
    %340 = arith.truncf %339 : vector<16x32xf32> to vector<16x32xbf16>
    %c1_124 = arith.constant 1 : index
    %c0_125 = arith.constant 0 : index
    %c0_126 = arith.constant 0 : index
    %341 = vector.load %arg11[%c1_124, %c0_125, %c0_126] : memref<2x32x64xbf16, #tpu.memory_space<vmem>>, vector<1x32x64xbf16>
    %342 = vector.shape_cast %341 : vector<1x32x64xbf16> to vector<32x64xbf16>
    %cst_127 = arith.constant dense<0.000000e+00> : vector<16x64xf32>
    %343 = tpu.matmul %340, %342, %cst_127 {dimension_numbers = #tpu.dot_dimension_numbers<[1], [0], [0], [1], [0, 0, 1, 1], [], []>} : vector<16x32xbf16>, vector<32x64xbf16>, vector<16x64xf32> -> vector<16x64xf32>
    %c1_128 = arith.constant 1 : index
    %c0_129 = arith.constant 0 : index
    %c0_130 = arith.constant 0 : index
    %344 = vector.load %arg12[%c1_128, %c0_129, %c0_130] : memref<2x1x64xf32, #tpu.memory_space<vmem>>, vector<1x1x64xf32>
    %345 = vector.shape_cast %344 : vector<1x1x64xf32> to vector<1x64xf32>
    %346 = vector.broadcast %345 : vector<1x64xf32> to vector<16x64xf32>
    %347 = arith.addf %343, %346 : vector<16x64xf32>
    %348 = arith.mulf %347, %347 : vector<16x64xf32>
    %349 = arith.mulf %347, %348 : vector<16x64xf32>
    %cst_131 = arith.constant 4.471500e-02 : f32
    %350 = vector.broadcast %cst_131 : f32 to vector<16x64xf32>
    %351 = arith.mulf %350, %349 : vector<16x64xf32>
    %352 = arith.addf %347, %351 : vector<16x64xf32>
    %cst_132 = arith.constant 0.797884583 : f32
    %353 = vector.broadcast %cst_132 : f32 to vector<16x64xf32>
    %354 = arith.mulf %353, %352 : vector<16x64xf32>
    %355 = math.tanh %354 : vector<16x64xf32>
    %cst_133 = arith.constant 1.000000e+00 : f32
    %356 = vector.broadcast %cst_133 : f32 to vector<16x64xf32>
    %357 = arith.addf %356, %355 : vector<16x64xf32>
    %cst_134 = arith.constant 5.000000e-01 : f32
    %358 = vector.broadcast %cst_134 : f32 to vector<16x64xf32>
    %359 = arith.mulf %358, %357 : vector<16x64xf32>
    %360 = arith.mulf %347, %359 : vector<16x64xf32>
    %361 = arith.truncf %360 : vector<16x64xf32> to vector<16x64xbf16>
    %c1_135 = arith.constant 1 : index
    %c0_136 = arith.constant 0 : index
    %c0_137 = arith.constant 0 : index
    %362 = vector.load %arg13[%c1_135, %c0_136, %c0_137] : memref<2x64x32xbf16, #tpu.memory_space<vmem>>, vector<1x64x32xbf16>
    %363 = vector.shape_cast %362 : vector<1x64x32xbf16> to vector<64x32xbf16>
    %cst_138 = arith.constant dense<0.000000e+00> : vector<16x32xf32>
    %364 = tpu.matmul %361, %363, %cst_138 {dimension_numbers = #tpu.dot_dimension_numbers<[1], [0], [0], [1], [0, 0, 1, 1], [], []>} : vector<16x64xbf16>, vector<64x32xbf16>, vector<16x32xf32> -> vector<16x32xf32>
    %c1_139 = arith.constant 1 : index
    %c0_140 = arith.constant 0 : index
    %c0_141 = arith.constant 0 : index
    %365 = vector.load %arg14[%c1_139, %c0_140, %c0_141] : memref<2x1x32xf32, #tpu.memory_space<vmem>>, vector<1x1x32xf32>
    %366 = vector.shape_cast %365 : vector<1x1x32xf32> to vector<1x32xf32>
    %367 = vector.broadcast %366 : vector<1x32xf32> to vector<16x32xf32>
    %368 = arith.addf %364, %367 : vector<16x32xf32>
    %369 = arith.addf %339, %368 : vector<16x32xf32>
    %c1_142 = arith.constant 1 : index
    %c0_143 = arith.constant 0 : index
    %c0_144 = arith.constant 0 : index
    %370 = vector.load %arg15[%c1_142, %c0_143, %c0_144] : memref<2x1x32xf32, #tpu.memory_space<vmem>>, vector<1x1x32xf32>
    %371 = vector.shape_cast %370 : vector<1x1x32xf32> to vector<1x32xf32>
    %c1_145 = arith.constant 1 : index
    %c0_146 = arith.constant 0 : index
    %c0_147 = arith.constant 0 : index
    %372 = vector.load %arg16[%c1_145, %c0_146, %c0_147] : memref<2x1x32xf32, #tpu.memory_space<vmem>>, vector<1x1x32xf32>
    %373 = vector.shape_cast %372 : vector<1x1x32xf32> to vector<1x32xf32>
    %cst_148 = arith.constant dense<0.000000e+00> : vector<16xf32>
    %374 = vector.multi_reduction <add>, %369, %cst_148 [1] : vector<16x32xf32> to vector<16xf32>
    %375 = vector.shape_cast %374 : vector<16xf32> to vector<16x1xf32>
    %cst_149 = arith.constant 3.200000e+01 : f32
    %376 = vector.broadcast %cst_149 : f32 to vector<16x1xf32>
    %377 = arith.divf %375, %376 : vector<16x1xf32>
    %378 = vector.broadcast %377 : vector<16x1xf32> to vector<16x32xf32>
    %379 = arith.subf %369, %378 : vector<16x32xf32>
    %380 = arith.mulf %379, %379 : vector<16x32xf32>
    %cst_150 = arith.constant dense<0.000000e+00> : vector<16xf32>
    %381 = vector.multi_reduction <add>, %380, %cst_150 [1] : vector<16x32xf32> to vector<16xf32>
    %382 = vector.shape_cast %381 : vector<16xf32> to vector<16x1xf32>
    %cst_151 = arith.constant 3.200000e+01 : f32
    %383 = vector.broadcast %cst_151 : f32 to vector<16x1xf32>
    %384 = arith.divf %382, %383 : vector<16x1xf32>
    %385 = vector.broadcast %377 : vector<16x1xf32> to vector<16x32xf32>
    %386 = arith.subf %369, %385 : vector<16x32xf32>
    %cst_152 = arith.constant 9.99999996E-13 : f32
    %387 = vector.broadcast %cst_152 : f32 to vector<16x1xf32>
    %388 = arith.addf %384, %387 : vector<16x1xf32>
    %389 = math.rsqrt %388 : vector<16x1xf32>
    %390 = vector.broadcast %389 : vector<16x1xf32> to vector<16x32xf32>
    %391 = arith.mulf %386, %390 : vector<16x32xf32>
    %392 = vector.broadcast %371 : vector<1x32xf32> to vector<16x32xf32>
    %393 = arith.mulf %391, %392 : vector<16x32xf32>
    %394 = vector.broadcast %373 : vector<1x32xf32> to vector<16x32xf32>
    %395 = arith.addf %393, %394 : vector<16x32xf32>
    %396 = vector.shape_cast %395 : vector<16x32xf32> to vector<2x8x32xf32>
    %397 = vector.extract_strided_slice %396 {offsets = [0, 0, 0], sizes = [2, 1, 32], strides = [1, 1, 1]} : vector<2x8x32xf32> to vector<2x1x32xf32>
    %398 = vector.shape_cast %397 : vector<2x1x32xf32> to vector<2x32xf32>
    %399 = arith.truncf %398 : vector<2x32xf32> to vector<2x32xbf16>
    %c0_153 = arith.constant 0 : index
    %c0_154 = arith.constant 0 : index
    %400 = vector.load %arg17[%c0_153, %c0_154] : memref<32x32xbf16, #tpu.memory_space<vmem>>, vector<32x32xbf16>
    %cst_155 = arith.constant dense<0.000000e+00> : vector<2x32xf32>
    %401 = tpu.matmul %399, %400, %cst_155 {dimension_numbers = #tpu.dot_dimension_numbers<[1], [0], [0], [1], [0, 0, 1, 1], [], []>} : vector<2x32xbf16>, vector<32x32xbf16>, vector<2x32xf32> -> vector<2x32xf32>
    %c0_156 = arith.constant 0 : index
    %c0_157 = arith.constant 0 : index
    %402 = vector.load %arg18[%c0_156, %c0_157] : memref<1x32xf32, #tpu.memory_space<vmem>>, vector<1x32xf32>
    %403 = vector.broadcast %402 : vector<1x32xf32> to vector<2x32xf32>
    %404 = arith.addf %401, %403 : vector<2x32xf32>
    %405 = math.tanh %404 : vector<2x32xf32>
    %c0_158 = arith.constant 0 : index
    %c0_159 = arith.constant 0 : index
    %406 = vector.load %arg19[%c0_158, %c0_159] : memref<1x32xf32, #tpu.memory_space<vmem>>, vector<1x32xf32>
    %407 = vector.broadcast %406 : vector<1x32xf32> to vector<2x32xf32>
    %408 = arith.mulf %405, %407 : vector<2x32xf32>
    %cst_160 = arith.constant dense<0.000000e+00> : vector<2xf32>
    %409 = vector.multi_reduction <add>, %408, %cst_160 [1] : vector<2x32xf32> to vector<2xf32>
    %410 = vector.shape_cast %409 : vector<2xf32> to vector<2x1xf32>
    %c0_161 = arith.constant 0 : index
    %c0_162 = arith.constant 0 : index
    %411 = vector.load %arg20[%c0_161, %c0_162] : memref<1x1xf32, #tpu.memory_space<vmem>>, vector<1x1xf32>
    %412 = vector.broadcast %411 : vector<1x1xf32> to vector<2x1xf32>
    %413 = arith.addf %410, %412 : vector<2x1xf32>
    %c0_163 = arith.constant 0 : index
    %c0_164 = arith.constant 0 : index
    %414 = vector.load %arg21[%c0_163, %c0_164] : memref<2x1xf32, #tpu.memory_space<vmem>>, vector<2x1xf32>
    tpu.vector_store %arg21[%c0_163, %c0_164], %413 {strides = array<i32>} : memref<2x1xf32, #tpu.memory_space<vmem>>, vector<2x1xf32>,
    return
  }
  func.func @transform_0(%arg0: i32) -> (i32, i32, i32) {
    %c0_i32 = arith.constant 0 : i32
    %c0_i32_0 = arith.constant 0 : i32
    %c0_i32_1 = arith.constant 0 : i32
    %c0_i32_2 = arith.constant 0 : i32
    return %c0_i32, %c0_i32_0, %c0_i32_1 : i32, i32, i32
  }
  func.func @transform_1(%arg0: i32) -> (i32, i32) {
    %c0_i32 = arith.constant 0 : i32
    %c0_i32_0 = arith.constant 0 : i32
    %c0_i32_1 = arith.constant 0 : i32
    return %c0_i32, %c0_i32_0 : i32, i32
  }
  func.func @transform_2(%arg0: i32) -> (i32, i32) {
    %c0_i32 = arith.constant 0 : i32
    %c0_i32_0 = arith.constant 0 : i32
    %c0_i32_1 = arith.constant 0 : i32
    return %c0_i32, %c0_i32_0 : i32, i32
  }
  func.func @transform_3(%arg0: i32) -> (i32, i32) {
    %c0_i32 = arith.constant 0 : i32
    %c0_i32_0 = arith.constant 0 : i32
    %c0_i32_1 = arith.constant 0 : i32
    return %c0_i32, %c0_i32_0 : i32, i32
  }
  func.func @transform_4(%arg0: i32) -> (i32, i32, i32) {
    %c0_i32 = arith.constant 0 : i32
    %c0_i32_0 = arith.constant 0 : i32
    %c0_i32_1 = arith.constant 0 : i32
    %c0_i32_2 = arith.constant 0 : i32
    return %c0_i32, %c0_i32_0, %c0_i32_1 : i32, i32, i32
  }
  func.func @transform_5(%arg0: i32) -> (i32, i32, i32) {
    %c0_i32 = arith.constant 0 : i32
    %c0_i32_0 = arith.constant 0 : i32
    %c0_i32_1 = arith.constant 0 : i32
    %c0_i32_2 = arith.constant 0 : i32
    return %c0_i32, %c0_i32_0, %c0_i32_1 : i32, i32, i32
  }
  func.func @transform_6(%arg0: i32) -> (i32, i32, i32) {
    %c0_i32 = arith.constant 0 : i32
    %c0_i32_0 = arith.constant 0 : i32
    %c0_i32_1 = arith.constant 0 : i32
    %c0_i32_2 = arith.constant 0 : i32
    return %c0_i32, %c0_i32_0, %c0_i32_1 : i32, i32, i32
  }
  func.func @transform_7(%arg0: i32) -> (i32, i32, i32) {
    %c0_i32 = arith.constant 0 : i32
    %c0_i32_0 = arith.constant 0 : i32
    %c0_i32_1 = arith.constant 0 : i32
    %c0_i32_2 = arith.constant 0 : i32
    return %c0_i32, %c0_i32_0, %c0_i32_1 : i32, i32, i32
  }
  func.func @transform_8(%arg0: i32) -> (i32, i32, i32) {
    %c0_i32 = arith.constant 0 : i32
    %c0_i32_0 = arith.constant 0 : i32
    %c0_i32_1 = arith.constant 0 : i32
    %c0_i32_2 = arith.constant 0 : i32
    return %c0_i32, %c0_i32_0, %c0_i32_1 : i32, i32, i32
  }
  func.func @transform_9(%arg0: i32) -> (i32, i32, i32) {
    %c0_i32 = arith.constant 0 : i32
    %c0_i32_0 = arith.constant 0 : i32
    %c0_i32_1 = arith.constant 0 : i32
    %c0_i32_2 = arith.constant 0 : i32
    return %c0_i32, %c0_i32_0, %c0_i32_1 : i32, i32, i32
  }
  func.func @transform_10(%arg0: i32) -> (i32, i32, i32) {
    %c0_i32 = arith.constant 0 : i32
    %c0_i32_0 = arith.constant 0 : i32
    %c0_i32_1 = arith.constant 0 : i32
    %c0_i32_2 = arith.constant 0 : i32
    return %c0_i32, %c0_i32_0, %c0_i32_1 : i32, i32, i32
  }
  func.func @transform_11(%arg0: i32) -> (i32, i32, i32) {
    %c0_i32 = arith.constant 0 : i32
    %c0_i32_0 = arith.constant 0 : i32
    %c0_i32_1 = arith.constant 0 : i32
    %c0_i32_2 = arith.constant 0 : i32
    return %c0_i32, %c0_i32_0, %c0_i32_1 : i32, i32, i32
  }
  func.func @transform_12(%arg0: i32) -> (i32, i32, i32) {
    %c0_i32 = arith.constant 0 : i32
    %c0_i32_0 = arith.constant 0 : i32
    %c0_i32_1 = arith.constant 0 : i32
    %c0_i32_2 = arith.constant 0 : i32
    return %c0_i32, %c0_i32_0, %c0_i32_1 : i32, i32, i32
  }
  func.func @transform_13(%arg0: i32) -> (i32, i32, i32) {
    %c0_i32 = arith.constant 0 : i32
    %c0_i32_0 = arith.constant 0 : i32
    %c0_i32_1 = arith.constant 0 : i32
    %c0_i32_2 = arith.constant 0 : i32
    return %c0_i32, %c0_i32_0, %c0_i32_1 : i32, i32, i32
  }
  func.func @transform_14(%arg0: i32) -> (i32, i32, i32) {
    %c0_i32 = arith.constant 0 : i32
    %c0_i32_0 = arith.constant 0 : i32
    %c0_i32_1 = arith.constant 0 : i32
    %c0_i32_2 = arith.constant 0 : i32
    return %c0_i32, %c0_i32_0, %c0_i32_1 : i32, i32, i32
  }
  func.func @transform_15(%arg0: i32) -> (i32, i32, i32) {
    %c0_i32 = arith.constant 0 : i32
    %c0_i32_0 = arith.constant 0 : i32
    %c0_i32_1 = arith.constant 0 : i32
    %c0_i32_2 = arith.constant 0 : i32
    return %c0_i32, %c0_i32_0, %c0_i32_1 : i32, i32, i32
  }
  func.func @transform_16(%arg0: i32) -> (i32, i32) {
    %c0_i32 = arith.constant 0 : i32
    %c0_i32_0 = arith.constant 0 : i32
    %c0_i32_1 = arith.constant 0 : i32
    return %c0_i32, %c0_i32_0 : i32, i32
  }
  func.func @transform_17(%arg0: i32) -> (i32, i32) {
    %c0_i32 = arith.constant 0 : i32
    %c0_i32_0 = arith.constant 0 : i32
    %c0_i32_1 = arith.constant 0 : i32
    return %c0_i32, %c0_i32_0 : i32, i32
  }
  func.func @transform_18(%arg0: i32) -> (i32, i32) {
    %c0_i32 = arith.constant 0 : i32
    %c0_i32_0 = arith.constant 0 : i32
    %c0_i32_1 = arith.constant 0 : i32
    return %c0_i32, %c0_i32_0 : i32, i32
  }
  func.func @transform_19(%arg0: i32) -> (i32, i32) {
    %c0_i32 = arith.constant 0 : i32
    %c0_i32_0 = arith.constant 0 : i32
    %c0_i32_1 = arith.constant 0 : i32
    return %c0_i32, %c0_i32_0 : i32, i32
  }
  func.func @transform_20(%arg0: i32) -> (i32, i32) {
    %c0_i32 = arith.constant 0 : i32
    %c0_i32_0 = arith.constant 0 : i32
    %c0_i32_1 = arith.constant 0 : i32
    return %c0_i32, %c0_i32_0 : i32, i32
  }
}

</mosaic_0001>

<llo_original>
// kernel: tpu_custom_call.1
$region0: #{tpu_custom_call.1}
  #allocation0 [shape = 'u32[]', space=smem, size = 0x4, offset = 0x4, fixed_abs, tag = 'smem constant byte address 0x4 - core index']
  #allocation1 [shape = 'u32[144,128]{1,0:T(1,128)}', space=vmem, size = 0x12000, scoped, tag = 'internal scratch']
  #allocation2 [shape = 'f32[1,1]{1,0:T(1,128)S(1)}', space=vmem, size = 0x200, scoped, tag = 'scoped memory for tpu_custom_call.1']
  %s0 = inlined_call_operand.hbm [shape: f32[2,8,32], index: 0, kind: input, shape index: {}]
  %s1 = inlined_call_operand.hbm [shape: f32[2,8], index: 1, kind: input, shape index: {}]
  %s2 = inlined_call_operand.hbm [shape: f32[1,32], index: 2, kind: input, shape index: {}]
  %s3 = inlined_call_operand.hbm [shape: f32[1,32], index: 3, kind: input, shape index: {}]
  %s4 = inlined_call_operand.vmem [shape: bf16[2,32,96], index: 4, kind: input, shape index: {}]
  %s5 = inlined_call_operand.hbm [shape: f32[2,1,96], index: 5, kind: input, shape index: {}]
  %s6 = inlined_call_operand.vmem [shape: bf16[2,32,32], index: 6, kind: input, shape index: {}]
  %s7 = inlined_call_operand.hbm [shape: f32[2,1,32], index: 7, kind: input, shape index: {}]
  %s8 = inlined_call_operand.hbm [shape: f32[2,1,32], index: 8, kind: input, shape index: {}]
  %s9 = inlined_call_operand.vmem [shape: f32[2,1,32], index: 9, kind: input, shape index: {}]
  %s10 = inlined_call_operand.vmem [shape: bf16[2,32,64], index: 10, kind: input, shape index: {}]
  %s11 = inlined_call_operand.vmem [shape: f32[2,1,64], index: 11, kind: input, shape index: {}]
  %s12 = inlined_call_operand.vmem [shape: bf16[2,64,32], index: 12, kind: input, shape index: {}]
  %s13 = inlined_call_operand.vmem [shape: f32[2,1,32], index: 13, kind: input, shape index: {}]
  %s14 = inlined_call_operand.vmem [shape: f32[2,1,32], index: 14, kind: input, shape index: {}]
  %s15 = inlined_call_operand.vmem [shape: f32[2,1,32], index: 15, kind: input, shape index: {}]
  %s16 = inlined_call_operand.vmem [shape: bf16[32,32], index: 16, kind: input, shape index: {}]
  %s17 = inlined_call_operand.vmem [shape: f32[1,32], index: 17, kind: input, shape index: {}]
  %s18 = inlined_call_operand.vmem [shape: f32[1,32], index: 18, kind: input, shape index: {}]
  %s19 = inlined_call_operand.<no memory space> [shape: f32[1,1], index: 19, kind: input, shape index: {}]
  %s20 = inlined_call_operand.vmem [shape: f32[2,1], index: 20, kind: output, shape index: {}]
  %s21 = sld [smem:[#allocation0]]
  $region118: #{tpu_custom_call.1} parent=0
    _
  %s23 = ssub.s32 1, %s21
  %s24 = scalar_select 0, %s23, %s21
  %v25 = vstv %s19
  %26 = vst [vmem:[#allocation2] sm:$0x1] %v25
  $region1: #{tpu_custom_call.1} parent=0
    #allocation3 [shape = 'u8[8192]{0}', space=vmem, size = 0x2000, scoped, tag = 'input window, operand 0, single buffered']
    #allocation4 [shape = 's32[1]{0}', space=sflag, size = 0x4, scoped, tag = 'scoped memory for tpu_custom_call.1']
    #allocation5 [shape = 'u8[1024]{0}', space=vmem, size = 0x400, scoped, tag = 'input window, operand 1, single buffered']
    #allocation6 [shape = 's32[1]{0}', space=sflag, size = 0x4, scoped, tag = 'scoped memory for tpu_custom_call.1']
    #allocation7 [shape = 'u8[512]{0}', space=vmem, size = 0x400, scoped, tag = 'input window, operand 2, single buffered']
    #allocation8 [shape = 'u8[512]{0}', space=vmem, size = 0x400, scoped, tag = 'input window, operand 3, single buffered']
    #allocation9 [shape = 's32[1]{0}', space=sflag, size = 0x4, scoped, tag = 'scoped memory for tpu_custom_call.1']
    #allocation10 [shape = 'u8[1024]{0}', space=vmem, size = 0x400, scoped, tag = 'input window, operand 5, single buffered']
    #allocation11 [shape = 'u8[1024]{0}', space=vmem, size = 0x400, scoped, tag = 'input window, operand 7, single buffered']
    #allocation12 [shape = 's32[1]{0}', space=sflag, size = 0x4, scoped, tag = 'scoped memory for tpu_custom_call.1']
    #allocation13 [shape = 'u8[1024]{0}', space=vmem, size = 0x400, scoped, tag = 'input window, operand 8, single buffered']
    %27 = vsyncpa [#allocation4], 0
    %28 = vsyncpa [#allocation6], 0
    %29 = vsyncpa [#allocation9], 0
    %30 = vsyncpa [#allocation12], 0
    // Predicated region
    $region2: #{tpu_custom_call.1} parent=1 // pred_check
      _
    $region3: #{tpu_custom_call.1} parent=1 // pred_check_branch
      %32 = sbr.rel (0) target = $region5
    $region4: #{tpu_custom_call.1} parent=1 // pred_region
      %s34 = ssub.s32 256, 256
      %35 = vsyncadd [#allocation4], %s34
      %s36 = sshll.u32 [#allocation3], 4
      %s37 = int_to_ptr.vmem [resolvable:$true] %s36
      %42 = dma.hbm_to_vmem [thread:$0]  %s0, 256, %s37, [#allocation4], 128, 128, 8
    $region5: #{tpu_custom_call.1} parent=1 // pred_fallthru
      _
    // Predicated region
    $region6: #{tpu_custom_call.1} parent=1 // pred_check
      _
    $region7: #{tpu_custom_call.1} parent=1 // pred_check_branch
      %44 = sbr.rel (0) target = $region9
    $region8: #{tpu_custom_call.1} parent=1 // pred_region
      %s46 = ssub.s32 32, 32
      %47 = vsyncadd [#allocation6], %s46
      %s49 = sshll.u32 [#allocation5], 4
      %s50 = int_to_ptr.vmem [resolvable:$true] %s49
      %52 = dma.hbm_to_vmem [thread:$0]  %s1, 32, %s50, [#allocation6]
    $region9: #{tpu_custom_call.1} parent=1 // pred_fallthru
      _
    // Predicated region
    $region10: #{tpu_custom_call.1} parent=1 // pred_check
      _
    $region11: #{tpu_custom_call.1} parent=1 // pred_check_branch
      %54 = sbr.rel (0) target = $region13
    $region12: #{tpu_custom_call.1} parent=1 // pred_region
      %s56 = ssub.s32 16, 16
      %57 = vsyncadd [#allocation6], %s56
      %s59 = sshll.u32 [#allocation7], 4
      %s60 = int_to_ptr.vmem [resolvable:$true] %s59
      %62 = dma.hbm_to_vmem [thread:$0]  %s2, 16, %s60, [#allocation6]
    $region13: #{tpu_custom_call.1} parent=1 // pred_fallthru
      _
    // Predicated region
    $region14: #{tpu_custom_call.1} parent=1 // pred_check
      _
    $region15: #{tpu_custom_call.1} parent=1 // pred_check_branch
      %64 = sbr.rel (0) target = $region17
    $region16: #{tpu_custom_call.1} parent=1 // pred_region
      %s66 = ssub.s32 16, 16
      %67 = vsyncadd [#allocation9], %s66
      %s69 = sshll.u32 [#allocation8], 4
      %s70 = int_to_ptr.vmem [resolvable:$true] %s69
      %72 = dma.hbm_to_vmem [thread:$0]  %s3, 16, %s70, [#allocation9]
    $region17: #{tpu_custom_call.1} parent=1 // pred_fallthru
      _
    // Predicated region
    $region18: #{tpu_custom_call.1} parent=1 // pred_check
      _
    $region19: #{tpu_custom_call.1} parent=1 // pred_check_branch
      %74 = sbr.rel (0) target = $region21
    $region20: #{tpu_custom_call.1} parent=1 // pred_region
      _
    $region21: #{tpu_custom_call.1} parent=1 // pred_fallthru
      _
    // Predicated region
    $region22: #{tpu_custom_call.1} parent=1 // pred_check
      _
    $region23: #{tpu_custom_call.1} parent=1 // pred_check_branch
      %76 = sbr.rel (0) target = $region25
    $region24: #{tpu_custom_call.1} parent=1 // pred_region
      %s78 = ssub.s32 32, 32
      %79 = vsyncadd [#allocation9], %s78
      %s80 = sshll.u32 [#allocation10], 4
      %s81 = int_to_ptr.vmem [resolvable:$true] %s80
      %86 = dma.hbm_to_vmem [thread:$0]  %s5, 32, %s81, [#allocation9], 16, 16, 1
    $region25: #{tpu_custom_call.1} parent=1 // pred_fallthru
      _
    // Predicated region
    $region26: #{tpu_custom_call.1} parent=1 // pred_check
      _
    $region27: #{tpu_custom_call.1} parent=1 // pred_check_branch
      %88 = sbr.rel (0) target = $region29
    $region28: #{tpu_custom_call.1} parent=1 // pred_region
      _
    $region29: #{tpu_custom_call.1} parent=1 // pred_fallthru
      _
    // Predicated region
    $region30: #{tpu_custom_call.1} parent=1 // pred_check
      _
    $region31: #{tpu_custom_call.1} parent=1 // pred_check_branch
      %90 = sbr.rel (0) target = $region33
    $region32: #{tpu_custom_call.1} parent=1 // pred_region
      %s92 = ssub.s32 32, 32
      %93 = vsyncadd [#allocation12], %s92
      %s94 = sshll.u32 [#allocation11], 4
      %s95 = int_to_ptr.vmem [resolvable:$true] %s94
      %100 = dma.hbm_to_vmem [thread:$0]  %s7, 32, %s95, [#allocation12], 16, 16, 1
    $region33: #{tpu_custom_call.1} parent=1 // pred_fallthru
      _
    // Predicated region
    $region34: #{tpu_custom_call.1} parent=1 // pred_check
      _
    $region35: #{tpu_custom_call.1} parent=1 // pred_check_branch
      %102 = sbr.rel (0) target = $region37
    $region36: #{tpu_custom_call.1} parent=1 // pred_region
      %s104 = ssub.s32 32, 32
      %105 = vsyncadd [#allocation12], %s104
      %s106 = sshll.u32 [#allocation13], 4
      %s107 = int_to_ptr.vmem [resolvable:$true] %s106
      %112 = dma.hbm_to_vmem [thread:$0]  %s8, 32, %s107, [#allocation12], 16, 16, 1
    $region37: #{tpu_custom_call.1} parent=1 // pred_fallthru
      _
    // Predicated region
    $region38: #{tpu_custom_call.1} parent=1 // pred_check
      _
    $region39: #{tpu_custom_call.1} parent=1 // pred_check_branch
      %114 = sbr.rel (0) target = $region41
    $region40: #{tpu_custom_call.1} parent=1 // pred_region
      _
    $region41: #{tpu_custom_call.1} parent=1 // pred_fallthru
      _
    // Predicated region
    $region42: #{tpu_custom_call.1} parent=1 // pred_check
      _
    $region43: #{tpu_custom_call.1} parent=1 // pred_check_branch
      %116 = sbr.rel (0) target = $region45
    $region44: #{tpu_custom_call.1} parent=1 // pred_region
      _
    $region45: #{tpu_custom_call.1} parent=1 // pred_fallthru
      _
    // Predicated region
    $region46: #{tpu_custom_call.1} parent=1 // pred_check
      _
    $region47: #{tpu_custom_call.1} parent=1 // pred_check_branch
      %118 = sbr.rel (0) target = $region49
    $region48: #{tpu_custom_call.1} parent=1 // pred_region
      _
    $region49: #{tpu_custom_call.1} parent=1 // pred_fallthru
      _
    // Predicated region
    $region50: #{tpu_custom_call.1} parent=1 // pred_check
      _
    $region51: #{tpu_custom_call.1} parent=1 // pred_check_branch
      %120 = sbr.rel (0) target = $region53
    $region52: #{tpu_custom_call.1} parent=1 // pred_region
      _
    $region53: #{tpu_custom_call.1} parent=1 // pred_fallthru
      _
    // Predicated region
    $region54: #{tpu_custom_call.1} parent=1 // pred_check
      _
    $region55: #{tpu_custom_call.1} parent=1 // pred_check_branch
      %122 = sbr.rel (0) target = $region57
    $region56: #{tpu_custom_call.1} parent=1 // pred_region
      _
    $region57: #{tpu_custom_call.1} parent=1 // pred_fallthru
      _
    // Predicated region
    $region58: #{tpu_custom_call.1} parent=1 // pred_check
      _
    $region59: #{tpu_custom_call.1} parent=1 // pred_check_branch
      %124 = sbr.rel (0) target = $region61
    $region60: #{tpu_custom_call.1} parent=1 // pred_region
      _
    $region61: #{tpu_custom_call.1} parent=1 // pred_fallthru
      _
    // Predicated region
    $region62: #{tpu_custom_call.1} parent=1 // pred_check
      _
    $region63: #{tpu_custom_call.1} parent=1 // pred_check_branch
      %126 = sbr.rel (0) target = $region65
    $region64: #{tpu_custom_call.1} parent=1 // pred_region
      _
    $region65: #{tpu_custom_call.1} parent=1 // pred_fallthru
      _
    // Predicated region
    $region66: #{tpu_custom_call.1} parent=1 // pred_check
      _
    $region67: #{tpu_custom_call.1} parent=1 // pred_check_branch
      %128 = sbr.rel (0) target = $region69
    $region68: #{tpu_custom_call.1} parent=1 // pred_region
      _
    $region69: #{tpu_custom_call.1} parent=1 // pred_fallthru
      _
    // Predicated region
    $region70: #{tpu_custom_call.1} parent=1 // pred_check
      _
    $region71: #{tpu_custom_call.1} parent=1 // pred_check_branch
      %130 = sbr.rel (0) target = $region73
    $region72: #{tpu_custom_call.1} parent=1 // pred_region
      _
    $region73: #{tpu_custom_call.1} parent=1 // pred_fallthru
      _
    // Predicated region
    $region74: #{tpu_custom_call.1} parent=1 // pred_check
      _
    $region75: #{tpu_custom_call.1} parent=1 // pred_check_branch
      %132 = sbr.rel (0) target = $region77
    $region76: #{tpu_custom_call.1} parent=1 // pred_region
      _
    $region77: #{tpu_custom_call.1} parent=1 // pred_fallthru
      _
    // Predicated region
    $region78: #{tpu_custom_call.1} parent=1 // pred_check
      _
    $region79: #{tpu_custom_call.1} parent=1 // pred_check_branch
      %134 = sbr.rel (0) target = $region81
    $region80: #{tpu_custom_call.1} parent=1 // pred_region
      _
    $region81: #{tpu_custom_call.1} parent=1 // pred_fallthru
      _
    // Predicated region
    $region82: #{tpu_custom_call.1} parent=1 // pred_check
      _
    $region83: #{tpu_custom_call.1} parent=1 // pred_check_branch
      %136 = sbr.rel (0) target = $region85
    $region84: #{tpu_custom_call.1} parent=1 // pred_region
      %137 = dma.done [#allocation4], 256
    $region85: #{tpu_custom_call.1} parent=1 // pred_fallthru
      _
    // Predicated region
    $region86: #{tpu_custom_call.1} parent=1 // pred_check
      _
    $region87: #{tpu_custom_call.1} parent=1 // pred_check_branch
      %139 = sbr.rel (0) target = $region89
    $region88: #{tpu_custom_call.1} parent=1 // pred_region
      %140 = dma.done [#allocation6], 32
    $region89: #{tpu_custom_call.1} parent=1 // pred_fallthru
      _
    // Predicated region
    $region90: #{tpu_custom_call.1} parent=1 // pred_check
      _
    $region91: #{tpu_custom_call.1} parent=1 // pred_check_branch
      %142 = sbr.rel (0) target = $region93
    $region92: #{tpu_custom_call.1} parent=1 // pred_region
      %143 = dma.done [#allocation6], 16
    $region93: #{tpu_custom_call.1} parent=1 // pred_fallthru
      _
    // Predicated region
    $region94: #{tpu_custom_call.1} parent=1 // pred_check
      _
    $region95: #{tpu_custom_call.1} parent=1 // pred_check_branch
      %145 = sbr.rel (0) target = $region97
    $region96: #{tpu_custom_call.1} parent=1 // pred_region
      %146 = dma.done [#allocation9], 16
    $region97: #{tpu_custom_call.1} parent=1 // pred_fallthru
      _
    // Predicated region
    $region98: #{tpu_custom_call.1} parent=1 // pred_check
      _
    $region99: #{tpu_custom_call.1} parent=1 // pred_check_branch
      %148 = sbr.rel (0) target = $region101
    $region100: #{tpu_custom_call.1} parent=1 // pred_region
      %149 = dma.done [#allocation9], 32
    $region101: #{tpu_custom_call.1} parent=1 // pred_fallthru
      _
    // Predicated region
    $region102: #{tpu_custom_call.1} parent=1 // pred_check
      _
    $region103: #{tpu_custom_call.1} parent=1 // pred_check_branch
      %151 = sbr.rel (0) target = $region105
    $region104: #{tpu_custom_call.1} parent=1 // pred_region
      %152 = dma.done [#allocation12], 32
    $region105: #{tpu_custom_call.1} parent=1 // pred_fallthru
      _
    // Predicated region
    $region106: #{tpu_custom_call.1} parent=1 // pred_check
      _
    $region107: #{tpu_custom_call.1} parent=1 // pred_check_branch
      %154 = sbr.rel (0) target = $region109
    $region108: #{tpu_custom_call.1} parent=1 // pred_region
      %155 = dma.done [#allocation12], 32
    $region109: #{tpu_custom_call.1} parent=1 // pred_fallthru
      _
    %v157 = vld [vmem:[#allocation3] sm:$0xff]
    %v158 = vld [vmem:[#allocation3 + $0x8] sm:$0xff]
    %v159 = vld [vmem:[#allocation7] sm:$0x1]
    %v160 = vld [vmem:[#allocation8] sm:$0x1]
    %vm161 = vcmask 261120
    %v162 = vsel %vm161, %v157, 0.0
    %163 = vadd.xlane.f32.xlu0 %v162
    %v164 = vpop.xlane.xlu0 %163
    %v165 = vsel %vm161, %v158, 0.0
    %166 = vadd.xlane.f32.xlu0 %v165
    %v167 = vpop.xlane.xlu0 %166
    %v168 = vrcp.pop 32.0
    %v169 = vmul.f32 %v164, %v168
    %v170 = vmul.f32 %v167, %v168
    %v171 = vsub.f32 %v157, %v169
    %v172 = vsub.f32 %v158, %v170
    %v173 = vmul.f32 %v171, %v171
    %v174 = vmul.f32 %v172, %v172
    %v175 = vsel %vm161, %v173, 0.0
    %176 = vadd.xlane.f32.xlu0 %v175
    %v177 = vpop.xlane.xlu0 %176
    %v178 = vsel %vm161, %v174, 0.0
    %179 = vadd.xlane.f32.xlu0 %v178
    %v180 = vpop.xlane.xlu0 %179
    %v181 = vmul.f32 %v177, %v168
    %v182 = vmul.f32 %v180, %v168
    %v183 = vadd.f32 %v181, 1e-12
    %v184 = vadd.f32 %v182, 1e-12
    %v185 = vrsqrt.pop %v183
    %v186 = vrsqrt.pop %v184
    %v187 = vmul.f32 %v171, %v185
    %v188 = vmul.f32 %v172, %v186
    %v190 = vlaneseq
    %v191 = vshrl.u32 %v190, 7
    %v192 = vsub.s32 0, %v191
    %v193 = vrot.slane %v159, %v192
    %v195 = vmul.f32 %v187, %v193
    %v196 = vmul.f32 %v188, %v193
    %v198 = vlaneseq
    %v199 = vshrl.u32 %v198, 7
    %v200 = vsub.s32 0, %v199
    %v201 = vrot.slane %v160, %v200
    %v203 = vadd.f32 %v195, %v201
    %v204 = vadd.f32 %v196, %v201
    %v205 = vld [vmem:[#allocation5] sm:$0x3]
    %v208 = vunpack.c.l.s4 1966171168
    %v209 = vunpack.c.0.s8 %v208
    %v210 = vlaneseq
    %v211 = vshrl.u32 %v210, 7
    %v212 = vsub.s32 %v209, %v211
    %v213 = vrot.slane %v205, %v212
    %v214 = vcombine.high %v213, %v213
    %v216 = vunpack.c.l.s4 1966171168
    %v217 = vunpack.c.0.s8 %v216
    %v218 = vlaneseq
    %v219 = vshrl.u32 %v218, 7
    %v220 = vsub.s32 %v217, %v219
    %v221 = vrot.slane %v213, %v220
    %v223 = vunpack.c.l.s4 1966171168
    %v224 = vunpack.c.0.s8 %v223
    %v225 = vlaneseq
    %v226 = vshrl.u32 %v225, 7
    %v227 = vsub.s32 %v224, %v226
    %v228 = vrot.slane %v214, %v227
    %v229 = vpack.c.bf16 %v204, %v203
    %v230 = vld [vmem:[%s4] sm:$0xf]
    %v231 = vld [vmem:[%s4 + $0x4] sm:$0xf]
    %v232 = vld [vmem:[%s4 + $0x8] sm:$0xf]
    %v233 = vld [vmem:[%s4 + $0xc] sm:$0xf]
    %v234 = vld [vmem:[#allocation10] sm:$0x1]
    %v236 = vlaneseq
    %v237 = vshrl.u32 %v236, 7
    %v238 = vsub.s32 0, %v237
    %v239 = vrot.slane %v234, %v238
    %v245 = vunpack.c.l.b16 %v230
    %v246 = vunpack.c.l.b16 %v231
    %v247 = vunpack.c.l.b16 %v232
    %v248 = vunpack.c.l.b16 %v233
    %v249 = vpack.c.b16 %v246, %v245
    %v250 = vpack.c.b16 %v248, %v247
    %v254 = vsel %vm161, %v229, 0
    %256 = vmatprep.subr.bf16.mxu0 0
    %257 = vmatpush1.bf16.msra.mxu0 0
    %258 = vmatprep.subr.bf16.mxu0 0
    %259 = vmatpush1.bf16.msra.mxu0 0
    %260 = vmatprep.subr.bf16.mxu0 0
    %261 = vmatpush1.bf16.msra.mxu0 0
    %262 = vmatprep.subr.bf16.mxu0 0
    %263 = vmatpush1.bf16.msra.mxu0 0
    %264 = vmatprep.subr.bf16.mxu0 0
    %265 = vmatpush1.bf16.msra.mxu0 0
    %266 = vmatprep.subr.bf16.mxu0 0
    %267 = vmatpush1.bf16.msra.mxu0 0
    %268 = vmatprep.subr.bf16.mxu0 0
    %269 = vmatpush1.bf16.msra.mxu0 %v250
    %270 = vmatprep.subr.bf16.mxu0 0
    %271 = vmatpush1.bf16.msra.mxu0 %v249
    %272 = vmatprep.subr.bf16.mxu0 0
    %273 = vmatpush2.bf16.msra.mxu0 0
    %274 = vmatprep.subr.bf16.mxu0 0
    %275 = vmatpush2.bf16.msra.mxu0 0
    %276 = vmatprep.subr.bf16.mxu0 0
    %277 = vmatpush2.bf16.msra.mxu0 0
    %278 = vmatprep.subr.bf16.mxu0 0
    %279 = vmatpush2.bf16.msra.mxu0 0
    %280 = vmatprep.subr.bf16.mxu0 0
    %281 = vmatpush2.bf16.msra.mxu0 0
    %282 = vmatprep.subr.bf16.mxu0 0
    %283 = vmatpush2.bf16.msra.mxu0 0
    %284 = vmatprep.subr.bf16.mxu0 0
    %285 = vmatpush2.bf16.msra.mxu0 0
    %286 = vmatprep.subr.bf16.mxu0 0
    %287 = vmatpush2.bf16.msra.mxu0 0
    %288 = vmatprep.mubr.bf16.mxu0 0
    %289 = vmatmul.mubr.bf16.gmra.mxu0 %v254
    %v290 = vpop.f32.mrf.mxu0
    %v291 = vadd.f32 %v239, %v290
    %v292 = vpop.f32.mrf.mxu0
    %v293 = vpop.f32.mrf.mxu0
    %v294 = vadd.f32 %v239, %v293
    %v295 = vpop.f32.mrf.mxu0
    %296 = vdwg.mxu0
    %v297 = vmul.f32 %v291, 0.35355338
    %v298 = vmul.f32 %v294, 0.35355338
    %v299 = vpack.c.bf16 %v298, %v297
    %v301 = vunpack.c.l.b16 %v299
    %v302 = vunpack.c.h.b16 %v299
    %v303 = vpack.c.b16 %v301, %v301
    %v304 = vpack.c.b16 %v302, %v302
    %v305 = vpack.c.bf16 %v294, %v291
    %v307 = vunpack.c.l.b16 %v305
    %v308 = vunpack.c.h.b16 %v305
    %v309 = vlaneseq
    %v310 = vshrl.u32 %v309, 7
    %v311 = vsub.s32 0, %v310
    %v312 = vrot.slane %v221, %v311
    %v313 = vlaneseq
    %v314 = vshrl.u32 %v313, 7
    %v315 = vsub.s32 0, %v314
    %v316 = vrot.slane %v228, %v315
    %v319 = vpack.c.b16 %v307, %v307
    %320 = vrot.lane.b32.xlu0 %v319, 96
    %v321 = vpop.permute.xlu0 %320
    %vm322 = vcmask 64512
    %v324 = vsel %vm322, %v303, 0
    %v327 = vsel %vm322, %v321, 0
    %329 = vmatprep.subr.bf16.mxu0 0
    %330 = vmatpush1.bf16.xpose.msra.mxu0 0
    %331 = vmatprep.subr.bf16.mxu0 0
    %332 = vmatpush1.bf16.xpose.msra.mxu0 0
    %333 = vmatprep.subr.bf16.mxu0 0
    %334 = vmatpush1.bf16.xpose.msra.mxu0 0
    %335 = vmatprep.subr.bf16.mxu0 0
    %336 = vmatpush1.bf16.xpose.msra.mxu0 0
    %337 = vmatprep.subr.bf16.mxu0 0
    %338 = vmatpush1.bf16.xpose.msra.mxu0 0
    %339 = vmatprep.subr.bf16.mxu0 0
    %340 = vmatpush1.bf16.xpose.msra.mxu0 0
    %341 = vmatprep.subr.bf16.mxu0 0
    %342 = vmatpush1.bf16.xpose.msra.mxu0 0
    %343 = vmatprep.subr.bf16.mxu0 0
    %344 = vmatpush1.bf16.xpose.msra.mxu0 %v327
    %345 = vmatprep.subr.bf16.mxu0 0
    %346 = vmatpush2.bf16.xpose.msra.mxu0 0
    %347 = vmatprep.subr.bf16.mxu0 0
    %348 = vmatpush2.bf16.xpose.msra.mxu0 0
    %349 = vmatprep.subr.bf16.mxu0 0
    %350 = vmatpush2.bf16.xpose.msra.mxu0 0
    %351 = vmatprep.subr.bf16.mxu0 0
    %352 = vmatpush2.bf16.xpose.msra.mxu0 0
    %353 = vmatprep.subr.bf16.mxu0 0
    %354 = vmatpush2.bf16.xpose.msra.mxu0 0
    %355 = vmatprep.subr.bf16.mxu0 0
    %356 = vmatpush2.bf16.xpose.msra.mxu0 0
    %357 = vmatprep.subr.bf16.mxu0 0
    %358 = vmatpush2.bf16.xpose.msra.mxu0 0
    %359 = vmatprep.subr.bf16.mxu0 0
    %360 = vmatpush2.bf16.xpose.msra.mxu0 0
    %361 = vmatprep.mubr.bf16.mxu0 0
    %362 = vmatmul.mubr.bf16.gmra.mxu0 %v324
    %v363 = vpop.f32.mrf.mxu0
    %v364 = vadd.f32 %v312, %v363
    %v365 = vpop.f32.mrf.mxu0
    %v366 = vpop.f32.mrf.mxu0
    %v367 = vpop.f32.mrf.mxu0
    %368 = vdwg.mxu0
    %v369 = vpack.c.b16 %v308, %v308
    %370 = vrot.lane.b32.xlu0 %v369, 96
    %v371 = vpop.permute.xlu0 %370
    %v373 = vsel %vm322, %v304, 0
    %v376 = vsel %vm322, %v371, 0
    %378 = vmatprep.subr.bf16.mxu0 0
    %379 = vmatpush1.bf16.xpose.msra.mxu0 0
    %380 = vmatprep.subr.bf16.mxu0 0
    %381 = vmatpush1.bf16.xpose.msra.mxu0 0
    %382 = vmatprep.subr.bf16.mxu0 0
    %383 = vmatpush1.bf16.xpose.msra.mxu0 0
    %384 = vmatprep.subr.bf16.mxu0 0
    %385 = vmatpush1.bf16.xpose.msra.mxu0 0
    %386 = vmatprep.subr.bf16.mxu0 0
    %387 = vmatpush1.bf16.xpose.msra.mxu0 0
    %388 = vmatprep.subr.bf16.mxu0 0
    %389 = vmatpush1.bf16.xpose.msra.mxu0 0
    %390 = vmatprep.subr.bf16.mxu0 0
    %391 = vmatpush1.bf16.xpose.msra.mxu0 0
    %392 = vmatprep.subr.bf16.mxu0 0
    %393 = vmatpush1.bf16.xpose.msra.mxu0 %v376
    %394 = vmatprep.subr.bf16.mxu0 0
    %395 = vmatpush2.bf16.xpose.msra.mxu0 0
    %396 = vmatprep.subr.bf16.mxu0 0
    %397 = vmatpush2.bf16.xpose.msra.mxu0 0
    %398 = vmatprep.subr.bf16.mxu0 0
    %399 = vmatpush2.bf16.xpose.msra.mxu0 0
    %400 = vmatprep.subr.bf16.mxu0 0
    %401 = vmatpush2.bf16.xpose.msra.mxu0 0
    %402 = vmatprep.subr.bf16.mxu0 0
    %403 = vmatpush2.bf16.xpose.msra.mxu0 0
    %404 = vmatprep.subr.bf16.mxu0 0
    %405 = vmatpush2.bf16.xpose.msra.mxu0 0
    %406 = vmatprep.subr.bf16.mxu0 0
    %407 = vmatpush2.bf16.xpose.msra.mxu0 0
    %408 = vmatprep.subr.bf16.mxu0 0
    %409 = vmatpush2.bf16.xpose.msra.mxu0 0
    %410 = vmatprep.mubr.bf16.mxu0 0
    %411 = vmatmul.mubr.bf16.gmra.mxu0 %v373
    %v412 = vpop.f32.mrf.mxu0
    %v413 = vadd.f32 %v316, %v412
    %v414 = vpop.f32.mrf.mxu0
    %v415 = vpop.f32.mrf.mxu0
    %v416 = vpop.f32.mrf.mxu0
    %417 = vdwg.mxu0
    %v418 = vsel %vm322, %v364, -inf
    %419 = vmax.xlane.f32.xlu0 %v418
    %v420 = vpop.xlane.xlu0 %419
    %v421 = vsel %vm322, %v413, -inf
    %422 = vmax.xlane.f32.xlu0 %v421
    %v423 = vpop.xlane.xlu0 %422
    %v424 = vsub.f32 %v364, %v420
    %v425 = vsub.f32 %v413, %v423
    %v426 = vmul.f32 %v424, 1.442695
    %v427 = vpow.pop %v426
    %v428 = vmul.f32 %v425, 1.442695
    %v429 = vpow.pop %v428
    %v430 = vsel %vm322, %v427, 0.0
    %431 = vadd.xlane.f32.xlu0 %v430
    %v432 = vpop.xlane.xlu0 %431
    %v433 = vsel %vm322, %v429, 0.0
    %434 = vadd.xlane.f32.xlu0 %v433
    %v435 = vpop.xlane.xlu0 %434
    %v436 = vrcp.pop %v432
    %v437 = vrcp.pop %v435
    %v438 = vmul.f32 %v427, %v436
    %v439 = vmul.f32 %v429, %v437
    %v440 = vpack.c.bf16 %v438, %v438
    %v441 = vpack.c.bf16 %v439, %v439
    %442 = vrot.lane.b32.xlu0 %v319, 64
    %v443 = vpop.permute.xlu0 %442
    %v445 = vsel %vm322, %v440, 0
    %vm447 = vcmask 1043456
    %v449 = vsel %vm447, %v443, 0
    %451 = vmatprep.subr.bf16.mxu0 0
    %452 = vmatpush1.bf16.msra.mxu0 0
    %453 = vmatprep.subr.bf16.mxu0 0
    %454 = vmatpush1.bf16.msra.mxu0 0
    %455 = vmatprep.subr.bf16.mxu0 0
    %456 = vmatpush1.bf16.msra.mxu0 0
    %457 = vmatprep.subr.bf16.mxu0 0
    %458 = vmatpush1.bf16.msra.mxu0 0
    %459 = vmatprep.subr.bf16.mxu0 0
    %460 = vmatpush1.bf16.msra.mxu0 0
    %461 = vmatprep.subr.bf16.mxu0 0
    %462 = vmatpush1.bf16.msra.mxu0 0
    %463 = vmatprep.subr.bf16.mxu0 0
    %464 = vmatpush1.bf16.msra.mxu0 0
    %465 = vmatprep.subr.bf16.mxu0 0
    %466 = vmatpush1.bf16.msra.mxu0 %v449
    %467 = vmatprep.subr.bf16.mxu0 0
    %468 = vmatpush2.bf16.msra.mxu0 0
    %469 = vmatprep.subr.bf16.mxu0 0
    %470 = vmatpush2.bf16.msra.mxu0 0
    %471 = vmatprep.subr.bf16.mxu0 0
    %472 = vmatpush2.bf16.msra.mxu0 0
    %473 = vmatprep.subr.bf16.mxu0 0
    %474 = vmatpush2.bf16.msra.mxu0 0
    %475 = vmatprep.subr.bf16.mxu0 0
    %476 = vmatpush2.bf16.msra.mxu0 0
    %477 = vmatprep.subr.bf16.mxu0 0
    %478 = vmatpush2.bf16.msra.mxu0 0
    %479 = vmatprep.subr.bf16.mxu0 0
    %480 = vmatpush2.bf16.msra.mxu0 0
    %481 = vmatprep.subr.bf16.mxu0 0
    %482 = vmatpush2.bf16.msra.mxu0 0
    %483 = vmatprep.mubr.bf16.mxu0 0
    %484 = vmatmul.mubr.bf16.gmra.mxu0 %v445
    %v485 = vpop.f32.mrf.mxu0
    %v486 = vadd.f32 0.0, %v485
    %v487 = vpop.f32.mrf.mxu0
    %v488 = vpop.f32.mrf.mxu0
    %v489 = vpop.f32.mrf.mxu0
    %490 = vdwg.mxu0
    %491 = vrot.lane.b32.xlu0 %v369, 64
    %v492 = vpop.permute.xlu0 %491
    %v494 = vsel %vm322, %v441, 0
    %v497 = vsel %vm447, %v492, 0
    %499 = vmatprep.subr.bf16.mxu0 0
    %500 = vmatpush1.bf16.msra.mxu0 0
    %501 = vmatprep.subr.bf16.mxu0 0
    %502 = vmatpush1.bf16.msra.mxu0 0
    %503 = vmatprep.subr.bf16.mxu0 0
    %504 = vmatpush1.bf16.msra.mxu0 0
    %505 = vmatprep.subr.bf16.mxu0 0
    %506 = vmatpush1.bf16.msra.mxu0 0
    %507 = vmatprep.subr.bf16.mxu0 0
    %508 = vmatpush1.bf16.msra.mxu0 0
    %509 = vmatprep.subr.bf16.mxu0 0
    %510 = vmatpush1.bf16.msra.mxu0 0
    %511 = vmatprep.subr.bf16.mxu0 0
    %512 = vmatpush1.bf16.msra.mxu0 0
    %513 = vmatprep.subr.bf16.mxu0 0
    %514 = vmatpush1.bf16.msra.mxu0 %v497
    %515 = vmatprep.subr.bf16.mxu0 0
    %516 = vmatpush2.bf16.msra.mxu0 0
    %517 = vmatprep.subr.bf16.mxu0 0
    %518 = vmatpush2.bf16.msra.mxu0 0
    %519 = vmatprep.subr.bf16.mxu0 0
    %520 = vmatpush2.bf16.msra.mxu0 0
    %521 = vmatprep.subr.bf16.mxu0 0
    %522 = vmatpush2.bf16.msra.mxu0 0
    %523 = vmatprep.subr.bf16.mxu0 0
    %524 = vmatpush2.bf16.msra.mxu0 0
    %525 = vmatprep.subr.bf16.mxu0 0
    %526 = vmatpush2.bf16.msra.mxu0 0
    %527 = vmatprep.subr.bf16.mxu0 0
    %528 = vmatpush2.bf16.msra.mxu0 0
    %529 = vmatprep.subr.bf16.mxu0 0
    %530 = vmatpush2.bf16.msra.mxu0 0
    %531 = vmatprep.mubr.bf16.mxu0 0
    %532 = vmatmul.mubr.bf16.gmra.mxu0 %v494
    %v533 = vpop.f32.mrf.mxu0
    %v534 = vadd.f32 0.0, %v533
    %v535 = vpop.f32.mrf.mxu0
    %v536 = vpop.f32.mrf.mxu0
    %v537 = vpop.f32.mrf.mxu0
    %538 = vdwg.mxu0
    %539 = vrot.lane.b32.xlu0 %v303, 120
    %v540 = vpop.permute.xlu0 %539
    %541 = vrot.lane.b32.xlu0 %v319, 88
    %v542 = vpop.permute.xlu0 %541
    %v544 = vsel %vm322, %v540, 0
    %v547 = vsel %vm322, %v542, 0
    %549 = vmatprep.subr.bf16.mxu0 0
    %550 = vmatpush1.bf16.xpose.msra.mxu0 0
    %551 = vmatprep.subr.bf16.mxu0 0
    %552 = vmatpush1.bf16.xpose.msra.mxu0 0
    %553 = vmatprep.subr.bf16.mxu0 0
    %554 = vmatpush1.bf16.xpose.msra.mxu0 0
    %555 = vmatprep.subr.bf16.mxu0 0
    %556 = vmatpush1.bf16.xpose.msra.mxu0 0
    %557 = vmatprep.subr.bf16.mxu0 0
    %558 = vmatpush1.bf16.xpose.msra.mxu0 0
    %559 = vmatprep.subr.bf16.mxu0 0
    %560 = vmatpush1.bf16.xpose.msra.mxu0 0
    %561 = vmatprep.subr.bf16.mxu0 0
    %562 = vmatpush1.bf16.xpose.msra.mxu0 0
    %563 = vmatprep.subr.bf16.mxu0 0
    %564 = vmatpush1.bf16.xpose.msra.mxu0 %v547
    %565 = vmatprep.subr.bf16.mxu0 0
    %566 = vmatpush2.bf16.xpose.msra.mxu0 0
    %567 = vmatprep.subr.bf16.mxu0 0
    %568 = vmatpush2.bf16.xpose.msra.mxu0 0
    %569 = vmatprep.subr.bf16.mxu0 0
    %570 = vmatpush2.bf16.xpose.msra.mxu0 0
    %571 = vmatprep.subr.bf16.mxu0 0
    %572 = vmatpush2.bf16.xpose.msra.mxu0 0
    %573 = vmatprep.subr.bf16.mxu0 0
    %574 = vmatpush2.bf16.xpose.msra.mxu0 0
    %575 = vmatprep.subr.bf16.mxu0 0
    %576 = vmatpush2.bf16.xpose.msra.mxu0 0
    %577 = vmatprep.subr.bf16.mxu0 0
    %578 = vmatpush2.bf16.xpose.msra.mxu0 0
    %579 = vmatprep.subr.bf16.mxu0 0
    %580 = vmatpush2.bf16.xpose.msra.mxu0 0
    %581 = vmatprep.mubr.bf16.mxu0 0
    %582 = vmatmul.mubr.bf16.gmra.mxu0 %v544
    %v583 = vpop.f32.mrf.mxu0
    %v584 = vadd.f32 %v312, %v583
    %v585 = vpop.f32.mrf.mxu0
    %v586 = vpop.f32.mrf.mxu0
    %v587 = vpop.f32.mrf.mxu0
    %588 = vdwg.mxu0
    %589 = vrot.lane.b32.xlu0 %v304, 120
    %v590 = vpop.permute.xlu0 %589
    %591 = vrot.lane.b32.xlu0 %v369, 88
    %v592 = vpop.permute.xlu0 %591
    %v594 = vsel %vm322, %v590, 0
    %v597 = vsel %vm322, %v592, 0
    %599 = vmatprep.subr.bf16.mxu0 0
    %600 = vmatpush1.bf16.xpose.msra.mxu0 0
    %601 = vmatprep.subr.bf16.mxu0 0
    %602 = vmatpush1.bf16.xpose.msra.mxu0 0
    %603 = vmatprep.subr.bf16.mxu0 0
    %604 = vmatpush1.bf16.xpose.msra.mxu0 0
    %605 = vmatprep.subr.bf16.mxu0 0
    %606 = vmatpush1.bf16.xpose.msra.mxu0 0
    %607 = vmatprep.subr.bf16.mxu0 0
    %608 = vmatpush1.bf16.xpose.msra.mxu0 0
    %609 = vmatprep.subr.bf16.mxu0 0
    %610 = vmatpush1.bf16.xpose.msra.mxu0 0
    %611 = vmatprep.subr.bf16.mxu0 0
    %612 = vmatpush1.bf16.xpose.msra.mxu0 0
    %613 = vmatprep.subr.bf16.mxu0 0
    %614 = vmatpush1.bf16.xpose.msra.mxu0 %v597
    %615 = vmatprep.subr.bf16.mxu0 0
    %616 = vmatpush2.bf16.xpose.msra.mxu0 0
    %617 = vmatprep.subr.bf16.mxu0 0
    %618 = vmatpush2.bf16.xpose.msra.mxu0 0
    %619 = vmatprep.subr.bf16.mxu0 0
    %620 = vmatpush2.bf16.xpose.msra.mxu0 0
    %621 = vmatprep.subr.bf16.mxu0 0
    %622 = vmatpush2.bf16.xpose.msra.mxu0 0
    %623 = vmatprep.subr.bf16.mxu0 0
    %624 = vmatpush2.bf16.xpose.msra.mxu0 0
    %625 = vmatprep.subr.bf16.mxu0 0
    %626 = vmatpush2.bf16.xpose.msra.mxu0 0
    %627 = vmatprep.subr.bf16.mxu0 0
    %628 = vmatpush2.bf16.xpose.msra.mxu0 0
    %629 = vmatprep.subr.bf16.mxu0 0
    %630 = vmatpush2.bf16.xpose.msra.mxu0 0
    %631 = vmatprep.mubr.bf16.mxu0 0
    %632 = vmatmul.mubr.bf16.gmra.mxu0 %v594
    %v633 = vpop.f32.mrf.mxu0
    %v634 = vadd.f32 %v316, %v633
    %v635 = vpop.f32.mrf.mxu0
    %v636 = vpop.f32.mrf.mxu0
    %v637 = vpop.f32.mrf.mxu0
    %638 = vdwg.mxu0
    %v639 = vsel %vm322, %v584, -inf
    %640 = vmax.xlane.f32.xlu0 %v639
    %v641 = vpop.xlane.xlu0 %640
    %v642 = vsel %vm322, %v634, -inf
    %643 = vmax.xlane.f32.xlu0 %v642
    %v644 = vpop.xlane.xlu0 %643
    %v645 = vsub.f32 %v584, %v641
    %v646 = vsub.f32 %v634, %v644
    %v647 = vmul.f32 %v645, 1.442695
    %v648 = vpow.pop %v647
    %v649 = vmul.f32 %v646, 1.442695
    %v650 = vpow.pop %v649
    %v651 = vsel %vm322, %v648, 0.0
    %652 = vadd.xlane.f32.xlu0 %v651
    %v653 = vpop.xlane.xlu0 %652
    %v654 = vsel %vm322, %v650, 0.0
    %655 = vadd.xlane.f32.xlu0 %v654
    %v656 = vpop.xlane.xlu0 %655
    %v657 = vrcp.pop %v653
    %v658 = vrcp.pop %v656
    %v659 = vmul.f32 %v648, %v657
    %v660 = vmul.f32 %v650, %v658
    %v661 = vpack.c.bf16 %v659, %v659
    %v662 = vpack.c.bf16 %v660, %v660
    %663 = vrot.lane.b32.xlu0 %v319, 56
    %v664 = vpop.permute.xlu0 %663
    %v666 = vsel %vm322, %v661, 0
    %v669 = vsel %vm447, %v664, 0
    %671 = vmatprep.subr.bf16.mxu0 0
    %672 = vmatpush1.bf16.msra.mxu0 0
    %673 = vmatprep.subr.bf16.mxu0 0
    %674 = vmatpush1.bf16.msra.mxu0 0
    %675 = vmatprep.subr.bf16.mxu0 0
    %676 = vmatpush1.bf16.msra.mxu0 0
    %677 = vmatprep.subr.bf16.mxu0 0
    %678 = vmatpush1.bf16.msra.mxu0 0
    %679 = vmatprep.subr.bf16.mxu0 0
    %680 = vmatpush1.bf16.msra.mxu0 0
    %681 = vmatprep.subr.bf16.mxu0 0
    %682 = vmatpush1.bf16.msra.mxu0 0
    %683 = vmatprep.subr.bf16.mxu0 0
    %684 = vmatpush1.bf16.msra.mxu0 0
    %685 = vmatprep.subr.bf16.mxu0 0
    %686 = vmatpush1.bf16.msra.mxu0 %v669
    %687 = vmatprep.subr.bf16.mxu0 0
    %688 = vmatpush2.bf16.msra.mxu0 0
    %689 = vmatprep.subr.bf16.mxu0 0
    %690 = vmatpush2.bf16.msra.mxu0 0
    %691 = vmatprep.subr.bf16.mxu0 0
    %692 = vmatpush2.bf16.msra.mxu0 0
    %693 = vmatprep.subr.bf16.mxu0 0
    %694 = vmatpush2.bf16.msra.mxu0 0
    %695 = vmatprep.subr.bf16.mxu0 0
    %696 = vmatpush2.bf16.msra.mxu0 0
    %697 = vmatprep.subr.bf16.mxu0 0
    %698 = vmatpush2.bf16.msra.mxu0 0
    %699 = vmatprep.subr.bf16.mxu0 0
    %700 = vmatpush2.bf16.msra.mxu0 0
    %701 = vmatprep.subr.bf16.mxu0 0
    %702 = vmatpush2.bf16.msra.mxu0 0
    %703 = vmatprep.mubr.bf16.mxu0 0
    %704 = vmatmul.mubr.bf16.gmra.mxu0 %v666
    %v705 = vpop.f32.mrf.mxu0
    %v706 = vadd.f32 0.0, %v705
    %v707 = vpop.f32.mrf.mxu0
    %v708 = vpop.f32.mrf.mxu0
    %v709 = vpop.f32.mrf.mxu0
    %710 = vdwg.mxu0
    %711 = vrot.lane.b32.xlu0 %v369, 56
    %v712 = vpop.permute.xlu0 %711
    %v714 = vsel %vm322, %v662, 0
    %v717 = vsel %vm447, %v712, 0
    %719 = vmatprep.subr.bf16.mxu0 0
    %720 = vmatpush1.bf16.msra.mxu0 0
    %721 = vmatprep.subr.bf16.mxu0 0
    %722 = vmatpush1.bf16.msra.mxu0 0
    %723 = vmatprep.subr.bf16.mxu0 0
    %724 = vmatpush1.bf16.msra.mxu0 0
    %725 = vmatprep.subr.bf16.mxu0 0
    %726 = vmatpush1.bf16.msra.mxu0 0
    %727 = vmatprep.subr.bf16.mxu0 0
    %728 = vmatpush1.bf16.msra.mxu0 0
    %729 = vmatprep.subr.bf16.mxu0 0
    %730 = vmatpush1.bf16.msra.mxu0 0
    %731 = vmatprep.subr.bf16.mxu0 0
    %732 = vmatpush1.bf16.msra.mxu0 0
    %733 = vmatprep.subr.bf16.mxu0 0
    %734 = vmatpush1.bf16.msra.mxu0 %v717
    %735 = vmatprep.subr.bf16.mxu0 0
    %736 = vmatpush2.bf16.msra.mxu0 0
    %737 = vmatprep.subr.bf16.mxu0 0
    %738 = vmatpush2.bf16.msra.mxu0 0
    %739 = vmatprep.subr.bf16.mxu0 0
    %740 = vmatpush2.bf16.msra.mxu0 0
    %741 = vmatprep.subr.bf16.mxu0 0
    %742 = vmatpush2.bf16.msra.mxu0 0
    %743 = vmatprep.subr.bf16.mxu0 0
    %744 = vmatpush2.bf16.msra.mxu0 0
    %745 = vmatprep.subr.bf16.mxu0 0
    %746 = vmatpush2.bf16.msra.mxu0 0
    %747 = vmatprep.subr.bf16.mxu0 0
    %748 = vmatpush2.bf16.msra.mxu0 0
    %749 = vmatprep.subr.bf16.mxu0 0
    %750 = vmatpush2.bf16.msra.mxu0 0
    %751 = vmatprep.mubr.bf16.mxu0 0
    %752 = vmatmul.mubr.bf16.gmra.mxu0 %v714
    %v753 = vpop.f32.mrf.mxu0
    %v754 = vadd.f32 0.0, %v753
    %v755 = vpop.f32.mrf.mxu0
    %v756 = vpop.f32.mrf.mxu0
    %v757 = vpop.f32.mrf.mxu0
    %758 = vdwg.mxu0
    %759 = vrot.lane.b32.xlu0 %v303, 112
    %v760 = vpop.permute.xlu0 %759
    %761 = vrot.lane.b32.xlu0 %v319, 80
    %v762 = vpop.permute.xlu0 %761
    %v764 = vsel %vm322, %v760, 0
    %v767 = vsel %vm322, %v762, 0
    %769 = vmatprep.subr.bf16.mxu0 0
    %770 = vmatpush1.bf16.xpose.msra.mxu0 0
    %771 = vmatprep.subr.bf16.mxu0 0
    %772 = vmatpush1.bf16.xpose.msra.mxu0 0
    %773 = vmatprep.subr.bf16.mxu0 0
    %774 = vmatpush1.bf16.xpose.msra.mxu0 0
    %775 = vmatprep.subr.bf16.mxu0 0
    %776 = vmatpush1.bf16.xpose.msra.mxu0 0
    %777 = vmatprep.subr.bf16.mxu0 0
    %778 = vmatpush1.bf16.xpose.msra.mxu0 0
    %779 = vmatprep.subr.bf16.mxu0 0
    %780 = vmatpush1.bf16.xpose.msra.mxu0 0
    %781 = vmatprep.subr.bf16.mxu0 0
    %782 = vmatpush1.bf16.xpose.msra.mxu0 0
    %783 = vmatprep.subr.bf16.mxu0 0
    %784 = vmatpush1.bf16.xpose.msra.mxu0 %v767
    %785 = vmatprep.subr.bf16.mxu0 0
    %786 = vmatpush2.bf16.xpose.msra.mxu0 0
    %787 = vmatprep.subr.bf16.mxu0 0
    %788 = vmatpush2.bf16.xpose.msra.mxu0 0
    %789 = vmatprep.subr.bf16.mxu0 0
    %790 = vmatpush2.bf16.xpose.msra.mxu0 0
    %791 = vmatprep.subr.bf16.mxu0 0
    %792 = vmatpush2.bf16.xpose.msra.mxu0 0
    %793 = vmatprep.subr.bf16.mxu0 0
    %794 = vmatpush2.bf16.xpose.msra.mxu0 0
    %795 = vmatprep.subr.bf16.mxu0 0
    %796 = vmatpush2.bf16.xpose.msra.mxu0 0
    %797 = vmatprep.subr.bf16.mxu0 0
    %798 = vmatpush2.bf16.xpose.msra.mxu0 0
    %799 = vmatprep.subr.bf16.mxu0 0
    %800 = vmatpush2.bf16.xpose.msra.mxu0 0
    %801 = vmatprep.mubr.bf16.mxu0 0
    %802 = vmatmul.mubr.bf16.gmra.mxu0 %v764
    %v803 = vpop.f32.mrf.mxu0
    %v804 = vadd.f32 %v312, %v803
    %v805 = vpop.f32.mrf.mxu0
    %v806 = vpop.f32.mrf.mxu0
    %v807 = vpop.f32.mrf.mxu0
    %808 = vdwg.mxu0
    %809 = vrot.lane.b32.xlu0 %v304, 112
    %v810 = vpop.permute.xlu0 %809
    %811 = vrot.lane.b32.xlu0 %v369, 80
    %v812 = vpop.permute.xlu0 %811
    %v814 = vsel %vm322, %v810, 0
    %v817 = vsel %vm322, %v812, 0
    %819 = vmatprep.subr.bf16.mxu0 0
    %820 = vmatpush1.bf16.xpose.msra.mxu0 0
    %821 = vmatprep.subr.bf16.mxu0 0
    %822 = vmatpush1.bf16.xpose.msra.mxu0 0
    %823 = vmatprep.subr.bf16.mxu0 0
    %824 = vmatpush1.bf16.xpose.msra.mxu0 0
    %825 = vmatprep.subr.bf16.mxu0 0
    %826 = vmatpush1.bf16.xpose.msra.mxu0 0
    %827 = vmatprep.subr.bf16.mxu0 0
    %828 = vmatpush1.bf16.xpose.msra.mxu0 0
    %829 = vmatprep.subr.bf16.mxu0 0
    %830 = vmatpush1.bf16.xpose.msra.mxu0 0
    %831 = vmatprep.subr.bf16.mxu0 0
    %832 = vmatpush1.bf16.xpose.msra.mxu0 0
    %833 = vmatprep.subr.bf16.mxu0 0
    %834 = vmatpush1.bf16.xpose.msra.mxu0 %v817
    %835 = vmatprep.subr.bf16.mxu0 0
    %836 = vmatpush2.bf16.xpose.msra.mxu0 0
    %837 = vmatprep.subr.bf16.mxu0 0
    %838 = vmatpush2.bf16.xpose.msra.mxu0 0
    %839 = vmatprep.subr.bf16.mxu0 0
    %840 = vmatpush2.bf16.xpose.msra.mxu0 0
    %841 = vmatprep.subr.bf16.mxu0 0
    %842 = vmatpush2.bf16.xpose.msra.mxu0 0
    %843 = vmatprep.subr.bf16.mxu0 0
    %844 = vmatpush2.bf16.xpose.msra.mxu0 0
    %845 = vmatprep.subr.bf16.mxu0 0
    %846 = vmatpush2.bf16.xpose.msra.mxu0 0
    %847 = vmatprep.subr.bf16.mxu0 0
    %848 = vmatpush2.bf16.xpose.msra.mxu0 0
    %849 = vmatprep.subr.bf16.mxu0 0
    %850 = vmatpush2.bf16.xpose.msra.mxu0 0
    %851 = vmatprep.mubr.bf16.mxu0 0
    %852 = vmatmul.mubr.bf16.gmra.mxu0 %v814
    %v853 = vpop.f32.mrf.mxu0
    %v854 = vadd.f32 %v316, %v853
    %v855 = vpop.f32.mrf.mxu0
    %v856 = vpop.f32.mrf.mxu0
    %v857 = vpop.f32.mrf.mxu0
    %858 = vdwg.mxu0
    %v859 = vsel %vm322, %v804, -inf
    %860 = vmax.xlane.f32.xlu0 %v859
    %v861 = vpop.xlane.xlu0 %860
    %v862 = vsel %vm322, %v854, -inf
    %863 = vmax.xlane.f32.xlu0 %v862
    %v864 = vpop.xlane.xlu0 %863
    %v865 = vsub.f32 %v804, %v861
    %v866 = vsub.f32 %v854, %v864
    %v867 = vmul.f32 %v865, 1.442695
    %v868 = vpow.pop %v867
    %v869 = vmul.f32 %v866, 1.442695
    %v870 = vpow.pop %v869
    %v871 = vsel %vm322, %v868, 0.0
    %872 = vadd.xlane.f32.xlu0 %v871
    %v873 = vpop.xlane.xlu0 %872
    %v874 = vsel %vm322, %v870, 0.0
    %875 = vadd.xlane.f32.xlu0 %v874
    %v876 = vpop.xlane.xlu0 %875
    %v877 = vrcp.pop %v873
    %v878 = vrcp.pop %v876
    %v879 = vmul.f32 %v868, %v877
    %v880 = vmul.f32 %v870, %v878
    %v881 = vpack.c.bf16 %v879, %v879
    %v882 = vpack.c.bf16 %v880, %v880
    %883 = vrot.lane.b32.xlu0 %v319, 48
    %v884 = vpop.permute.xlu0 %883
    %v886 = vsel %vm322, %v881, 0
    %v889 = vsel %vm447, %v884, 0
    %891 = vmatprep.subr.bf16.mxu0 0
    %892 = vmatpush1.bf16.msra.mxu0 0
    %893 = vmatprep.subr.bf16.mxu0 0
    %894 = vmatpush1.bf16.msra.mxu0 0
    %895 = vmatprep.subr.bf16.mxu0 0
    %896 = vmatpush1.bf16.msra.mxu0 0
    %897 = vmatprep.subr.bf16.mxu0 0
    %898 = vmatpush1.bf16.msra.mxu0 0
    %899 = vmatprep.subr.bf16.mxu0 0
    %900 = vmatpush1.bf16.msra.mxu0 0
    %901 = vmatprep.subr.bf16.mxu0 0
    %902 = vmatpush1.bf16.msra.mxu0 0
    %903 = vmatprep.subr.bf16.mxu0 0
    %904 = vmatpush1.bf16.msra.mxu0 0
    %905 = vmatprep.subr.bf16.mxu0 0
    %906 = vmatpush1.bf16.msra.mxu0 %v889
    %907 = vmatprep.subr.bf16.mxu0 0
    %908 = vmatpush2.bf16.msra.mxu0 0
    %909 = vmatprep.subr.bf16.mxu0 0
    %910 = vmatpush2.bf16.msra.mxu0 0
    %911 = vmatprep.subr.bf16.mxu0 0
    %912 = vmatpush2.bf16.msra.mxu0 0
    %913 = vmatprep.subr.bf16.mxu0 0
    %914 = vmatpush2.bf16.msra.mxu0 0
    %915 = vmatprep.subr.bf16.mxu0 0
    %916 = vmatpush2.bf16.msra.mxu0 0
    %917 = vmatprep.subr.bf16.mxu0 0
    %918 = vmatpush2.bf16.msra.mxu0 0
    %919 = vmatprep.subr.bf16.mxu0 0
    %920 = vmatpush2.bf16.msra.mxu0 0
    %921 = vmatprep.subr.bf16.mxu0 0
    %922 = vmatpush2.bf16.msra.mxu0 0
    %923 = vmatprep.mubr.bf16.mxu0 0
    %924 = vmatmul.mubr.bf16.gmra.mxu0 %v886
    %v925 = vpop.f32.mrf.mxu0
    %v926 = vadd.f32 0.0, %v925
    %v927 = vpop.f32.mrf.mxu0
    %v928 = vpop.f32.mrf.mxu0
    %v929 = vpop.f32.mrf.mxu0
    %930 = vdwg.mxu0
    %931 = vrot.lane.b32.xlu0 %v369, 48
    %v932 = vpop.permute.xlu0 %931
    %v934 = vsel %vm322, %v882, 0
    %v937 = vsel %vm447, %v932, 0
    %939 = vmatprep.subr.bf16.mxu0 0
    %940 = vmatpush1.bf16.msra.mxu0 0
    %941 = vmatprep.subr.bf16.mxu0 0
    %942 = vmatpush1.bf16.msra.mxu0 0
    %943 = vmatprep.subr.bf16.mxu0 0
    %944 = vmatpush1.bf16.msra.mxu0 0
    %945 = vmatprep.subr.bf16.mxu0 0
    %946 = vmatpush1.bf16.msra.mxu0 0
    %947 = vmatprep.subr.bf16.mxu0 0
    %948 = vmatpush1.bf16.msra.mxu0 0
    %949 = vmatprep.subr.bf16.mxu0 0
    %950 = vmatpush1.bf16.msra.mxu0 0
    %951 = vmatprep.subr.bf16.mxu0 0
    %952 = vmatpush1.bf16.msra.mxu0 0
    %953 = vmatprep.subr.bf16.mxu0 0
    %954 = vmatpush1.bf16.msra.mxu0 %v937
    %955 = vmatprep.subr.bf16.mxu0 0
    %956 = vmatpush2.bf16.msra.mxu0 0
    %957 = vmatprep.subr.bf16.mxu0 0
    %958 = vmatpush2.bf16.msra.mxu0 0
    %959 = vmatprep.subr.bf16.mxu0 0
    %960 = vmatpush2.bf16.msra.mxu0 0
    %961 = vmatprep.subr.bf16.mxu0 0
    %962 = vmatpush2.bf16.msra.mxu0 0
    %963 = vmatprep.subr.bf16.mxu0 0
    %964 = vmatpush2.bf16.msra.mxu0 0
    %965 = vmatprep.subr.bf16.mxu0 0
    %966 = vmatpush2.bf16.msra.mxu0 0
    %967 = vmatprep.subr.bf16.mxu0 0
    %968 = vmatpush2.bf16.msra.mxu0 0
    %969 = vmatprep.subr.bf16.mxu0 0
    %970 = vmatpush2.bf16.msra.mxu0 0
    %971 = vmatprep.mubr.bf16.mxu0 0
    %972 = vmatmul.mubr.bf16.gmra.mxu0 %v934
    %v973 = vpop.f32.mrf.mxu0
    %v974 = vadd.f32 0.0, %v973
    %v975 = vpop.f32.mrf.mxu0
    %v976 = vpop.f32.mrf.mxu0
    %v977 = vpop.f32.mrf.mxu0
    %978 = vdwg.mxu0
    %979 = vrot.lane.b32.xlu0 %v303, 104
    %v980 = vpop.permute.xlu0 %979
    %981 = vrot.lane.b32.xlu0 %v319, 72
    %v982 = vpop.permute.xlu0 %981
    %v984 = vsel %vm322, %v980, 0
    %v987 = vsel %vm322, %v982, 0
    %989 = vmatprep.subr.bf16.mxu0 0
    %990 = vmatpush1.bf16.xpose.msra.mxu0 0
    %991 = vmatprep.subr.bf16.mxu0 0
    %992 = vmatpush1.bf16.xpose.msra.mxu0 0
    %993 = vmatprep.subr.bf16.mxu0 0
    %994 = vmatpush1.bf16.xpose.msra.mxu0 0
    %995 = vmatprep.subr.bf16.mxu0 0
    %996 = vmatpush1.bf16.xpose.msra.mxu0 0
    %997 = vmatprep.subr.bf16.mxu0 0
    %998 = vmatpush1.bf16.xpose.msra.mxu0 0
    %999 = vmatprep.subr.bf16.mxu0 0
    %1000 = vmatpush1.bf16.xpose.msra.mxu0 0
    %1001 = vmatprep.subr.bf16.mxu0 0
    %1002 = vmatpush1.bf16.xpose.msra.mxu0 0
    %1003 = vmatprep.subr.bf16.mxu0 0
    %1004 = vmatpush1.bf16.xpose.msra.mxu0 %v987
    %1005 = vmatprep.subr.bf16.mxu0 0
    %1006 = vmatpush2.bf16.xpose.msra.mxu0 0
    %1007 = vmatprep.subr.bf16.mxu0 0
    %1008 = vmatpush2.bf16.xpose.msra.mxu0 0
    %1009 = vmatprep.subr.bf16.mxu0 0
    %1010 = vmatpush2.bf16.xpose.msra.mxu0 0
    %1011 = vmatprep.subr.bf16.mxu0 0
    %1012 = vmatpush2.bf16.xpose.msra.mxu0 0
    %1013 = vmatprep.subr.bf16.mxu0 0
    %1014 = vmatpush2.bf16.xpose.msra.mxu0 0
    %1015 = vmatprep.subr.bf16.mxu0 0
    %1016 = vmatpush2.bf16.xpose.msra.mxu0 0
    %1017 = vmatprep.subr.bf16.mxu0 0
    %1018 = vmatpush2.bf16.xpose.msra.mxu0 0
    %1019 = vmatprep.subr.bf16.mxu0 0
    %1020 = vmatpush2.bf16.xpose.msra.mxu0 0
    %1021 = vmatprep.mubr.bf16.mxu0 0
    %1022 = vmatmul.mubr.bf16.gmra.mxu0 %v984
    %v1023 = vpop.f32.mrf.mxu0
    %v1024 = vadd.f32 %v312, %v1023
    %v1025 = vpop.f32.mrf.mxu0
    %v1026 = vpop.f32.mrf.mxu0
    %v1027 = vpop.f32.mrf.mxu0
    %1028 = vdwg.mxu0
    %1029 = vrot.lane.b32.xlu0 %v304, 104
    %v1030 = vpop.permute.xlu0 %1029
    %1031 = vrot.lane.b32.xlu0 %v369, 72
    %v1032 = vpop.permute.xlu0 %1031
    %v1034 = vsel %vm322, %v1030, 0
    %v1037 = vsel %vm322, %v1032, 0
    %1039 = vmatprep.subr.bf16.mxu0 0
    %1040 = vmatpush1.bf16.xpose.msra.mxu0 0
    %1041 = vmatprep.subr.bf16.mxu0 0
    %1042 = vmatpush1.bf16.xpose.msra.mxu0 0
    %1043 = vmatprep.subr.bf16.mxu0 0
    %1044 = vmatpush1.bf16.xpose.msra.mxu0 0
    %1045 = vmatprep.subr.bf16.mxu0 0
    %1046 = vmatpush1.bf16.xpose.msra.mxu0 0
    %1047 = vmatprep.subr.bf16.mxu0 0
    %1048 = vmatpush1.bf16.xpose.msra.mxu0 0
    %1049 = vmatprep.subr.bf16.mxu0 0
    %1050 = vmatpush1.bf16.xpose.msra.mxu0 0
    %1051 = vmatprep.subr.bf16.mxu0 0
    %1052 = vmatpush1.bf16.xpose.msra.mxu0 0
    %1053 = vmatprep.subr.bf16.mxu0 0
    %1054 = vmatpush1.bf16.xpose.msra.mxu0 %v1037
    %1055 = vmatprep.subr.bf16.mxu0 0
    %1056 = vmatpush2.bf16.xpose.msra.mxu0 0
    %1057 = vmatprep.subr.bf16.mxu0 0
    %1058 = vmatpush2.bf16.xpose.msra.mxu0 0
    %1059 = vmatprep.subr.bf16.mxu0 0
    %1060 = vmatpush2.bf16.xpose.msra.mxu0 0
    %1061 = vmatprep.subr.bf16.mxu0 0
    %1062 = vmatpush2.bf16.xpose.msra.mxu0 0
    %1063 = vmatprep.subr.bf16.mxu0 0
    %1064 = vmatpush2.bf16.xpose.msra.mxu0 0
    %1065 = vmatprep.subr.bf16.mxu0 0
    %1066 = vmatpush2.bf16.xpose.msra.mxu0 0
    %1067 = vmatprep.subr.bf16.mxu0 0
    %1068 = vmatpush2.bf16.xpose.msra.mxu0 0
    %1069 = vmatprep.subr.bf16.mxu0 0
    %1070 = vmatpush2.bf16.xpose.msra.mxu0 0
    %1071 = vmatprep.mubr.bf16.mxu0 0
    %1072 = vmatmul.mubr.bf16.gmra.mxu0 %v1034
    %v1073 = vpop.f32.mrf.mxu0
    %v1074 = vadd.f32 %v316, %v1073
    %v1075 = vpop.f32.mrf.mxu0
    %v1076 = vpop.f32.mrf.mxu0
    %v1077 = vpop.f32.mrf.mxu0
    %1078 = vdwg.mxu0
    %v1079 = vsel %vm322, %v1024, -inf
    %1080 = vmax.xlane.f32.xlu0 %v1079
    %v1081 = vpop.xlane.xlu0 %1080
    %v1082 = vsel %vm322, %v1074, -inf
    %1083 = vmax.xlane.f32.xlu0 %v1082
    %v1084 = vpop.xlane.xlu0 %1083
    %v1085 = vsub.f32 %v1024, %v1081
    %v1086 = vsub.f32 %v1074, %v1084
    %v1087 = vmul.f32 %v1085, 1.442695
    %v1088 = vpow.pop %v1087
    %v1089 = vmul.f32 %v1086, 1.442695
    %v1090 = vpow.pop %v1089
    %v1091 = vsel %vm322, %v1088, 0.0
    %1092 = vadd.xlane.f32.xlu0 %v1091
    %v1093 = vpop.xlane.xlu0 %1092
    %v1094 = vsel %vm322, %v1090, 0.0
    %1095 = vadd.xlane.f32.xlu0 %v1094
    %v1096 = vpop.xlane.xlu0 %1095
    %v1097 = vrcp.pop %v1093
    %v1098 = vrcp.pop %v1096
    %v1099 = vmul.f32 %v1088, %v1097
    %v1100 = vmul.f32 %v1090, %v1098
    %v1101 = vpack.c.bf16 %v1099, %v1099
    %v1102 = vpack.c.bf16 %v1100, %v1100
    %1103 = vrot.lane.b32.xlu0 %v319, 40
    %v1104 = vpop.permute.xlu0 %1103
    %v1106 = vsel %vm322, %v1101, 0
    %v1109 = vsel %vm447, %v1104, 0
    %1111 = vmatprep.subr.bf16.mxu0 0
    %1112 = vmatpush1.bf16.msra.mxu0 0
    %1113 = vmatprep.subr.bf16.mxu0 0
    %1114 = vmatpush1.bf16.msra.mxu0 0
    %1115 = vmatprep.subr.bf16.mxu0 0
    %1116 = vmatpush1.bf16.msra.mxu0 0
    %1117 = vmatprep.subr.bf16.mxu0 0
    %1118 = vmatpush1.bf16.msra.mxu0 0
    %1119 = vmatprep.subr.bf16.mxu0 0
    %1120 = vmatpush1.bf16.msra.mxu0 0
    %1121 = vmatprep.subr.bf16.mxu0 0
    %1122 = vmatpush1.bf16.msra.mxu0 0
    %1123 = vmatprep.subr.bf16.mxu0 0
    %1124 = vmatpush1.bf16.msra.mxu0 0
    %1125 = vmatprep.subr.bf16.mxu0 0
    %1126 = vmatpush1.bf16.msra.mxu0 %v1109
    %1127 = vmatprep.subr.bf16.mxu0 0
    %1128 = vmatpush2.bf16.msra.mxu0 0
    %1129 = vmatprep.subr.bf16.mxu0 0
    %1130 = vmatpush2.bf16.msra.mxu0 0
    %1131 = vmatprep.subr.bf16.mxu0 0
    %1132 = vmatpush2.bf16.msra.mxu0 0
    %1133 = vmatprep.subr.bf16.mxu0 0
    %1134 = vmatpush2.bf16.msra.mxu0 0
    %1135 = vmatprep.subr.bf16.mxu0 0
    %1136 = vmatpush2.bf16.msra.mxu0 0
    %1137 = vmatprep.subr.bf16.mxu0 0
    %1138 = vmatpush2.bf16.msra.mxu0 0
    %1139 = vmatprep.subr.bf16.mxu0 0
    %1140 = vmatpush2.bf16.msra.mxu0 0
    %1141 = vmatprep.subr.bf16.mxu0 0
    %1142 = vmatpush2.bf16.msra.mxu0 0
    %1143 = vmatprep.mubr.bf16.mxu0 0
    %1144 = vmatmul.mubr.bf16.gmra.mxu0 %v1106
    %v1145 = vpop.f32.mrf.mxu0
    %v1146 = vadd.f32 0.0, %v1145
    %v1147 = vpop.f32.mrf.mxu0
    %v1148 = vpop.f32.mrf.mxu0
    %v1149 = vpop.f32.mrf.mxu0
    %1150 = vdwg.mxu0
    %1151 = vrot.lane.b32.xlu0 %v369, 40
    %v1152 = vpop.permute.xlu0 %1151
    %v1154 = vsel %vm322, %v1102, 0
    %v1157 = vsel %vm447, %v1152, 0
    %1159 = vmatprep.subr.bf16.mxu0 0
    %1160 = vmatpush1.bf16.msra.mxu0 0
    %1161 = vmatprep.subr.bf16.mxu0 0
    %1162 = vmatpush1.bf16.msra.mxu0 0
    %1163 = vmatprep.subr.bf16.mxu0 0
    %1164 = vmatpush1.bf16.msra.mxu0 0
    %1165 = vmatprep.subr.bf16.mxu0 0
    %1166 = vmatpush1.bf16.msra.mxu0 0
    %1167 = vmatprep.subr.bf16.mxu0 0
    %1168 = vmatpush1.bf16.msra.mxu0 0
    %1169 = vmatprep.subr.bf16.mxu0 0
    %1170 = vmatpush1.bf16.msra.mxu0 0
    %1171 = vmatprep.subr.bf16.mxu0 0
    %1172 = vmatpush1.bf16.msra.mxu0 0
    %1173 = vmatprep.subr.bf16.mxu0 0
    %1174 = vmatpush1.bf16.msra.mxu0 %v1157
    %1175 = vmatprep.subr.bf16.mxu0 0
    %1176 = vmatpush2.bf16.msra.mxu0 0
    %1177 = vmatprep.subr.bf16.mxu0 0
    %1178 = vmatpush2.bf16.msra.mxu0 0
    %1179 = vmatprep.subr.bf16.mxu0 0
    %1180 = vmatpush2.bf16.msra.mxu0 0
    %1181 = vmatprep.subr.bf16.mxu0 0
    %1182 = vmatpush2.bf16.msra.mxu0 0
    %1183 = vmatprep.subr.bf16.mxu0 0
    %1184 = vmatpush2.bf16.msra.mxu0 0
    %1185 = vmatprep.subr.bf16.mxu0 0
    %1186 = vmatpush2.bf16.msra.mxu0 0
    %1187 = vmatprep.subr.bf16.mxu0 0
    %1188 = vmatpush2.bf16.msra.mxu0 0
    %1189 = vmatprep.subr.bf16.mxu0 0
    %1190 = vmatpush2.bf16.msra.mxu0 0
    %1191 = vmatprep.mubr.bf16.mxu0 0
    %1192 = vmatmul.mubr.bf16.gmra.mxu0 %v1154
    %v1193 = vpop.f32.mrf.mxu0
    %v1194 = vadd.f32 0.0, %v1193
    %v1195 = vpop.f32.mrf.mxu0
    %v1196 = vpop.f32.mrf.mxu0
    %v1197 = vpop.f32.mrf.mxu0
    %1198 = vdwg.mxu0
    %1201 = vrot.lane.b32.xlu0 %v706, 8
    %v1202 = vpop.permute.xlu0 %1201
    %1203 = vrot.lane.b32.xlu0 %v754, 8
    %v1204 = vpop.permute.xlu0 %1203
    %1209 = vrot.lane.b32.xlu0 %v926, 16
    %v1210 = vpop.permute.xlu0 %1209
    %1211 = vrot.lane.b32.xlu0 %v974, 16
    %v1212 = vpop.permute.xlu0 %1211
    %1217 = vrot.lane.b32.xlu0 %v1146, 24
    %v1218 = vpop.permute.xlu0 %1217
    %1219 = vrot.lane.b32.xlu0 %v1194, 24
    %v1220 = vpop.permute.xlu0 %1219
    %v1223 = vsel %vm322, %v486, %v1202
    %v1224 = vsel %vm322, %v534, %v1204
    %vm1225 = vcmask 130048
    %v1226 = vsel %vm1225, %v1223, %v1210
    %v1227 = vsel %vm1225, %v1224, %v1212
    %vm1228 = vcmask 195584
    %v1229 = vsel %vm1228, %v1226, %v1218
    %v1230 = vsel %vm1228, %v1227, %v1220
    %v1231 = vpack.c.bf16 %v1230, %v1229
    %v1232 = vld [vmem:[%s6] sm:$0xf]
    %v1233 = vld [vmem:[%s6 + $0x4] sm:$0xf]
    %v1234 = vld [vmem:[%s6 + $0x8] sm:$0xf]
    %v1235 = vld [vmem:[%s6 + $0xc] sm:$0xf]
    %v1236 = vld [vmem:[#allocation11] sm:$0x1]
    %v1238 = vlaneseq
    %v1239 = vshrl.u32 %v1238, 7
    %v1240 = vsub.s32 0, %v1239
    %v1241 = vrot.slane %v1236, %v1240
    %v1247 = vunpack.c.l.b16 %v1232
    %v1248 = vunpack.c.l.b16 %v1233
    %v1249 = vunpack.c.l.b16 %v1234
    %v1250 = vunpack.c.l.b16 %v1235
    %v1251 = vpack.c.b16 %v1248, %v1247
    %v1252 = vpack.c.b16 %v1250, %v1249
    %v1256 = vsel %vm161, %v1231, 0
    %1258 = vmatprep.subr.bf16.mxu0 0
    %1259 = vmatpush1.bf16.msra.mxu0 0
    %1260 = vmatprep.subr.bf16.mxu0 0
    %1261 = vmatpush1.bf16.msra.mxu0 0
    %1262 = vmatprep.subr.bf16.mxu0 0
    %1263 = vmatpush1.bf16.msra.mxu0 0
    %1264 = vmatprep.subr.bf16.mxu0 0
    %1265 = vmatpush1.bf16.msra.mxu0 0
    %1266 = vmatprep.subr.bf16.mxu0 0
    %1267 = vmatpush1.bf16.msra.mxu0 0
    %1268 = vmatprep.subr.bf16.mxu0 0
    %1269 = vmatpush1.bf16.msra.mxu0 0
    %1270 = vmatprep.subr.bf16.mxu0 0
    %1271 = vmatpush1.bf16.msra.mxu0 %v1252
    %1272 = vmatprep.subr.bf16.mxu0 0
    %1273 = vmatpush1.bf16.msra.mxu0 %v1251
    %1274 = vmatprep.subr.bf16.mxu0 0
    %1275 = vmatpush2.bf16.msra.mxu0 0
    %1276 = vmatprep.subr.bf16.mxu0 0
    %1277 = vmatpush2.bf16.msra.mxu0 0
    %1278 = vmatprep.subr.bf16.mxu0 0
    %1279 = vmatpush2.bf16.msra.mxu0 0
    %1280 = vmatprep.subr.bf16.mxu0 0
    %1281 = vmatpush2.bf16.msra.mxu0 0
    %1282 = vmatprep.subr.bf16.mxu0 0
    %1283 = vmatpush2.bf16.msra.mxu0 0
    %1284 = vmatprep.subr.bf16.mxu0 0
    %1285 = vmatpush2.bf16.msra.mxu0 0
    %1286 = vmatprep.subr.bf16.mxu0 0
    %1287 = vmatpush2.bf16.msra.mxu0 0
    %1288 = vmatprep.subr.bf16.mxu0 0
    %1289 = vmatpush2.bf16.msra.mxu0 0
    %1290 = vmatprep.mubr.bf16.mxu0 0
    %1291 = vmatmul.mubr.bf16.gmra.mxu0 %v1256
    %v1292 = vpop.f32.mrf.mxu0
    %v1293 = vadd.f32 %v1241, %v1292
    %v1294 = vpop.f32.mrf.mxu0
    %v1295 = vpop.f32.mrf.mxu0
    %v1296 = vadd.f32 %v1241, %v1295
    %v1297 = vpop.f32.mrf.mxu0
    %1298 = vdwg.mxu0
    %v1299 = vadd.f32 %v203, %v1293
    %v1300 = vadd.f32 %v204, %v1296
    %v1301 = vld [vmem:[#allocation13] sm:$0x1]
    %v1302 = vld [vmem:[%s9] sm:$0x1]
    %v1303 = vsel %vm161, %v1299, 0.0
    %1304 = vadd.xlane.f32.xlu0 %v1303
    %v1305 = vpop.xlane.xlu0 %1304
    %v1306 = vsel %vm161, %v1300, 0.0
    %1307 = vadd.xlane.f32.xlu0 %v1306
    %v1308 = vpop.xlane.xlu0 %1307
    %v1309 = vmul.f32 %v1305, %v168
    %v1310 = vmul.f32 %v1308, %v168
    %v1311 = vsub.f32 %v1299, %v1309
    %v1312 = vsub.f32 %v1300, %v1310
    %v1313 = vmul.f32 %v1311, %v1311
    %v1314 = vmul.f32 %v1312, %v1312
    %v1315 = vsel %vm161, %v1313, 0.0
    %1316 = vadd.xlane.f32.xlu0 %v1315
    %v1317 = vpop.xlane.xlu0 %1316
    %v1318 = vsel %vm161, %v1314, 0.0
    %1319 = vadd.xlane.f32.xlu0 %v1318
    %v1320 = vpop.xlane.xlu0 %1319
    %v1321 = vmul.f32 %v1317, %v168
    %v1322 = vmul.f32 %v1320, %v168
    %v1323 = vadd.f32 %v1321, 1e-12
    %v1324 = vadd.f32 %v1322, 1e-12
    %v1325 = vrsqrt.pop %v1323
    %v1326 = vrsqrt.pop %v1324
    %v1327 = vmul.f32 %v1311, %v1325
    %v1328 = vmul.f32 %v1312, %v1326
    %v1330 = vlaneseq
    %v1331 = vshrl.u32 %v1330, 7
    %v1332 = vsub.s32 0, %v1331
    %v1333 = vrot.slane %v1301, %v1332
    %v1335 = vmul.f32 %v1327, %v1333
    %v1336 = vmul.f32 %v1328, %v1333
    %v1338 = vlaneseq
    %v1339 = vshrl.u32 %v1338, 7
    %v1340 = vsub.s32 0, %v1339
    %v1341 = vrot.slane %v1302, %v1340
    %v1343 = vadd.f32 %v1335, %v1341
    %v1344 = vadd.f32 %v1336, %v1341
    %v1345 = vpack.c.bf16 %v1344, %v1343
    %v1346 = vld [vmem:[%s10] sm:$0xf]
    %v1347 = vld [vmem:[%s10 + $0x4] sm:$0xf]
    %v1348 = vld [vmem:[%s10 + $0x8] sm:$0xf]
    %v1349 = vld [vmem:[%s10 + $0xc] sm:$0xf]
    %v1350 = vld [vmem:[%s11] sm:$0x1]
    %v1352 = vlaneseq
    %v1353 = vshrl.u32 %v1352, 7
    %v1354 = vsub.s32 0, %v1353
    %v1355 = vrot.slane %v1350, %v1354
    %v1361 = vunpack.c.l.b16 %v1346
    %v1362 = vunpack.c.l.b16 %v1347
    %v1363 = vunpack.c.l.b16 %v1348
    %v1364 = vunpack.c.l.b16 %v1349
    %v1365 = vpack.c.b16 %v1362, %v1361
    %v1366 = vpack.c.b16 %v1364, %v1363
    %v1370 = vsel %vm161, %v1345, 0
    %1372 = vmatprep.subr.bf16.mxu0 0
    %1373 = vmatpush1.bf16.msra.mxu0 0
    %1374 = vmatprep.subr.bf16.mxu0 0
    %1375 = vmatpush1.bf16.msra.mxu0 0
    %1376 = vmatprep.subr.bf16.mxu0 0
    %1377 = vmatpush1.bf16.msra.mxu0 0
    %1378 = vmatprep.subr.bf16.mxu0 0
    %1379 = vmatpush1.bf16.msra.mxu0 0
    %1380 = vmatprep.subr.bf16.mxu0 0
    %1381 = vmatpush1.bf16.msra.mxu0 0
    %1382 = vmatprep.subr.bf16.mxu0 0
    %1383 = vmatpush1.bf16.msra.mxu0 0
    %1384 = vmatprep.subr.bf16.mxu0 0
    %1385 = vmatpush1.bf16.msra.mxu0 %v1366
    %1386 = vmatprep.subr.bf16.mxu0 0
    %1387 = vmatpush1.bf16.msra.mxu0 %v1365
    %1388 = vmatprep.subr.bf16.mxu0 0
    %1389 = vmatpush2.bf16.msra.mxu0 0
    %1390 = vmatprep.subr.bf16.mxu0 0
    %1391 = vmatpush2.bf16.msra.mxu0 0
    %1392 = vmatprep.subr.bf16.mxu0 0
    %1393 = vmatpush2.bf16.msra.mxu0 0
    %1394 = vmatprep.subr.bf16.mxu0 0
    %1395 = vmatpush2.bf16.msra.mxu0 0
    %1396 = vmatprep.subr.bf16.mxu0 0
    %1397 = vmatpush2.bf16.msra.mxu0 0
    %1398 = vmatprep.subr.bf16.mxu0 0
    %1399 = vmatpush2.bf16.msra.mxu0 0
    %1400 = vmatprep.subr.bf16.mxu0 0
    %1401 = vmatpush2.bf16.msra.mxu0 0
    %1402 = vmatprep.subr.bf16.mxu0 0
    %1403 = vmatpush2.bf16.msra.mxu0 0
    %1404 = vmatprep.mubr.bf16.mxu0 0
    %1405 = vmatmul.mubr.bf16.gmra.mxu0 %v1370
    %v1406 = vpop.f32.mrf.mxu0
    %v1407 = vadd.f32 %v1355, %v1406
    %v1408 = vpop.f32.mrf.mxu0
    %v1409 = vpop.f32.mrf.mxu0
    %v1410 = vadd.f32 %v1355, %v1409
    %v1411 = vpop.f32.mrf.mxu0
    %1412 = vdwg.mxu0
    %v1413 = vmul.f32 %v1407, %v1407
    %v1414 = vmul.f32 %v1410, %v1410
    %v1415 = vmul.f32 %v1407, %v1413
    %v1416 = vmul.f32 %v1410, %v1414
    %v1417 = vmul.f32 %v1415, 0.044715
    %v1418 = vmul.f32 %v1416, 0.044715
    %v1419 = vadd.f32 %v1407, %v1417
    %v1420 = vadd.f32 %v1410, %v1418
    %v1421 = vmul.f32 %v1419, 0.7978846
    %v1422 = vmul.f32 %v1420, 0.7978846
    %v1423 = vtanh.pop %v1421
    %v1424 = vtanh.pop %v1422
    %v1425 = vadd.f32 %v1423, 1.0
    %v1426 = vadd.f32 %v1424, 1.0
    %v1427 = vmul.f32 %v1425, 0.5
    %v1428 = vmul.f32 %v1426, 0.5
    %v1429 = vmul.f32 %v1407, %v1427
    %v1430 = vmul.f32 %v1410, %v1428
    %v1431 = vpack.c.bf16 %v1430, %v1429
    %v1432 = vld [vmem:[%s12] sm:$0xf]
    %v1433 = vld [vmem:[%s12 + $0x4] sm:$0xf]
    %v1434 = vld [vmem:[%s12 + $0x8] sm:$0xf]
    %v1435 = vld [vmem:[%s12 + $0xc] sm:$0xf]
    %v1436 = vld [vmem:[%s12 + $0x10] sm:$0xf]
    %v1437 = vld [vmem:[%s12 + $0x14] sm:$0xf]
    %v1438 = vld [vmem:[%s12 + $0x18] sm:$0xf]
    %v1439 = vld [vmem:[%s12 + $0x1c] sm:$0xf]
    %v1440 = vld [vmem:[%s13] sm:$0x1]
    %v1442 = vlaneseq
    %v1443 = vshrl.u32 %v1442, 7
    %v1444 = vsub.s32 0, %v1443
    %v1445 = vrot.slane %v1440, %v1444
    %v1455 = vunpack.c.l.b16 %v1432
    %v1456 = vunpack.c.l.b16 %v1433
    %v1457 = vunpack.c.l.b16 %v1434
    %v1458 = vunpack.c.l.b16 %v1435
    %v1459 = vunpack.c.l.b16 %v1436
    %v1460 = vunpack.c.l.b16 %v1437
    %v1461 = vunpack.c.l.b16 %v1438
    %v1462 = vunpack.c.l.b16 %v1439
    %v1463 = vpack.c.b16 %v1456, %v1455
    %v1464 = vpack.c.b16 %v1458, %v1457
    %v1465 = vpack.c.b16 %v1460, %v1459
    %v1466 = vpack.c.b16 %v1462, %v1461
    %vm1471 = vcmask 523264
    %v1473 = vsel %vm1471, %v1431, 0
    %1475 = vmatprep.subr.bf16.mxu0 0
    %1476 = vmatpush1.bf16.msra.mxu0 0
    %1477 = vmatprep.subr.bf16.mxu0 0
    %1478 = vmatpush1.bf16.msra.mxu0 0
    %1479 = vmatprep.subr.bf16.mxu0 0
    %1480 = vmatpush1.bf16.msra.mxu0 0
    %1481 = vmatprep.subr.bf16.mxu0 0
    %1482 = vmatpush1.bf16.msra.mxu0 0
    %1483 = vmatprep.subr.bf16.mxu0 0
    %1484 = vmatpush1.bf16.msra.mxu0 %v1466
    %1485 = vmatprep.subr.bf16.mxu0 0
    %1486 = vmatpush1.bf16.msra.mxu0 %v1465
    %1487 = vmatprep.subr.bf16.mxu0 0
    %1488 = vmatpush1.bf16.msra.mxu0 %v1464
    %1489 = vmatprep.subr.bf16.mxu0 0
    %1490 = vmatpush1.bf16.msra.mxu0 %v1463
    %1491 = vmatprep.subr.bf16.mxu0 0
    %1492 = vmatpush2.bf16.msra.mxu0 0
    %1493 = vmatprep.subr.bf16.mxu0 0
    %1494 = vmatpush2.bf16.msra.mxu0 0
    %1495 = vmatprep.subr.bf16.mxu0 0
    %1496 = vmatpush2.bf16.msra.mxu0 0
    %1497 = vmatprep.subr.bf16.mxu0 0
    %1498 = vmatpush2.bf16.msra.mxu0 0
    %1499 = vmatprep.subr.bf16.mxu0 0
    %1500 = vmatpush2.bf16.msra.mxu0 0
    %1501 = vmatprep.subr.bf16.mxu0 0
    %1502 = vmatpush2.bf16.msra.mxu0 0
    %1503 = vmatprep.subr.bf16.mxu0 0
    %1504 = vmatpush2.bf16.msra.mxu0 0
    %1505 = vmatprep.subr.bf16.mxu0 0
    %1506 = vmatpush2.bf16.msra.mxu0 0
    %1507 = vmatprep.mubr.bf16.mxu0 0
    %1508 = vmatmul.mubr.bf16.gmra.mxu0 %v1473
    %v1509 = vpop.f32.mrf.mxu0
    %v1510 = vadd.f32 %v1445, %v1509
    %v1511 = vpop.f32.mrf.mxu0
    %v1512 = vpop.f32.mrf.mxu0
    %v1513 = vadd.f32 %v1445, %v1512
    %v1514 = vpop.f32.mrf.mxu0
    %1515 = vdwg.mxu0
    %v1516 = vadd.f32 %v1343, %v1510
    %v1517 = vadd.f32 %v1344, %v1513
    %v1518 = vld [vmem:[%s14] sm:$0x1]
    %v1519 = vld [vmem:[%s15] sm:$0x1]
    %v1520 = vsel %vm161, %v1516, 0.0
    %1521 = vadd.xlane.f32.xlu0 %v1520
    %v1522 = vpop.xlane.xlu0 %1521
    %v1523 = vsel %vm161, %v1517, 0.0
    %1524 = vadd.xlane.f32.xlu0 %v1523
    %v1525 = vpop.xlane.xlu0 %1524
    %v1526 = vmul.f32 %v1522, %v168
    %v1527 = vmul.f32 %v1525, %v168
    %v1528 = vsub.f32 %v1516, %v1526
    %v1529 = vsub.f32 %v1517, %v1527
    %v1530 = vmul.f32 %v1528, %v1528
    %v1531 = vmul.f32 %v1529, %v1529
    %v1532 = vsel %vm161, %v1530, 0.0
    %1533 = vadd.xlane.f32.xlu0 %v1532
    %v1534 = vpop.xlane.xlu0 %1533
    %v1535 = vsel %vm161, %v1531, 0.0
    %1536 = vadd.xlane.f32.xlu0 %v1535
    %v1537 = vpop.xlane.xlu0 %1536
    %v1538 = vmul.f32 %v1534, %v168
    %v1539 = vmul.f32 %v1537, %v168
    %v1540 = vadd.f32 %v1538, 1e-12
    %v1541 = vadd.f32 %v1539, 1e-12
    %v1542 = vrsqrt.pop %v1540
    %v1543 = vrsqrt.pop %v1541
    %v1544 = vmul.f32 %v1528, %v1542
    %v1545 = vmul.f32 %v1529, %v1543
    %v1547 = vlaneseq
    %v1548 = vshrl.u32 %v1547, 7
    %v1549 = vsub.s32 0, %v1548
    %v1550 = vrot.slane %v1518, %v1549
    %v1552 = vmul.f32 %v1544, %v1550
    %v1553 = vmul.f32 %v1545, %v1550
    %v1555 = vlaneseq
    %v1556 = vshrl.u32 %v1555, 7
    %v1557 = vsub.s32 0, %v1556
    %v1558 = vrot.slane %v1519, %v1557
    %v1560 = vadd.f32 %v1552, %v1558
    %v1561 = vadd.f32 %v1553, %v1558
    %v1562 = vpack.c.bf16 %v1561, %v1560
    %s1563 = scalar_lea.vmem %s4, 16
    %v1564 = vld [vmem:[%s1563] sm:$0xf]
    %v1565 = vld [vmem:[%s1563 + $0x4] sm:$0xf]
    %v1566 = vld [vmem:[%s1563 + $0x8] sm:$0xf]
    %v1567 = vld [vmem:[%s1563 + $0xc] sm:$0xf]
    %s1568 = scalar_lea.vmem [#allocation10], 1
    %v1569 = vld [vmem:[%s1568] sm:$0x1]
    %v1571 = vlaneseq
    %v1572 = vshrl.u32 %v1571, 7
    %v1573 = vsub.s32 0, %v1572
    %v1574 = vrot.slane %v1569, %v1573
    %v1580 = vunpack.c.l.b16 %v1564
    %v1581 = vunpack.c.l.b16 %v1565
    %v1582 = vunpack.c.l.b16 %v1566
    %v1583 = vunpack.c.l.b16 %v1567
    %v1584 = vpack.c.b16 %v1581, %v1580
    %v1585 = vpack.c.b16 %v1583, %v1582
    %v1589 = vsel %vm161, %v1562, 0
    %1591 = vmatprep.subr.bf16.mxu0 0
    %1592 = vmatpush1.bf16.msra.mxu0 0
    %1593 = vmatprep.subr.bf16.mxu0 0
    %1594 = vmatpush1.bf16.msra.mxu0 0
    %1595 = vmatprep.subr.bf16.mxu0 0
    %1596 = vmatpush1.bf16.msra.mxu0 0
    %1597 = vmatprep.subr.bf16.mxu0 0
    %1598 = vmatpush1.bf16.msra.mxu0 0
    %1599 = vmatprep.subr.bf16.mxu0 0
    %1600 = vmatpush1.bf16.msra.mxu0 0
    %1601 = vmatprep.subr.bf16.mxu0 0
    %1602 = vmatpush1.bf16.msra.mxu0 0
    %1603 = vmatprep.subr.bf16.mxu0 0
    %1604 = vmatpush1.bf16.msra.mxu0 %v1585
    %1605 = vmatprep.subr.bf16.mxu0 0
    %1606 = vmatpush1.bf16.msra.mxu0 %v1584
    %1607 = vmatprep.subr.bf16.mxu0 0
    %1608 = vmatpush2.bf16.msra.mxu0 0
    %1609 = vmatprep.subr.bf16.mxu0 0
    %1610 = vmatpush2.bf16.msra.mxu0 0
    %1611 = vmatprep.subr.bf16.mxu0 0
    %1612 = vmatpush2.bf16.msra.mxu0 0
    %1613 = vmatprep.subr.bf16.mxu0 0
    %1614 = vmatpush2.bf16.msra.mxu0 0
    %1615 = vmatprep.subr.bf16.mxu0 0
    %1616 = vmatpush2.bf16.msra.mxu0 0
    %1617 = vmatprep.subr.bf16.mxu0 0
    %1618 = vmatpush2.bf16.msra.mxu0 0
    %1619 = vmatprep.subr.bf16.mxu0 0
    %1620 = vmatpush2.bf16.msra.mxu0 0
    %1621 = vmatprep.subr.bf16.mxu0 0
    %1622 = vmatpush2.bf16.msra.mxu0 0
    %1623 = vmatprep.mubr.bf16.mxu0 0
    %1624 = vmatmul.mubr.bf16.gmra.mxu0 %v1589
    %v1625 = vpop.f32.mrf.mxu0
    %v1626 = vadd.f32 %v1574, %v1625
    %v1627 = vpop.f32.mrf.mxu0
    %v1628 = vpop.f32.mrf.mxu0
    %v1629 = vadd.f32 %v1574, %v1628
    %v1630 = vpop.f32.mrf.mxu0
    %1631 = vdwg.mxu0
    %v1632 = vmul.f32 %v1626, 0.35355338
    %v1633 = vmul.f32 %v1629, 0.35355338
    %v1634 = vpack.c.bf16 %v1633, %v1632
    %v1636 = vunpack.c.l.b16 %v1634
    %v1637 = vunpack.c.h.b16 %v1634
    %v1638 = vpack.c.b16 %v1636, %v1636
    %v1639 = vpack.c.b16 %v1637, %v1637
    %v1640 = vpack.c.bf16 %v1629, %v1626
    %v1642 = vunpack.c.l.b16 %v1640
    %v1643 = vunpack.c.h.b16 %v1640
    %v1644 = vpack.c.b16 %v1642, %v1642
    %1645 = vrot.lane.b32.xlu0 %v1644, 96
    %v1646 = vpop.permute.xlu0 %1645
    %v1648 = vsel %vm322, %v1638, 0
    %v1651 = vsel %vm322, %v1646, 0
    %1653 = vmatprep.subr.bf16.mxu0 0
    %1654 = vmatpush1.bf16.xpose.msra.mxu0 0
    %1655 = vmatprep.subr.bf16.mxu0 0
    %1656 = vmatpush1.bf16.xpose.msra.mxu0 0
    %1657 = vmatprep.subr.bf16.mxu0 0
    %1658 = vmatpush1.bf16.xpose.msra.mxu0 0
    %1659 = vmatprep.subr.bf16.mxu0 0
    %1660 = vmatpush1.bf16.xpose.msra.mxu0 0
    %1661 = vmatprep.subr.bf16.mxu0 0
    %1662 = vmatpush1.bf16.xpose.msra.mxu0 0
    %1663 = vmatprep.subr.bf16.mxu0 0
    %1664 = vmatpush1.bf16.xpose.msra.mxu0 0
    %1665 = vmatprep.subr.bf16.mxu0 0
    %1666 = vmatpush1.bf16.xpose.msra.mxu0 0
    %1667 = vmatprep.subr.bf16.mxu0 0
    %1668 = vmatpush1.bf16.xpose.msra.mxu0 %v1651
    %1669 = vmatprep.subr.bf16.mxu0 0
    %1670 = vmatpush2.bf16.xpose.msra.mxu0 0
    %1671 = vmatprep.subr.bf16.mxu0 0
    %1672 = vmatpush2.bf16.xpose.msra.mxu0 0
    %1673 = vmatprep.subr.bf16.mxu0 0
    %1674 = vmatpush2.bf16.xpose.msra.mxu0 0
    %1675 = vmatprep.subr.bf16.mxu0 0
    %1676 = vmatpush2.bf16.xpose.msra.mxu0 0
    %1677 = vmatprep.subr.bf16.mxu0 0
    %1678 = vmatpush2.bf16.xpose.msra.mxu0 0
    %1679 = vmatprep.subr.bf16.mxu0 0
    %1680 = vmatpush2.bf16.xpose.msra.mxu0 0
    %1681 = vmatprep.subr.bf16.mxu0 0
    %1682 = vmatpush2.bf16.xpose.msra.mxu0 0
    %1683 = vmatprep.subr.bf16.mxu0 0
    %1684 = vmatpush2.bf16.xpose.msra.mxu0 0
    %1685 = vmatprep.mubr.bf16.mxu0 0
    %1686 = vmatmul.mubr.bf16.gmra.mxu0 %v1648
    %v1687 = vpop.f32.mrf.mxu0
    %v1688 = vadd.f32 %v312, %v1687
    %v1689 = vpop.f32.mrf.mxu0
    %v1690 = vpop.f32.mrf.mxu0
    %v1691 = vpop.f32.mrf.mxu0
    %1692 = vdwg.mxu0
    %v1693 = vpack.c.b16 %v1643, %v1643
    %1694 = vrot.lane.b32.xlu0 %v1693, 96
    %v1695 = vpop.permute.xlu0 %1694
    %v1697 = vsel %vm322, %v1639, 0
    %v1700 = vsel %vm322, %v1695, 0
    %1702 = vmatprep.subr.bf16.mxu0 0
    %1703 = vmatpush1.bf16.xpose.msra.mxu0 0
    %1704 = vmatprep.subr.bf16.mxu0 0
    %1705 = vmatpush1.bf16.xpose.msra.mxu0 0
    %1706 = vmatprep.subr.bf16.mxu0 0
    %1707 = vmatpush1.bf16.xpose.msra.mxu0 0
    %1708 = vmatprep.subr.bf16.mxu0 0
    %1709 = vmatpush1.bf16.xpose.msra.mxu0 0
    %1710 = vmatprep.subr.bf16.mxu0 0
    %1711 = vmatpush1.bf16.xpose.msra.mxu0 0
    %1712 = vmatprep.subr.bf16.mxu0 0
    %1713 = vmatpush1.bf16.xpose.msra.mxu0 0
    %1714 = vmatprep.subr.bf16.mxu0 0
    %1715 = vmatpush1.bf16.xpose.msra.mxu0 0
    %1716 = vmatprep.subr.bf16.mxu0 0
    %1717 = vmatpush1.bf16.xpose.msra.mxu0 %v1700
    %1718 = vmatprep.subr.bf16.mxu0 0
    %1719 = vmatpush2.bf16.xpose.msra.mxu0 0
    %1720 = vmatprep.subr.bf16.mxu0 0
    %1721 = vmatpush2.bf16.xpose.msra.mxu0 0
    %1722 = vmatprep.subr.bf16.mxu0 0
    %1723 = vmatpush2.bf16.xpose.msra.mxu0 0
    %1724 = vmatprep.subr.bf16.mxu0 0
    %1725 = vmatpush2.bf16.xpose.msra.mxu0 0
    %1726 = vmatprep.subr.bf16.mxu0 0
    %1727 = vmatpush2.bf16.xpose.msra.mxu0 0
    %1728 = vmatprep.subr.bf16.mxu0 0
    %1729 = vmatpush2.bf16.xpose.msra.mxu0 0
    %1730 = vmatprep.subr.bf16.mxu0 0
    %1731 = vmatpush2.bf16.xpose.msra.mxu0 0
    %1732 = vmatprep.subr.bf16.mxu0 0
    %1733 = vmatpush2.bf16.xpose.msra.mxu0 0
    %1734 = vmatprep.mubr.bf16.mxu0 0
    %1735 = vmatmul.mubr.bf16.gmra.mxu0 %v1697
    %v1736 = vpop.f32.mrf.mxu0
    %v1737 = vadd.f32 %v316, %v1736
    %v1738 = vpop.f32.mrf.mxu0
    %v1739 = vpop.f32.mrf.mxu0
    %v1740 = vpop.f32.mrf.mxu0
    %1741 = vdwg.mxu0
    %v1742 = vsel %vm322, %v1688, -inf
    %1743 = vmax.xlane.f32.xlu0 %v1742
    %v1744 = vpop.xlane.xlu0 %1743
    %v1745 = vsel %vm322, %v1737, -inf
    %1746 = vmax.xlane.f32.xlu0 %v1745
    %v1747 = vpop.xlane.xlu0 %1746
    %v1748 = vsub.f32 %v1688, %v1744
    %v1749 = vsub.f32 %v1737, %v1747
    %v1750 = vmul.f32 %v1748, 1.442695
    %v1751 = vpow.pop %v1750
    %v1752 = vmul.f32 %v1749, 1.442695
    %v1753 = vpow.pop %v1752
    %v1754 = vsel %vm322, %v1751, 0.0
    %1755 = vadd.xlane.f32.xlu0 %v1754
    %v1756 = vpop.xlane.xlu0 %1755
    %v1757 = vsel %vm322, %v1753, 0.0
    %1758 = vadd.xlane.f32.xlu0 %v1757
    %v1759 = vpop.xlane.xlu0 %1758
    %v1760 = vrcp.pop %v1756
    %v1761 = vrcp.pop %v1759
    %v1762 = vmul.f32 %v1751, %v1760
    %v1763 = vmul.f32 %v1753, %v1761
    %v1764 = vpack.c.bf16 %v1762, %v1762
    %v1765 = vpack.c.bf16 %v1763, %v1763
    %1766 = vrot.lane.b32.xlu0 %v1644, 64
    %v1767 = vpop.permute.xlu0 %1766
    %v1769 = vsel %vm322, %v1764, 0
    %v1772 = vsel %vm447, %v1767, 0
    %1774 = vmatprep.subr.bf16.mxu0 0
    %1775 = vmatpush1.bf16.msra.mxu0 0
    %1776 = vmatprep.subr.bf16.mxu0 0
    %1777 = vmatpush1.bf16.msra.mxu0 0
    %1778 = vmatprep.subr.bf16.mxu0 0
    %1779 = vmatpush1.bf16.msra.mxu0 0
    %1780 = vmatprep.subr.bf16.mxu0 0
    %1781 = vmatpush1.bf16.msra.mxu0 0
    %1782 = vmatprep.subr.bf16.mxu0 0
    %1783 = vmatpush1.bf16.msra.mxu0 0
    %1784 = vmatprep.subr.bf16.mxu0 0
    %1785 = vmatpush1.bf16.msra.mxu0 0
    %1786 = vmatprep.subr.bf16.mxu0 0
    %1787 = vmatpush1.bf16.msra.mxu0 0
    %1788 = vmatprep.subr.bf16.mxu0 0
    %1789 = vmatpush1.bf16.msra.mxu0 %v1772
    %1790 = vmatprep.subr.bf16.mxu0 0
    %1791 = vmatpush2.bf16.msra.mxu0 0
    %1792 = vmatprep.subr.bf16.mxu0 0
    %1793 = vmatpush2.bf16.msra.mxu0 0
    %1794 = vmatprep.subr.bf16.mxu0 0
    %1795 = vmatpush2.bf16.msra.mxu0 0
    %1796 = vmatprep.subr.bf16.mxu0 0
    %1797 = vmatpush2.bf16.msra.mxu0 0
    %1798 = vmatprep.subr.bf16.mxu0 0
    %1799 = vmatpush2.bf16.msra.mxu0 0
    %1800 = vmatprep.subr.bf16.mxu0 0
    %1801 = vmatpush2.bf16.msra.mxu0 0
    %1802 = vmatprep.subr.bf16.mxu0 0
    %1803 = vmatpush2.bf16.msra.mxu0 0
    %1804 = vmatprep.subr.bf16.mxu0 0
    %1805 = vmatpush2.bf16.msra.mxu0 0
    %1806 = vmatprep.mubr.bf16.mxu0 0
    %1807 = vmatmul.mubr.bf16.gmra.mxu0 %v1769
    %v1808 = vpop.f32.mrf.mxu0
    %v1809 = vadd.f32 0.0, %v1808
    %v1810 = vpop.f32.mrf.mxu0
    %v1811 = vpop.f32.mrf.mxu0
    %v1812 = vpop.f32.mrf.mxu0
    %1813 = vdwg.mxu0
    %1814 = vrot.lane.b32.xlu0 %v1693, 64
    %v1815 = vpop.permute.xlu0 %1814
    %v1817 = vsel %vm322, %v1765, 0
    %v1820 = vsel %vm447, %v1815, 0
    %1822 = vmatprep.subr.bf16.mxu0 0
    %1823 = vmatpush1.bf16.msra.mxu0 0
    %1824 = vmatprep.subr.bf16.mxu0 0
    %1825 = vmatpush1.bf16.msra.mxu0 0
    %1826 = vmatprep.subr.bf16.mxu0 0
    %1827 = vmatpush1.bf16.msra.mxu0 0
    %1828 = vmatprep.subr.bf16.mxu0 0
    %1829 = vmatpush1.bf16.msra.mxu0 0
    %1830 = vmatprep.subr.bf16.mxu0 0
    %1831 = vmatpush1.bf16.msra.mxu0 0
    %1832 = vmatprep.subr.bf16.mxu0 0
    %1833 = vmatpush1.bf16.msra.mxu0 0
    %1834 = vmatprep.subr.bf16.mxu0 0
    %1835 = vmatpush1.bf16.msra.mxu0 0
    %1836 = vmatprep.subr.bf16.mxu0 0
    %1837 = vmatpush1.bf16.msra.mxu0 %v1820
    %1838 = vmatprep.subr.bf16.mxu0 0
    %1839 = vmatpush2.bf16.msra.mxu0 0
    %1840 = vmatprep.subr.bf16.mxu0 0
    %1841 = vmatpush2.bf16.msra.mxu0 0
    %1842 = vmatprep.subr.bf16.mxu0 0
    %1843 = vmatpush2.bf16.msra.mxu0 0
    %1844 = vmatprep.subr.bf16.mxu0 0
    %1845 = vmatpush2.bf16.msra.mxu0 0
    %1846 = vmatprep.subr.bf16.mxu0 0
    %1847 = vmatpush2.bf16.msra.mxu0 0
    %1848 = vmatprep.subr.bf16.mxu0 0
    %1849 = vmatpush2.bf16.msra.mxu0 0
    %1850 = vmatprep.subr.bf16.mxu0 0
    %1851 = vmatpush2.bf16.msra.mxu0 0
    %1852 = vmatprep.subr.bf16.mxu0 0
    %1853 = vmatpush2.bf16.msra.mxu0 0
    %1854 = vmatprep.mubr.bf16.mxu0 0
    %1855 = vmatmul.mubr.bf16.gmra.mxu0 %v1817
    %v1856 = vpop.f32.mrf.mxu0
    %v1857 = vadd.f32 0.0, %v1856
    %v1858 = vpop.f32.mrf.mxu0
    %v1859 = vpop.f32.mrf.mxu0
    %v1860 = vpop.f32.mrf.mxu0
    %1861 = vdwg.mxu0
    %1862 = vrot.lane.b32.xlu0 %v1638, 120
    %v1863 = vpop.permute.xlu0 %1862
    %1864 = vrot.lane.b32.xlu0 %v1644, 88
    %v1865 = vpop.permute.xlu0 %1864
    %v1867 = vsel %vm322, %v1863, 0
    %v1870 = vsel %vm322, %v1865, 0
    %1872 = vmatprep.subr.bf16.mxu0 0
    %1873 = vmatpush1.bf16.xpose.msra.mxu0 0
    %1874 = vmatprep.subr.bf16.mxu0 0
    %1875 = vmatpush1.bf16.xpose.msra.mxu0 0
    %1876 = vmatprep.subr.bf16.mxu0 0
    %1877 = vmatpush1.bf16.xpose.msra.mxu0 0
    %1878 = vmatprep.subr.bf16.mxu0 0
    %1879 = vmatpush1.bf16.xpose.msra.mxu0 0
    %1880 = vmatprep.subr.bf16.mxu0 0
    %1881 = vmatpush1.bf16.xpose.msra.mxu0 0
    %1882 = vmatprep.subr.bf16.mxu0 0
    %1883 = vmatpush1.bf16.xpose.msra.mxu0 0
    %1884 = vmatprep.subr.bf16.mxu0 0
    %1885 = vmatpush1.bf16.xpose.msra.mxu0 0
    %1886 = vmatprep.subr.bf16.mxu0 0
    %1887 = vmatpush1.bf16.xpose.msra.mxu0 %v1870
    %1888 = vmatprep.subr.bf16.mxu0 0
    %1889 = vmatpush2.bf16.xpose.msra.mxu0 0
    %1890 = vmatprep.subr.bf16.mxu0 0
    %1891 = vmatpush2.bf16.xpose.msra.mxu0 0
    %1892 = vmatprep.subr.bf16.mxu0 0
    %1893 = vmatpush2.bf16.xpose.msra.mxu0 0
    %1894 = vmatprep.subr.bf16.mxu0 0
    %1895 = vmatpush2.bf16.xpose.msra.mxu0 0
    %1896 = vmatprep.subr.bf16.mxu0 0
    %1897 = vmatpush2.bf16.xpose.msra.mxu0 0
    %1898 = vmatprep.subr.bf16.mxu0 0
    %1899 = vmatpush2.bf16.xpose.msra.mxu0 0
    %1900 = vmatprep.subr.bf16.mxu0 0
    %1901 = vmatpush2.bf16.xpose.msra.mxu0 0
    %1902 = vmatprep.subr.bf16.mxu0 0
    %1903 = vmatpush2.bf16.xpose.msra.mxu0 0
    %1904 = vmatprep.mubr.bf16.mxu0 0
    %1905 = vmatmul.mubr.bf16.gmra.mxu0 %v1867
    %v1906 = vpop.f32.mrf.mxu0
    %v1907 = vadd.f32 %v312, %v1906
    %v1908 = vpop.f32.mrf.mxu0
    %v1909 = vpop.f32.mrf.mxu0
    %v1910 = vpop.f32.mrf.mxu0
    %1911 = vdwg.mxu0
    %1912 = vrot.lane.b32.xlu0 %v1639, 120
    %v1913 = vpop.permute.xlu0 %1912
    %1914 = vrot.lane.b32.xlu0 %v1693, 88
    %v1915 = vpop.permute.xlu0 %1914
    %v1917 = vsel %vm322, %v1913, 0
    %v1920 = vsel %vm322, %v1915, 0
    %1922 = vmatprep.subr.bf16.mxu0 0
    %1923 = vmatpush1.bf16.xpose.msra.mxu0 0
    %1924 = vmatprep.subr.bf16.mxu0 0
    %1925 = vmatpush1.bf16.xpose.msra.mxu0 0
    %1926 = vmatprep.subr.bf16.mxu0 0
    %1927 = vmatpush1.bf16.xpose.msra.mxu0 0
    %1928 = vmatprep.subr.bf16.mxu0 0
    %1929 = vmatpush1.bf16.xpose.msra.mxu0 0
    %1930 = vmatprep.subr.bf16.mxu0 0
    %1931 = vmatpush1.bf16.xpose.msra.mxu0 0
    %1932 = vmatprep.subr.bf16.mxu0 0
    %1933 = vmatpush1.bf16.xpose.msra.mxu0 0
    %1934 = vmatprep.subr.bf16.mxu0 0
    %1935 = vmatpush1.bf16.xpose.msra.mxu0 0
    %1936 = vmatprep.subr.bf16.mxu0 0
    %1937 = vmatpush1.bf16.xpose.msra.mxu0 %v1920
    %1938 = vmatprep.subr.bf16.mxu0 0
    %1939 = vmatpush2.bf16.xpose.msra.mxu0 0
    %1940 = vmatprep.subr.bf16.mxu0 0
    %1941 = vmatpush2.bf16.xpose.msra.mxu0 0
    %1942 = vmatprep.subr.bf16.mxu0 0
    %1943 = vmatpush2.bf16.xpose.msra.mxu0 0
    %1944 = vmatprep.subr.bf16.mxu0 0
    %1945 = vmatpush2.bf16.xpose.msra.mxu0 0
    %1946 = vmatprep.subr.bf16.mxu0 0
    %1947 = vmatpush2.bf16.xpose.msra.mxu0 0
    %1948 = vmatprep.subr.bf16.mxu0 0
    %1949 = vmatpush2.bf16.xpose.msra.mxu0 0
    %1950 = vmatprep.subr.bf16.mxu0 0
    %1951 = vmatpush2.bf16.xpose.msra.mxu0 0
    %1952 = vmatprep.subr.bf16.mxu0 0
    %1953 = vmatpush2.bf16.xpose.msra.mxu0 0
    %1954 = vmatprep.mubr.bf16.mxu0 0
    %1955 = vmatmul.mubr.bf16.gmra.mxu0 %v1917
    %v1956 = vpop.f32.mrf.mxu0
    %v1957 = vadd.f32 %v316, %v1956
    %v1958 = vpop.f32.mrf.mxu0
    %v1959 = vpop.f32.mrf.mxu0
    %v1960 = vpop.f32.mrf.mxu0
    %1961 = vdwg.mxu0
    %v1962 = vsel %vm322, %v1907, -inf
    %1963 = vmax.xlane.f32.xlu0 %v1962
    %v1964 = vpop.xlane.xlu0 %1963
    %v1965 = vsel %vm322, %v1957, -inf
    %1966 = vmax.xlane.f32.xlu0 %v1965
    %v1967 = vpop.xlane.xlu0 %1966
    %v1968 = vsub.f32 %v1907, %v1964
    %v1969 = vsub.f32 %v1957, %v1967
    %v1970 = vmul.f32 %v1968, 1.442695
    %v1971 = vpow.pop %v1970
    %v1972 = vmul.f32 %v1969, 1.442695
    %v1973 = vpow.pop %v1972
    %v1974 = vsel %vm322, %v1971, 0.0
    %1975 = vadd.xlane.f32.xlu0 %v1974
    %v1976 = vpop.xlane.xlu0 %1975
    %v1977 = vsel %vm322, %v1973, 0.0
    %1978 = vadd.xlane.f32.xlu0 %v1977
    %v1979 = vpop.xlane.xlu0 %1978
    %v1980 = vrcp.pop %v1976
    %v1981 = vrcp.pop %v1979
    %v1982 = vmul.f32 %v1971, %v1980
    %v1983 = vmul.f32 %v1973, %v1981
    %v1984 = vpack.c.bf16 %v1982, %v1982
    %v1985 = vpack.c.bf16 %v1983, %v1983
    %1986 = vrot.lane.b32.xlu0 %v1644, 56
    %v1987 = vpop.permute.xlu0 %1986
    %v1989 = vsel %vm322, %v1984, 0
    %v1992 = vsel %vm447, %v1987, 0
    %1994 = vmatprep.subr.bf16.mxu0 0
    %1995 = vmatpush1.bf16.msra.mxu0 0
    %1996 = vmatprep.subr.bf16.mxu0 0
    %1997 = vmatpush1.bf16.msra.mxu0 0
    %1998 = vmatprep.subr.bf16.mxu0 0
    %1999 = vmatpush1.bf16.msra.mxu0 0
    %2000 = vmatprep.subr.bf16.mxu0 0
    %2001 = vmatpush1.bf16.msra.mxu0 0
    %2002 = vmatprep.subr.bf16.mxu0 0
    %2003 = vmatpush1.bf16.msra.mxu0 0
    %2004 = vmatprep.subr.bf16.mxu0 0
    %2005 = vmatpush1.bf16.msra.mxu0 0
    %2006 = vmatprep.subr.bf16.mxu0 0
    %2007 = vmatpush1.bf16.msra.mxu0 0
    %2008 = vmatprep.subr.bf16.mxu0 0
    %2009 = vmatpush1.bf16.msra.mxu0 %v1992
    %2010 = vmatprep.subr.bf16.mxu0 0
    %2011 = vmatpush2.bf16.msra.mxu0 0
    %2012 = vmatprep.subr.bf16.mxu0 0
    %2013 = vmatpush2.bf16.msra.mxu0 0
    %2014 = vmatprep.subr.bf16.mxu0 0
    %2015 = vmatpush2.bf16.msra.mxu0 0
    %2016 = vmatprep.subr.bf16.mxu0 0
    %2017 = vmatpush2.bf16.msra.mxu0 0
    %2018 = vmatprep.subr.bf16.mxu0 0
    %2019 = vmatpush2.bf16.msra.mxu0 0
    %2020 = vmatprep.subr.bf16.mxu0 0
    %2021 = vmatpush2.bf16.msra.mxu0 0
    %2022 = vmatprep.subr.bf16.mxu0 0
    %2023 = vmatpush2.bf16.msra.mxu0 0
    %2024 = vmatprep.subr.bf16.mxu0 0
    %2025 = vmatpush2.bf16.msra.mxu0 0
    %2026 = vmatprep.mubr.bf16.mxu0 0
    %2027 = vmatmul.mubr.bf16.gmra.mxu0 %v1989
    %v2028 = vpop.f32.mrf.mxu0
    %v2029 = vadd.f32 0.0, %v2028
    %v2030 = vpop.f32.mrf.mxu0
    %v2031 = vpop.f32.mrf.mxu0
    %v2032 = vpop.f32.mrf.mxu0
    %2033 = vdwg.mxu0
    %2034 = vrot.lane.b32.xlu0 %v1693, 56
    %v2035 = vpop.permute.xlu0 %2034
    %v2037 = vsel %vm322, %v1985, 0
    %v2040 = vsel %vm447, %v2035, 0
    %2042 = vmatprep.subr.bf16.mxu0 0
    %2043 = vmatpush1.bf16.msra.mxu0 0
    %2044 = vmatprep.subr.bf16.mxu0 0
    %2045 = vmatpush1.bf16.msra.mxu0 0
    %2046 = vmatprep.subr.bf16.mxu0 0
    %2047 = vmatpush1.bf16.msra.mxu0 0
    %2048 = vmatprep.subr.bf16.mxu0 0
    %2049 = vmatpush1.bf16.msra.mxu0 0
    %2050 = vmatprep.subr.bf16.mxu0 0
    %2051 = vmatpush1.bf16.msra.mxu0 0
    %2052 = vmatprep.subr.bf16.mxu0 0
    %2053 = vmatpush1.bf16.msra.mxu0 0
    %2054 = vmatprep.subr.bf16.mxu0 0
    %2055 = vmatpush1.bf16.msra.mxu0 0
    %2056 = vmatprep.subr.bf16.mxu0 0
    %2057 = vmatpush1.bf16.msra.mxu0 %v2040
    %2058 = vmatprep.subr.bf16.mxu0 0
    %2059 = vmatpush2.bf16.msra.mxu0 0
    %2060 = vmatprep.subr.bf16.mxu0 0
    %2061 = vmatpush2.bf16.msra.mxu0 0
    %2062 = vmatprep.subr.bf16.mxu0 0
    %2063 = vmatpush2.bf16.msra.mxu0 0
    %2064 = vmatprep.subr.bf16.mxu0 0
    %2065 = vmatpush2.bf16.msra.mxu0 0
    %2066 = vmatprep.subr.bf16.mxu0 0
    %2067 = vmatpush2.bf16.msra.mxu0 0
    %2068 = vmatprep.subr.bf16.mxu0 0
    %2069 = vmatpush2.bf16.msra.mxu0 0
    %2070 = vmatprep.subr.bf16.mxu0 0
    %2071 = vmatpush2.bf16.msra.mxu0 0
    %2072 = vmatprep.subr.bf16.mxu0 0
    %2073 = vmatpush2.bf16.msra.mxu0 0
    %2074 = vmatprep.mubr.bf16.mxu0 0
    %2075 = vmatmul.mubr.bf16.gmra.mxu0 %v2037
    %v2076 = vpop.f32.mrf.mxu0
    %v2077 = vadd.f32 0.0, %v2076
    %v2078 = vpop.f32.mrf.mxu0
    %v2079 = vpop.f32.mrf.mxu0
    %v2080 = vpop.f32.mrf.mxu0
    %2081 = vdwg.mxu0
    %2082 = vrot.lane.b32.xlu0 %v1638, 112
    %v2083 = vpop.permute.xlu0 %2082
    %2084 = vrot.lane.b32.xlu0 %v1644, 80
    %v2085 = vpop.permute.xlu0 %2084
    %v2087 = vsel %vm322, %v2083, 0
    %v2090 = vsel %vm322, %v2085, 0
    %2092 = vmatprep.subr.bf16.mxu0 0
    %2093 = vmatpush1.bf16.xpose.msra.mxu0 0
    %2094 = vmatprep.subr.bf16.mxu0 0
    %2095 = vmatpush1.bf16.xpose.msra.mxu0 0
    %2096 = vmatprep.subr.bf16.mxu0 0
    %2097 = vmatpush1.bf16.xpose.msra.mxu0 0
    %2098 = vmatprep.subr.bf16.mxu0 0
    %2099 = vmatpush1.bf16.xpose.msra.mxu0 0
    %2100 = vmatprep.subr.bf16.mxu0 0
    %2101 = vmatpush1.bf16.xpose.msra.mxu0 0
    %2102 = vmatprep.subr.bf16.mxu0 0
    %2103 = vmatpush1.bf16.xpose.msra.mxu0 0
    %2104 = vmatprep.subr.bf16.mxu0 0
    %2105 = vmatpush1.bf16.xpose.msra.mxu0 0
    %2106 = vmatprep.subr.bf16.mxu0 0
    %2107 = vmatpush1.bf16.xpose.msra.mxu0 %v2090
    %2108 = vmatprep.subr.bf16.mxu0 0
    %2109 = vmatpush2.bf16.xpose.msra.mxu0 0
    %2110 = vmatprep.subr.bf16.mxu0 0
    %2111 = vmatpush2.bf16.xpose.msra.mxu0 0
    %2112 = vmatprep.subr.bf16.mxu0 0
    %2113 = vmatpush2.bf16.xpose.msra.mxu0 0
    %2114 = vmatprep.subr.bf16.mxu0 0
    %2115 = vmatpush2.bf16.xpose.msra.mxu0 0
    %2116 = vmatprep.subr.bf16.mxu0 0
    %2117 = vmatpush2.bf16.xpose.msra.mxu0 0
    %2118 = vmatprep.subr.bf16.mxu0 0
    %2119 = vmatpush2.bf16.xpose.msra.mxu0 0
    %2120 = vmatprep.subr.bf16.mxu0 0
    %2121 = vmatpush2.bf16.xpose.msra.mxu0 0
    %2122 = vmatprep.subr.bf16.mxu0 0
    %2123 = vmatpush2.bf16.xpose.msra.mxu0 0
    %2124 = vmatprep.mubr.bf16.mxu0 0
    %2125 = vmatmul.mubr.bf16.gmra.mxu0 %v2087
    %v2126 = vpop.f32.mrf.mxu0
    %v2127 = vadd.f32 %v312, %v2126
    %v2128 = vpop.f32.mrf.mxu0
    %v2129 = vpop.f32.mrf.mxu0
    %v2130 = vpop.f32.mrf.mxu0
    %2131 = vdwg.mxu0
    %2132 = vrot.lane.b32.xlu0 %v1639, 112
    %v2133 = vpop.permute.xlu0 %2132
    %2134 = vrot.lane.b32.xlu0 %v1693, 80
    %v2135 = vpop.permute.xlu0 %2134
    %v2137 = vsel %vm322, %v2133, 0
    %v2140 = vsel %vm322, %v2135, 0
    %2142 = vmatprep.subr.bf16.mxu0 0
    %2143 = vmatpush1.bf16.xpose.msra.mxu0 0
    %2144 = vmatprep.subr.bf16.mxu0 0
    %2145 = vmatpush1.bf16.xpose.msra.mxu0 0
    %2146 = vmatprep.subr.bf16.mxu0 0
    %2147 = vmatpush1.bf16.xpose.msra.mxu0 0
    %2148 = vmatprep.subr.bf16.mxu0 0
    %2149 = vmatpush1.bf16.xpose.msra.mxu0 0
    %2150 = vmatprep.subr.bf16.mxu0 0
    %2151 = vmatpush1.bf16.xpose.msra.mxu0 0
    %2152 = vmatprep.subr.bf16.mxu0 0
    %2153 = vmatpush1.bf16.xpose.msra.mxu0 0
    %2154 = vmatprep.subr.bf16.mxu0 0
    %2155 = vmatpush1.bf16.xpose.msra.mxu0 0
    %2156 = vmatprep.subr.bf16.mxu0 0
    %2157 = vmatpush1.bf16.xpose.msra.mxu0 %v2140
    %2158 = vmatprep.subr.bf16.mxu0 0
    %2159 = vmatpush2.bf16.xpose.msra.mxu0 0
    %2160 = vmatprep.subr.bf16.mxu0 0
    %2161 = vmatpush2.bf16.xpose.msra.mxu0 0
    %2162 = vmatprep.subr.bf16.mxu0 0
    %2163 = vmatpush2.bf16.xpose.msra.mxu0 0
    %2164 = vmatprep.subr.bf16.mxu0 0
    %2165 = vmatpush2.bf16.xpose.msra.mxu0 0
    %2166 = vmatprep.subr.bf16.mxu0 0
    %2167 = vmatpush2.bf16.xpose.msra.mxu0 0
    %2168 = vmatprep.subr.bf16.mxu0 0
    %2169 = vmatpush2.bf16.xpose.msra.mxu0 0
    %2170 = vmatprep.subr.bf16.mxu0 0
    %2171 = vmatpush2.bf16.xpose.msra.mxu0 0
    %2172 = vmatprep.subr.bf16.mxu0 0
    %2173 = vmatpush2.bf16.xpose.msra.mxu0 0
    %2174 = vmatprep.mubr.bf16.mxu0 0
    %2175 = vmatmul.mubr.bf16.gmra.mxu0 %v2137
    %v2176 = vpop.f32.mrf.mxu0
    %v2177 = vadd.f32 %v316, %v2176
    %v2178 = vpop.f32.mrf.mxu0
    %v2179 = vpop.f32.mrf.mxu0
    %v2180 = vpop.f32.mrf.mxu0
    %2181 = vdwg.mxu0
    %v2182 = vsel %vm322, %v2127, -inf
    %2183 = vmax.xlane.f32.xlu0 %v2182
    %v2184 = vpop.xlane.xlu0 %2183
    %v2185 = vsel %vm322, %v2177, -inf
    %2186 = vmax.xlane.f32.xlu0 %v2185
    %v2187 = vpop.xlane.xlu0 %2186
    %v2188 = vsub.f32 %v2127, %v2184
    %v2189 = vsub.f32 %v2177, %v2187
    %v2190 = vmul.f32 %v2188, 1.442695
    %v2191 = vpow.pop %v2190
    %v2192 = vmul.f32 %v2189, 1.442695
    %v2193 = vpow.pop %v2192
    %v2194 = vsel %vm322, %v2191, 0.0
    %2195 = vadd.xlane.f32.xlu0 %v2194
    %v2196 = vpop.xlane.xlu0 %2195
    %v2197 = vsel %vm322, %v2193, 0.0
    %2198 = vadd.xlane.f32.xlu0 %v2197
    %v2199 = vpop.xlane.xlu0 %2198
    %v2200 = vrcp.pop %v2196
    %v2201 = vrcp.pop %v2199
    %v2202 = vmul.f32 %v2191, %v2200
    %v2203 = vmul.f32 %v2193, %v2201
    %v2204 = vpack.c.bf16 %v2202, %v2202
    %v2205 = vpack.c.bf16 %v2203, %v2203
    %2206 = vrot.lane.b32.xlu0 %v1644, 48
    %v2207 = vpop.permute.xlu0 %2206
    %v2209 = vsel %vm322, %v2204, 0
    %v2212 = vsel %vm447, %v2207, 0
    %2214 = vmatprep.subr.bf16.mxu0 0
    %2215 = vmatpush1.bf16.msra.mxu0 0
    %2216 = vmatprep.subr.bf16.mxu0 0
    %2217 = vmatpush1.bf16.msra.mxu0 0
    %2218 = vmatprep.subr.bf16.mxu0 0
    %2219 = vmatpush1.bf16.msra.mxu0 0
    %2220 = vmatprep.subr.bf16.mxu0 0
    %2221 = vmatpush1.bf16.msra.mxu0 0
    %2222 = vmatprep.subr.bf16.mxu0 0
    %2223 = vmatpush1.bf16.msra.mxu0 0
    %2224 = vmatprep.subr.bf16.mxu0 0
    %2225 = vmatpush1.bf16.msra.mxu0 0
    %2226 = vmatprep.subr.bf16.mxu0 0
    %2227 = vmatpush1.bf16.msra.mxu0 0
    %2228 = vmatprep.subr.bf16.mxu0 0
    %2229 = vmatpush1.bf16.msra.mxu0 %v2212
    %2230 = vmatprep.subr.bf16.mxu0 0
    %2231 = vmatpush2.bf16.msra.mxu0 0
    %2232 = vmatprep.subr.bf16.mxu0 0
    %2233 = vmatpush2.bf16.msra.mxu0 0
    %2234 = vmatprep.subr.bf16.mxu0 0
    %2235 = vmatpush2.bf16.msra.mxu0 0
    %2236 = vmatprep.subr.bf16.mxu0 0
    %2237 = vmatpush2.bf16.msra.mxu0 0
    %2238 = vmatprep.subr.bf16.mxu0 0
    %2239 = vmatpush2.bf16.msra.mxu0 0
    %2240 = vmatprep.subr.bf16.mxu0 0
    %2241 = vmatpush2.bf16.msra.mxu0 0
    %2242 = vmatprep.subr.bf16.mxu0 0
    %2243 = vmatpush2.bf16.msra.mxu0 0
    %2244 = vmatprep.subr.bf16.mxu0 0
    %2245 = vmatpush2.bf16.msra.mxu0 0
    %2246 = vmatprep.mubr.bf16.mxu0 0
    %2247 = vmatmul.mubr.bf16.gmra.mxu0 %v2209
    %v2248 = vpop.f32.mrf.mxu0
    %v2249 = vadd.f32 0.0, %v2248
    %v2250 = vpop.f32.mrf.mxu0
    %v2251 = vpop.f32.mrf.mxu0
    %v2252 = vpop.f32.mrf.mxu0
    %2253 = vdwg.mxu0
    %2254 = vrot.lane.b32.xlu0 %v1693, 48
    %v2255 = vpop.permute.xlu0 %2254
    %v2257 = vsel %vm322, %v2205, 0
    %v2260 = vsel %vm447, %v2255, 0
    %2262 = vmatprep.subr.bf16.mxu0 0
    %2263 = vmatpush1.bf16.msra.mxu0 0
    %2264 = vmatprep.subr.bf16.mxu0 0
    %2265 = vmatpush1.bf16.msra.mxu0 0
    %2266 = vmatprep.subr.bf16.mxu0 0
    %2267 = vmatpush1.bf16.msra.mxu0 0
    %2268 = vmatprep.subr.bf16.mxu0 0
    %2269 = vmatpush1.bf16.msra.mxu0 0
    %2270 = vmatprep.subr.bf16.mxu0 0
    %2271 = vmatpush1.bf16.msra.mxu0 0
    %2272 = vmatprep.subr.bf16.mxu0 0
    %2273 = vmatpush1.bf16.msra.mxu0 0
    %2274 = vmatprep.subr.bf16.mxu0 0
    %2275 = vmatpush1.bf16.msra.mxu0 0
    %2276 = vmatprep.subr.bf16.mxu0 0
    %2277 = vmatpush1.bf16.msra.mxu0 %v2260
    %2278 = vmatprep.subr.bf16.mxu0 0
    %2279 = vmatpush2.bf16.msra.mxu0 0
    %2280 = vmatprep.subr.bf16.mxu0 0
    %2281 = vmatpush2.bf16.msra.mxu0 0
    %2282 = vmatprep.subr.bf16.mxu0 0
    %2283 = vmatpush2.bf16.msra.mxu0 0
    %2284 = vmatprep.subr.bf16.mxu0 0
    %2285 = vmatpush2.bf16.msra.mxu0 0
    %2286 = vmatprep.subr.bf16.mxu0 0
    %2287 = vmatpush2.bf16.msra.mxu0 0
    %2288 = vmatprep.subr.bf16.mxu0 0
    %2289 = vmatpush2.bf16.msra.mxu0 0
    %2290 = vmatprep.subr.bf16.mxu0 0
    %2291 = vmatpush2.bf16.msra.mxu0 0
    %2292 = vmatprep.subr.bf16.mxu0 0
    %2293 = vmatpush2.bf16.msra.mxu0 0
    %2294 = vmatprep.mubr.bf16.mxu0 0
    %2295 = vmatmul.mubr.bf16.gmra.mxu0 %v2257
    %v2296 = vpop.f32.mrf.mxu0
    %v2297 = vadd.f32 0.0, %v2296
    %v2298 = vpop.f32.mrf.mxu0
    %v2299 = vpop.f32.mrf.mxu0
    %v2300 = vpop.f32.mrf.mxu0
    %2301 = vdwg.mxu0
    %2302 = vrot.lane.b32.xlu0 %v1638, 104
    %v2303 = vpop.permute.xlu0 %2302
    %2304 = vrot.lane.b32.xlu0 %v1644, 72
    %v2305 = vpop.permute.xlu0 %2304
    %v2307 = vsel %vm322, %v2303, 0
    %v2310 = vsel %vm322, %v2305, 0
    %2312 = vmatprep.subr.bf16.mxu0 0
    %2313 = vmatpush1.bf16.xpose.msra.mxu0 0
    %2314 = vmatprep.subr.bf16.mxu0 0
    %2315 = vmatpush1.bf16.xpose.msra.mxu0 0
    %2316 = vmatprep.subr.bf16.mxu0 0
    %2317 = vmatpush1.bf16.xpose.msra.mxu0 0
    %2318 = vmatprep.subr.bf16.mxu0 0
    %2319 = vmatpush1.bf16.xpose.msra.mxu0 0
    %2320 = vmatprep.subr.bf16.mxu0 0
    %2321 = vmatpush1.bf16.xpose.msra.mxu0 0
    %2322 = vmatprep.subr.bf16.mxu0 0
    %2323 = vmatpush1.bf16.xpose.msra.mxu0 0
    %2324 = vmatprep.subr.bf16.mxu0 0
    %2325 = vmatpush1.bf16.xpose.msra.mxu0 0
    %2326 = vmatprep.subr.bf16.mxu0 0
    %2327 = vmatpush1.bf16.xpose.msra.mxu0 %v2310
    %2328 = vmatprep.subr.bf16.mxu0 0
    %2329 = vmatpush2.bf16.xpose.msra.mxu0 0
    %2330 = vmatprep.subr.bf16.mxu0 0
    %2331 = vmatpush2.bf16.xpose.msra.mxu0 0
    %2332 = vmatprep.subr.bf16.mxu0 0
    %2333 = vmatpush2.bf16.xpose.msra.mxu0 0
    %2334 = vmatprep.subr.bf16.mxu0 0
    %2335 = vmatpush2.bf16.xpose.msra.mxu0 0
    %2336 = vmatprep.subr.bf16.mxu0 0
    %2337 = vmatpush2.bf16.xpose.msra.mxu0 0
    %2338 = vmatprep.subr.bf16.mxu0 0
    %2339 = vmatpush2.bf16.xpose.msra.mxu0 0
    %2340 = vmatprep.subr.bf16.mxu0 0
    %2341 = vmatpush2.bf16.xpose.msra.mxu0 0
    %2342 = vmatprep.subr.bf16.mxu0 0
    %2343 = vmatpush2.bf16.xpose.msra.mxu0 0
    %2344 = vmatprep.mubr.bf16.mxu0 0
    %2345 = vmatmul.mubr.bf16.gmra.mxu0 %v2307
    %v2346 = vpop.f32.mrf.mxu0
    %v2347 = vadd.f32 %v312, %v2346
    %v2348 = vpop.f32.mrf.mxu0
    %v2349 = vpop.f32.mrf.mxu0
    %v2350 = vpop.f32.mrf.mxu0
    %2351 = vdwg.mxu0
    %2352 = vrot.lane.b32.xlu0 %v1639, 104
    %v2353 = vpop.permute.xlu0 %2352
    %2354 = vrot.lane.b32.xlu0 %v1693, 72
    %v2355 = vpop.permute.xlu0 %2354
    %v2357 = vsel %vm322, %v2353, 0
    %v2360 = vsel %vm322, %v2355, 0
    %2362 = vmatprep.subr.bf16.mxu0 0
    %2363 = vmatpush1.bf16.xpose.msra.mxu0 0
    %2364 = vmatprep.subr.bf16.mxu0 0
    %2365 = vmatpush1.bf16.xpose.msra.mxu0 0
    %2366 = vmatprep.subr.bf16.mxu0 0
    %2367 = vmatpush1.bf16.xpose.msra.mxu0 0
    %2368 = vmatprep.subr.bf16.mxu0 0
    %2369 = vmatpush1.bf16.xpose.msra.mxu0 0
    %2370 = vmatprep.subr.bf16.mxu0 0
    %2371 = vmatpush1.bf16.xpose.msra.mxu0 0
    %2372 = vmatprep.subr.bf16.mxu0 0
    %2373 = vmatpush1.bf16.xpose.msra.mxu0 0
    %2374 = vmatprep.subr.bf16.mxu0 0
    %2375 = vmatpush1.bf16.xpose.msra.mxu0 0
    %2376 = vmatprep.subr.bf16.mxu0 0
    %2377 = vmatpush1.bf16.xpose.msra.mxu0 %v2360
    %2378 = vmatprep.subr.bf16.mxu0 0
    %2379 = vmatpush2.bf16.xpose.msra.mxu0 0
    %2380 = vmatprep.subr.bf16.mxu0 0
    %2381 = vmatpush2.bf16.xpose.msra.mxu0 0
    %2382 = vmatprep.subr.bf16.mxu0 0
    %2383 = vmatpush2.bf16.xpose.msra.mxu0 0
    %2384 = vmatprep.subr.bf16.mxu0 0
    %2385 = vmatpush2.bf16.xpose.msra.mxu0 0
    %2386 = vmatprep.subr.bf16.mxu0 0
    %2387 = vmatpush2.bf16.xpose.msra.mxu0 0
    %2388 = vmatprep.subr.bf16.mxu0 0
    %2389 = vmatpush2.bf16.xpose.msra.mxu0 0
    %2390 = vmatprep.subr.bf16.mxu0 0
    %2391 = vmatpush2.bf16.xpose.msra.mxu0 0
    %2392 = vmatprep.subr.bf16.mxu0 0
    %2393 = vmatpush2.bf16.xpose.msra.mxu0 0
    %2394 = vmatprep.mubr.bf16.mxu0 0
    %2395 = vmatmul.mubr.bf16.gmra.mxu0 %v2357
    %v2396 = vpop.f32.mrf.mxu0
    %v2397 = vadd.f32 %v316, %v2396
    %v2398 = vpop.f32.mrf.mxu0
    %v2399 = vpop.f32.mrf.mxu0
    %v2400 = vpop.f32.mrf.mxu0
    %2401 = vdwg.mxu0
    %v2402 = vsel %vm322, %v2347, -inf
    %2403 = vmax.xlane.f32.xlu0 %v2402
    %v2404 = vpop.xlane.xlu0 %2403
    %v2405 = vsel %vm322, %v2397, -inf
    %2406 = vmax.xlane.f32.xlu0 %v2405
    %v2407 = vpop.xlane.xlu0 %2406
    %v2408 = vsub.f32 %v2347, %v2404
    %v2409 = vsub.f32 %v2397, %v2407
    %v2410 = vmul.f32 %v2408, 1.442695
    %v2411 = vpow.pop %v2410
    %v2412 = vmul.f32 %v2409, 1.442695
    %v2413 = vpow.pop %v2412
    %v2414 = vsel %vm322, %v2411, 0.0
    %2415 = vadd.xlane.f32.xlu0 %v2414
    %v2416 = vpop.xlane.xlu0 %2415
    %v2417 = vsel %vm322, %v2413, 0.0
    %2418 = vadd.xlane.f32.xlu0 %v2417
    %v2419 = vpop.xlane.xlu0 %2418
    %v2420 = vrcp.pop %v2416
    %v2421 = vrcp.pop %v2419
    %v2422 = vmul.f32 %v2411, %v2420
    %v2423 = vmul.f32 %v2413, %v2421
    %v2424 = vpack.c.bf16 %v2422, %v2422
    %v2425 = vpack.c.bf16 %v2423, %v2423
    %2426 = vrot.lane.b32.xlu0 %v1644, 40
    %v2427 = vpop.permute.xlu0 %2426
    %v2429 = vsel %vm322, %v2424, 0
    %v2432 = vsel %vm447, %v2427, 0
    %2434 = vmatprep.subr.bf16.mxu0 0
    %2435 = vmatpush1.bf16.msra.mxu0 0
    %2436 = vmatprep.subr.bf16.mxu0 0
    %2437 = vmatpush1.bf16.msra.mxu0 0
    %2438 = vmatprep.subr.bf16.mxu0 0
    %2439 = vmatpush1.bf16.msra.mxu0 0
    %2440 = vmatprep.subr.bf16.mxu0 0
    %2441 = vmatpush1.bf16.msra.mxu0 0
    %2442 = vmatprep.subr.bf16.mxu0 0
    %2443 = vmatpush1.bf16.msra.mxu0 0
    %2444 = vmatprep.subr.bf16.mxu0 0
    %2445 = vmatpush1.bf16.msra.mxu0 0
    %2446 = vmatprep.subr.bf16.mxu0 0
    %2447 = vmatpush1.bf16.msra.mxu0 0
    %2448 = vmatprep.subr.bf16.mxu0 0
    %2449 = vmatpush1.bf16.msra.mxu0 %v2432
    %2450 = vmatprep.subr.bf16.mxu0 0
    %2451 = vmatpush2.bf16.msra.mxu0 0
    %2452 = vmatprep.subr.bf16.mxu0 0
    %2453 = vmatpush2.bf16.msra.mxu0 0
    %2454 = vmatprep.subr.bf16.mxu0 0
    %2455 = vmatpush2.bf16.msra.mxu0 0
    %2456 = vmatprep.subr.bf16.mxu0 0
    %2457 = vmatpush2.bf16.msra.mxu0 0
    %2458 = vmatprep.subr.bf16.mxu0 0
    %2459 = vmatpush2.bf16.msra.mxu0 0
    %2460 = vmatprep.subr.bf16.mxu0 0
    %2461 = vmatpush2.bf16.msra.mxu0 0
    %2462 = vmatprep.subr.bf16.mxu0 0
    %2463 = vmatpush2.bf16.msra.mxu0 0
    %2464 = vmatprep.subr.bf16.mxu0 0
    %2465 = vmatpush2.bf16.msra.mxu0 0
    %2466 = vmatprep.mubr.bf16.mxu0 0
    %2467 = vmatmul.mubr.bf16.gmra.mxu0 %v2429
    %v2468 = vpop.f32.mrf.mxu0
    %v2469 = vadd.f32 0.0, %v2468
    %v2470 = vpop.f32.mrf.mxu0
    %v2471 = vpop.f32.mrf.mxu0
    %v2472 = vpop.f32.mrf.mxu0
    %2473 = vdwg.mxu0
    %2474 = vrot.lane.b32.xlu0 %v1693, 40
    %v2475 = vpop.permute.xlu0 %2474
    %v2477 = vsel %vm322, %v2425, 0
    %v2480 = vsel %vm447, %v2475, 0
    %2482 = vmatprep.subr.bf16.mxu0 0
    %2483 = vmatpush1.bf16.msra.mxu0 0
    %2484 = vmatprep.subr.bf16.mxu0 0
    %2485 = vmatpush1.bf16.msra.mxu0 0
    %2486 = vmatprep.subr.bf16.mxu0 0
    %2487 = vmatpush1.bf16.msra.mxu0 0
    %2488 = vmatprep.subr.bf16.mxu0 0
    %2489 = vmatpush1.bf16.msra.mxu0 0
    %2490 = vmatprep.subr.bf16.mxu0 0
    %2491 = vmatpush1.bf16.msra.mxu0 0
    %2492 = vmatprep.subr.bf16.mxu0 0
    %2493 = vmatpush1.bf16.msra.mxu0 0
    %2494 = vmatprep.subr.bf16.mxu0 0
    %2495 = vmatpush1.bf16.msra.mxu0 0
    %2496 = vmatprep.subr.bf16.mxu0 0
    %2497 = vmatpush1.bf16.msra.mxu0 %v2480
    %2498 = vmatprep.subr.bf16.mxu0 0
    %2499 = vmatpush2.bf16.msra.mxu0 0
    %2500 = vmatprep.subr.bf16.mxu0 0
    %2501 = vmatpush2.bf16.msra.mxu0 0
    %2502 = vmatprep.subr.bf16.mxu0 0
    %2503 = vmatpush2.bf16.msra.mxu0 0
    %2504 = vmatprep.subr.bf16.mxu0 0
    %2505 = vmatpush2.bf16.msra.mxu0 0
    %2506 = vmatprep.subr.bf16.mxu0 0
    %2507 = vmatpush2.bf16.msra.mxu0 0
    %2508 = vmatprep.subr.bf16.mxu0 0
    %2509 = vmatpush2.bf16.msra.mxu0 0
    %2510 = vmatprep.subr.bf16.mxu0 0
    %2511 = vmatpush2.bf16.msra.mxu0 0
    %2512 = vmatprep.subr.bf16.mxu0 0
    %2513 = vmatpush2.bf16.msra.mxu0 0
    %2514 = vmatprep.mubr.bf16.mxu0 0
    %2515 = vmatmul.mubr.bf16.gmra.mxu0 %v2477
    %v2516 = vpop.f32.mrf.mxu0
    %v2517 = vadd.f32 0.0, %v2516
    %v2518 = vpop.f32.mrf.mxu0
    %v2519 = vpop.f32.mrf.mxu0
    %v2520 = vpop.f32.mrf.mxu0
    %2521 = vdwg.mxu0
    %2524 = vrot.lane.b32.xlu0 %v2029, 8
    %v2525 = vpop.permute.xlu0 %2524
    %2526 = vrot.lane.b32.xlu0 %v2077, 8
    %v2527 = vpop.permute.xlu0 %2526
    %2532 = vrot.lane.b32.xlu0 %v2249, 16
    %v2533 = vpop.permute.xlu0 %2532
    %2534 = vrot.lane.b32.xlu0 %v2297, 16
    %v2535 = vpop.permute.xlu0 %2534
    %2540 = vrot.lane.b32.xlu0 %v2469, 24
    %v2541 = vpop.permute.xlu0 %2540
    %2542 = vrot.lane.b32.xlu0 %v2517, 24
    %v2543 = vpop.permute.xlu0 %2542
    %v2546 = vsel %vm322, %v1809, %v2525
    %v2547 = vsel %vm322, %v1857, %v2527
    %v2548 = vsel %vm1225, %v2546, %v2533
    %v2549 = vsel %vm1225, %v2547, %v2535
    %v2550 = vsel %vm1228, %v2548, %v2541
    %v2551 = vsel %vm1228, %v2549, %v2543
    %v2552 = vpack.c.bf16 %v2551, %v2550
    %s2553 = scalar_lea.vmem %s6, 16
    %v2554 = vld [vmem:[%s2553] sm:$0xf]
    %v2555 = vld [vmem:[%s2553 + $0x4] sm:$0xf]
    %v2556 = vld [vmem:[%s2553 + $0x8] sm:$0xf]
    %v2557 = vld [vmem:[%s2553 + $0xc] sm:$0xf]
    %s2558 = scalar_lea.vmem [#allocation11], 1
    %v2559 = vld [vmem:[%s2558] sm:$0x1]
    %v2561 = vlaneseq
    %v2562 = vshrl.u32 %v2561, 7
    %v2563 = vsub.s32 0, %v2562
    %v2564 = vrot.slane %v2559, %v2563
    %v2570 = vunpack.c.l.b16 %v2554
    %v2571 = vunpack.c.l.b16 %v2555
    %v2572 = vunpack.c.l.b16 %v2556
    %v2573 = vunpack.c.l.b16 %v2557
    %v2574 = vpack.c.b16 %v2571, %v2570
    %v2575 = vpack.c.b16 %v2573, %v2572
    %v2579 = vsel %vm161, %v2552, 0
    %2581 = vmatprep.subr.bf16.mxu0 0
    %2582 = vmatpush1.bf16.msra.mxu0 0
    %2583 = vmatprep.subr.bf16.mxu0 0
    %2584 = vmatpush1.bf16.msra.mxu0 0
    %2585 = vmatprep.subr.bf16.mxu0 0
    %2586 = vmatpush1.bf16.msra.mxu0 0
    %2587 = vmatprep.subr.bf16.mxu0 0
    %2588 = vmatpush1.bf16.msra.mxu0 0
    %2589 = vmatprep.subr.bf16.mxu0 0
    %2590 = vmatpush1.bf16.msra.mxu0 0
    %2591 = vmatprep.subr.bf16.mxu0 0
    %2592 = vmatpush1.bf16.msra.mxu0 0
    %2593 = vmatprep.subr.bf16.mxu0 0
    %2594 = vmatpush1.bf16.msra.mxu0 %v2575
    %2595 = vmatprep.subr.bf16.mxu0 0
    %2596 = vmatpush1.bf16.msra.mxu0 %v2574
    %2597 = vmatprep.subr.bf16.mxu0 0
    %2598 = vmatpush2.bf16.msra.mxu0 0
    %2599 = vmatprep.subr.bf16.mxu0 0
    %2600 = vmatpush2.bf16.msra.mxu0 0
    %2601 = vmatprep.subr.bf16.mxu0 0
    %2602 = vmatpush2.bf16.msra.mxu0 0
    %2603 = vmatprep.subr.bf16.mxu0 0
    %2604 = vmatpush2.bf16.msra.mxu0 0
    %2605 = vmatprep.subr.bf16.mxu0 0
    %2606 = vmatpush2.bf16.msra.mxu0 0
    %2607 = vmatprep.subr.bf16.mxu0 0
    %2608 = vmatpush2.bf16.msra.mxu0 0
    %2609 = vmatprep.subr.bf16.mxu0 0
    %2610 = vmatpush2.bf16.msra.mxu0 0
    %2611 = vmatprep.subr.bf16.mxu0 0
    %2612 = vmatpush2.bf16.msra.mxu0 0
    %2613 = vmatprep.mubr.bf16.mxu0 0
    %2614 = vmatmul.mubr.bf16.gmra.mxu0 %v2579
    %v2615 = vpop.f32.mrf.mxu0
    %v2616 = vadd.f32 %v2564, %v2615
    %v2617 = vpop.f32.mrf.mxu0
    %v2618 = vpop.f32.mrf.mxu0
    %v2619 = vadd.f32 %v2564, %v2618
    %v2620 = vpop.f32.mrf.mxu0
    %2621 = vdwg.mxu0
    %v2622 = vadd.f32 %v1560, %v2616
    %v2623 = vadd.f32 %v1561, %v2619
    %s2624 = scalar_lea.vmem [#allocation13], 1
    %v2625 = vld [vmem:[%s2624] sm:$0x1]
    %s2626 = scalar_lea.vmem %s9, 1
    %v2627 = vld [vmem:[%s2626] sm:$0x1]
    %v2628 = vsel %vm161, %v2622, 0.0
    %2629 = vadd.xlane.f32.xlu0 %v2628
    %v2630 = vpop.xlane.xlu0 %2629
    %v2631 = vsel %vm161, %v2623, 0.0
    %2632 = vadd.xlane.f32.xlu0 %v2631
    %v2633 = vpop.xlane.xlu0 %2632
    %v2634 = vmul.f32 %v2630, %v168
    %v2635 = vmul.f32 %v2633, %v168
    %v2636 = vsub.f32 %v2622, %v2634
    %v2637 = vsub.f32 %v2623, %v2635
    %v2638 = vmul.f32 %v2636, %v2636
    %v2639 = vmul.f32 %v2637, %v2637
    %v2640 = vsel %vm161, %v2638, 0.0
    %2641 = vadd.xlane.f32.xlu0 %v2640
    %v2642 = vpop.xlane.xlu0 %2641
    %v2643 = vsel %vm161, %v2639, 0.0
    %2644 = vadd.xlane.f32.xlu0 %v2643
    %v2645 = vpop.xlane.xlu0 %2644
    %v2646 = vmul.f32 %v2642, %v168
    %v2647 = vmul.f32 %v2645, %v168
    %v2648 = vadd.f32 %v2646, 1e-12
    %v2649 = vadd.f32 %v2647, 1e-12
    %v2650 = vrsqrt.pop %v2648
    %v2651 = vrsqrt.pop %v2649
    %v2652 = vmul.f32 %v2636, %v2650
    %v2653 = vmul.f32 %v2637, %v2651
    %v2655 = vlaneseq
    %v2656 = vshrl.u32 %v2655, 7
    %v2657 = vsub.s32 0, %v2656
    %v2658 = vrot.slane %v2625, %v2657
    %v2660 = vmul.f32 %v2652, %v2658
    %v2661 = vmul.f32 %v2653, %v2658
    %v2663 = vlaneseq
    %v2664 = vshrl.u32 %v2663, 7
    %v2665 = vsub.s32 0, %v2664
    %v2666 = vrot.slane %v2627, %v2665
    %v2668 = vadd.f32 %v2660, %v2666
    %v2669 = vadd.f32 %v2661, %v2666
    %v2670 = vpack.c.bf16 %v2669, %v2668
    %s2671 = scalar_lea.vmem %s10, 16
    %v2672 = vld [vmem:[%s2671] sm:$0xf]
    %v2673 = vld [vmem:[%s2671 + $0x4] sm:$0xf]
    %v2674 = vld [vmem:[%s2671 + $0x8] sm:$0xf]
    %v2675 = vld [vmem:[%s2671 + $0xc] sm:$0xf]
    %s2676 = scalar_lea.vmem %s11, 1
    %v2677 = vld [vmem:[%s2676] sm:$0x1]
    %v2679 = vlaneseq
    %v2680 = vshrl.u32 %v2679, 7
    %v2681 = vsub.s32 0, %v2680
    %v2682 = vrot.slane %v2677, %v2681
    %v2688 = vunpack.c.l.b16 %v2672
    %v2689 = vunpack.c.l.b16 %v2673
    %v2690 = vunpack.c.l.b16 %v2674
    %v2691 = vunpack.c.l.b16 %v2675
    %v2692 = vpack.c.b16 %v2689, %v2688
    %v2693 = vpack.c.b16 %v2691, %v2690
    %v2697 = vsel %vm161, %v2670, 0
    %2699 = vmatprep.subr.bf16.mxu0 0
    %2700 = vmatpush1.bf16.msra.mxu0 0
    %2701 = vmatprep.subr.bf16.mxu0 0
    %2702 = vmatpush1.bf16.msra.mxu0 0
    %2703 = vmatprep.subr.bf16.mxu0 0
    %2704 = vmatpush1.bf16.msra.mxu0 0
    %2705 = vmatprep.subr.bf16.mxu0 0
    %2706 = vmatpush1.bf16.msra.mxu0 0
    %2707 = vmatprep.subr.bf16.mxu0 0
    %2708 = vmatpush1.bf16.msra.mxu0 0
    %2709 = vmatprep.subr.bf16.mxu0 0
    %2710 = vmatpush1.bf16.msra.mxu0 0
    %2711 = vmatprep.subr.bf16.mxu0 0
    %2712 = vmatpush1.bf16.msra.mxu0 %v2693
    %2713 = vmatprep.subr.bf16.mxu0 0
    %2714 = vmatpush1.bf16.msra.mxu0 %v2692
    %2715 = vmatprep.subr.bf16.mxu0 0
    %2716 = vmatpush2.bf16.msra.mxu0 0
    %2717 = vmatprep.subr.bf16.mxu0 0
    %2718 = vmatpush2.bf16.msra.mxu0 0
    %2719 = vmatprep.subr.bf16.mxu0 0
    %2720 = vmatpush2.bf16.msra.mxu0 0
    %2721 = vmatprep.subr.bf16.mxu0 0
    %2722 = vmatpush2.bf16.msra.mxu0 0
    %2723 = vmatprep.subr.bf16.mxu0 0
    %2724 = vmatpush2.bf16.msra.mxu0 0
    %2725 = vmatprep.subr.bf16.mxu0 0
    %2726 = vmatpush2.bf16.msra.mxu0 0
    %2727 = vmatprep.subr.bf16.mxu0 0
    %2728 = vmatpush2.bf16.msra.mxu0 0
    %2729 = vmatprep.subr.bf16.mxu0 0
    %2730 = vmatpush2.bf16.msra.mxu0 0
    %2731 = vmatprep.mubr.bf16.mxu0 0
    %2732 = vmatmul.mubr.bf16.gmra.mxu0 %v2697
    %v2733 = vpop.f32.mrf.mxu0
    %v2734 = vadd.f32 %v2682, %v2733
    %v2735 = vpop.f32.mrf.mxu0
    %v2736 = vpop.f32.mrf.mxu0
    %v2737 = vadd.f32 %v2682, %v2736
    %v2738 = vpop.f32.mrf.mxu0
    %2739 = vdwg.mxu0
    %v2740 = vmul.f32 %v2734, %v2734
    %v2741 = vmul.f32 %v2737, %v2737
    %v2742 = vmul.f32 %v2734, %v2740
    %v2743 = vmul.f32 %v2737, %v2741
    %v2744 = vmul.f32 %v2742, 0.044715
    %v2745 = vmul.f32 %v2743, 0.044715
    %v2746 = vadd.f32 %v2734, %v2744
    %v2747 = vadd.f32 %v2737, %v2745
    %v2748 = vmul.f32 %v2746, 0.7978846
    %v2749 = vmul.f32 %v2747, 0.7978846
    %v2750 = vtanh.pop %v2748
    %v2751 = vtanh.pop %v2749
    %v2752 = vadd.f32 %v2750, 1.0
    %v2753 = vadd.f32 %v2751, 1.0
    %v2754 = vmul.f32 %v2752, 0.5
    %v2755 = vmul.f32 %v2753, 0.5
    %v2756 = vmul.f32 %v2734, %v2754
    %v2757 = vmul.f32 %v2737, %v2755
    %v2758 = vpack.c.bf16 %v2757, %v2756
    %s2759 = scalar_lea.vmem %s12, 32
    %v2760 = vld [vmem:[%s2759] sm:$0xf]
    %v2761 = vld [vmem:[%s2759 + $0x4] sm:$0xf]
    %v2762 = vld [vmem:[%s2759 + $0x8] sm:$0xf]
    %v2763 = vld [vmem:[%s2759 + $0xc] sm:$0xf]
    %v2764 = vld [vmem:[%s2759 + $0x10] sm:$0xf]
    %v2765 = vld [vmem:[%s2759 + $0x14] sm:$0xf]
    %v2766 = vld [vmem:[%s2759 + $0x18] sm:$0xf]
    %v2767 = vld [vmem:[%s2759 + $0x1c] sm:$0xf]
    %s2768 = scalar_lea.vmem %s13, 1
    %v2769 = vld [vmem:[%s2768] sm:$0x1]
    %v2771 = vlaneseq
    %v2772 = vshrl.u32 %v2771, 7
    %v2773 = vsub.s32 0, %v2772
    %v2774 = vrot.slane %v2769, %v2773
    %v2784 = vunpack.c.l.b16 %v2760
    %v2785 = vunpack.c.l.b16 %v2761
    %v2786 = vunpack.c.l.b16 %v2762
    %v2787 = vunpack.c.l.b16 %v2763
    %v2788 = vunpack.c.l.b16 %v2764
    %v2789 = vunpack.c.l.b16 %v2765
    %v2790 = vunpack.c.l.b16 %v2766
    %v2791 = vunpack.c.l.b16 %v2767
    %v2792 = vpack.c.b16 %v2785, %v2784
    %v2793 = vpack.c.b16 %v2787, %v2786
    %v2794 = vpack.c.b16 %v2789, %v2788
    %v2795 = vpack.c.b16 %v2791, %v2790
    %v2801 = vsel %vm1471, %v2758, 0
    %2803 = vmatprep.subr.bf16.mxu0 0
    %2804 = vmatpush1.bf16.msra.mxu0 0
    %2805 = vmatprep.subr.bf16.mxu0 0
    %2806 = vmatpush1.bf16.msra.mxu0 0
    %2807 = vmatprep.subr.bf16.mxu0 0
    %2808 = vmatpush1.bf16.msra.mxu0 0
    %2809 = vmatprep.subr.bf16.mxu0 0
    %2810 = vmatpush1.bf16.msra.mxu0 0
    %2811 = vmatprep.subr.bf16.mxu0 0
    %2812 = vmatpush1.bf16.msra.mxu0 %v2795
    %2813 = vmatprep.subr.bf16.mxu0 0
    %2814 = vmatpush1.bf16.msra.mxu0 %v2794
    %2815 = vmatprep.subr.bf16.mxu0 0
    %2816 = vmatpush1.bf16.msra.mxu0 %v2793
    %2817 = vmatprep.subr.bf16.mxu0 0
    %2818 = vmatpush1.bf16.msra.mxu0 %v2792
    %2819 = vmatprep.subr.bf16.mxu0 0
    %2820 = vmatpush2.bf16.msra.mxu0 0
    %2821 = vmatprep.subr.bf16.mxu0 0
    %2822 = vmatpush2.bf16.msra.mxu0 0
    %2823 = vmatprep.subr.bf16.mxu0 0
    %2824 = vmatpush2.bf16.msra.mxu0 0
    %2825 = vmatprep.subr.bf16.mxu0 0
    %2826 = vmatpush2.bf16.msra.mxu0 0
    %2827 = vmatprep.subr.bf16.mxu0 0
    %2828 = vmatpush2.bf16.msra.mxu0 0
    %2829 = vmatprep.subr.bf16.mxu0 0
    %2830 = vmatpush2.bf16.msra.mxu0 0
    %2831 = vmatprep.subr.bf16.mxu0 0
    %2832 = vmatpush2.bf16.msra.mxu0 0
    %2833 = vmatprep.subr.bf16.mxu0 0
    %2834 = vmatpush2.bf16.msra.mxu0 0
    %2835 = vmatprep.mubr.bf16.mxu0 0
    %2836 = vmatmul.mubr.bf16.gmra.mxu0 %v2801
    %v2837 = vpop.f32.mrf.mxu0
    %v2838 = vadd.f32 %v2774, %v2837
    %v2839 = vpop.f32.mrf.mxu0
    %v2840 = vpop.f32.mrf.mxu0
    %v2841 = vadd.f32 %v2774, %v2840
    %v2842 = vpop.f32.mrf.mxu0
    %2843 = vdwg.mxu0
    %v2844 = vadd.f32 %v2668, %v2838
    %v2845 = vadd.f32 %v2669, %v2841
    %s2846 = scalar_lea.vmem %s14, 1
    %v2847 = vld [vmem:[%s2846] sm:$0x1]
    %s2848 = scalar_lea.vmem %s15, 1
    %v2849 = vld [vmem:[%s2848] sm:$0x1]
    %v2850 = vsel %vm161, %v2844, 0.0
    %2851 = vadd.xlane.f32.xlu0 %v2850
    %v2852 = vpop.xlane.xlu0 %2851
    %v2853 = vsel %vm161, %v2845, 0.0
    %2854 = vadd.xlane.f32.xlu0 %v2853
    %v2855 = vpop.xlane.xlu0 %2854
    %v2856 = vmul.f32 %v2852, %v168
    %v2857 = vmul.f32 %v2855, %v168
    %v2858 = vsub.f32 %v2844, %v2856
    %v2859 = vsub.f32 %v2845, %v2857
    %v2860 = vmul.f32 %v2858, %v2858
    %v2861 = vmul.f32 %v2859, %v2859
    %v2862 = vsel %vm161, %v2860, 0.0
    %2863 = vadd.xlane.f32.xlu0 %v2862
    %v2864 = vpop.xlane.xlu0 %2863
    %v2865 = vsel %vm161, %v2861, 0.0
    %2866 = vadd.xlane.f32.xlu0 %v2865
    %v2867 = vpop.xlane.xlu0 %2866
    %v2868 = vmul.f32 %v2864, %v168
    %v2869 = vmul.f32 %v2867, %v168
    %v2870 = vadd.f32 %v2868, 1e-12
    %v2871 = vadd.f32 %v2869, 1e-12
    %v2872 = vrsqrt.pop %v2870
    %v2873 = vrsqrt.pop %v2871
    %v2874 = vmul.f32 %v2858, %v2872
    %v2875 = vmul.f32 %v2859, %v2873
    %v2877 = vlaneseq
    %v2878 = vshrl.u32 %v2877, 7
    %v2879 = vsub.s32 0, %v2878
    %v2880 = vrot.slane %v2847, %v2879
    %v2882 = vmul.f32 %v2874, %v2880
    %v2883 = vmul.f32 %v2875, %v2880
    %v2885 = vlaneseq
    %v2886 = vshrl.u32 %v2885, 7
    %v2887 = vsub.s32 0, %v2886
    %v2888 = vrot.slane %v2849, %v2887
    %v2890 = vadd.f32 %v2882, %v2888
    %v2891 = vadd.f32 %v2883, %v2888
    %v2892 = vpack.c.bf16 %v2890, %v2890
    %v2893 = vpack.c.bf16 %v2891, %v2891
    %v2894 = vld [vmem:[%s16] sm:$0xf]
    %v2895 = vld [vmem:[%s16 + $0x4] sm:$0xf]
    %v2896 = vld [vmem:[%s16 + $0x8] sm:$0xf]
    %v2897 = vld [vmem:[%s16 + $0xc] sm:$0xf]
    %v2898 = vld [vmem:[%s17] sm:$0x1]
    %v2900 = vlaneseq
    %v2901 = vshrl.u32 %v2900, 7
    %v2902 = vsub.s32 0, %v2901
    %v2903 = vrot.slane %v2898, %v2902
    %v2907 = vunpack.c.l.b16 %v2892
    %v2908 = vunpack.c.l.b16 %v2893
    %v2909 = vrot.slane %v2908, 7
    %vm2910 = vcmask 1041409
    %v2911 = vsel %vm2910, %v2909, %v2907
    %v2912 = vpack.c.b16 %v2911, %v2911
    %v2917 = vunpack.c.l.b16 %v2894
    %v2918 = vunpack.c.l.b16 %v2895
    %v2919 = vunpack.c.l.b16 %v2896
    %v2920 = vunpack.c.l.b16 %v2897
    %v2921 = vpack.c.b16 %v2918, %v2917
    %v2922 = vpack.c.b16 %v2920, %v2919
    %v2926 = vsel %vm161, %v2912, 0
    %2928 = vmatprep.subr.bf16.mxu0 0
    %2929 = vmatpush1.bf16.msra.mxu0 0
    %2930 = vmatprep.subr.bf16.mxu0 0
    %2931 = vmatpush1.bf16.msra.mxu0 0
    %2932 = vmatprep.subr.bf16.mxu0 0
    %2933 = vmatpush1.bf16.msra.mxu0 0
    %2934 = vmatprep.subr.bf16.mxu0 0
    %2935 = vmatpush1.bf16.msra.mxu0 0
    %2936 = vmatprep.subr.bf16.mxu0 0
    %2937 = vmatpush1.bf16.msra.mxu0 0
    %2938 = vmatprep.subr.bf16.mxu0 0
    %2939 = vmatpush1.bf16.msra.mxu0 0
    %2940 = vmatprep.subr.bf16.mxu0 0
    %2941 = vmatpush1.bf16.msra.mxu0 %v2922
    %2942 = vmatprep.subr.bf16.mxu0 0
    %2943 = vmatpush1.bf16.msra.mxu0 %v2921
    %2944 = vmatprep.subr.bf16.mxu0 0
    %2945 = vmatpush2.bf16.msra.mxu0 0
    %2946 = vmatprep.subr.bf16.mxu0 0
    %2947 = vmatpush2.bf16.msra.mxu0 0
    %2948 = vmatprep.subr.bf16.mxu0 0
    %2949 = vmatpush2.bf16.msra.mxu0 0
    %2950 = vmatprep.subr.bf16.mxu0 0
    %2951 = vmatpush2.bf16.msra.mxu0 0
    %2952 = vmatprep.subr.bf16.mxu0 0
    %2953 = vmatpush2.bf16.msra.mxu0 0
    %2954 = vmatprep.subr.bf16.mxu0 0
    %2955 = vmatpush2.bf16.msra.mxu0 0
    %2956 = vmatprep.subr.bf16.mxu0 0
    %2957 = vmatpush2.bf16.msra.mxu0 0
    %2958 = vmatprep.subr.bf16.mxu0 0
    %2959 = vmatpush2.bf16.msra.mxu0 0
    %2960 = vmatprep.mubr.bf16.mxu0 0
    %2961 = vmatmul.mubr.bf16.gmra.mxu0 %v2926
    %v2962 = vpop.f32.mrf.mxu0
    %v2963 = vadd.f32 %v2903, %v2962
    %v2964 = vpop.f32.mrf.mxu0
    %v2965 = vpop.f32.mrf.mxu0
    %v2966 = vpop.f32.mrf.mxu0
    %2967 = vdwg.mxu0
    %v2968 = vtanh.pop %v2963
    %v2969 = vld [vmem:[%s18] sm:$0x1]
    %v2971 = vlaneseq
    %v2972 = vshrl.u32 %v2971, 7
    %v2973 = vsub.s32 0, %v2972
    %v2974 = vrot.slane %v2969, %v2973
    %v2976 = vmul.f32 %v2968, %v2974
    %vm2977 = vcmask 254976
    %v2978 = vsel %vm2977, %v2976, 0.0
    %2979 = vadd.xlane.f32.xlu0 %v2978
    %v2980 = vpop.xlane.xlu0 %2979
    %v2981 = vld [vmem:[#allocation2] sm:$0x1]
    %v2983 = vlaneseq
    %v2984 = vshrl.u32 %v2983, 7
    %v2985 = vsub.s32 0, %v2984
    %v2986 = vrot.slane %v2981, %v2985
    %v2988 = vadd.f32 %v2980, %v2986
    %vm2989 = vcmask 1024
    %2990 = vst.msk [vmem:[%s20] sm:$0x3] %vm2989, %v2988
    // Predicated region
    $region110: #{tpu_custom_call.1} parent=1 // pred_check
      _
    $region111: #{tpu_custom_call.1} parent=1 // pred_check_branch
      %2992 = sbr.rel (0) target = $region113
    $region112: #{tpu_custom_call.1} parent=1 // pred_region
      _
    $region113: #{tpu_custom_call.1} parent=1 // pred_fallthru
      _
    // Predicated region
    $region114: #{tpu_custom_call.1} parent=1 // pred_check
      _
    $region115: #{tpu_custom_call.1} parent=1 // pred_check_branch
      %2994 = sbr.rel (0) target = $region117
    $region116: #{tpu_custom_call.1} parent=1 // pred_region
      _
    $region117: #{tpu_custom_call.1} parent=1 // pred_fallthru
      _
    %2995 = vsyncpa [#allocation4], 1
    %2996 = vsyncpa [#allocation6], 1
    %2997 = vsyncpa [#allocation9], 1
    %2998 = vsyncpa [#allocation12], 1

</llo_original>
